<compile_context>
chip_gen: v7x
topology: tpu7x:2x2x1
jax: 0.10.0
libtpu: 0.0.40
codegen_flags: <defaults>
</compile_context>

<pallas_src>
import functools

import jax
import jax.numpy as jnp
from jax.experimental import pallas as pl
from jax.experimental.pallas import tpu as pltpu

KSIZE = 7
PAD = (KSIZE - 1) // 2      # 3
CBLK = 8                    # channel block for the reduction / apply loops
RSTRIP = 8                  # output-row strip for the 7x7 conv


# --------------------------------------------------------------------------- #
# small helpers
# --------------------------------------------------------------------------- #
def _round_up(x, m):
    return (x + m - 1) // m * m


def _sublane(itemsize):
    return max(8, 32 // itemsize)


def _tile_bytes(h, w, itemsize):
    return _round_up(h, _sublane(itemsize)) * _round_up(w, 128) * itemsize


def _vmem_capacity_bytes():
    try:
        info = pltpu.get_tpu_info()
        cap = getattr(info, "vmem_capacity_bytes", None)
        if cap:
            return int(cap)
    except Exception:
        pass
    return 64 * 1024 * 1024  # conservative (v7x per-TC) fallback


# --------------------------------------------------------------------------- #
# in-kernel building blocks (shared by the fused and the split kernels)
# --------------------------------------------------------------------------- #
def _fill_padded_maps(pad_ref, ch_max, ch_mean, H, W, WC):
    """Write the two pooled (H, W) maps into the zero-padded conv scratch."""
    f32 = jnp.float32
    # top / bottom halo rows (full padded width)
    z_tb = jnp.zeros((2, PAD, WC), f32)
    pad_ref[:, 0:PAD, :] = z_tb
    pad_ref[:, PAD + H:PAD + H + PAD, :] = z_tb
    # right halo + lane-padding tail of the interior rows
    pad_ref[:, PAD:PAD + H, PAD + W:WC] = jnp.zeros((2, H, WC - PAD - W), f32)
    # interiors: prepend the PAD left-halo zeros so the store starts at lane 0
    zl = jnp.zeros((H, PAD), f32)
    pad_ref[0, PAD:PAD + H, 0:PAD + W] = jnp.concatenate([zl, ch_max], axis=1)
    pad_ref[1, PAD:PAD + H, 0:PAD + W] = jnp.concatenate([zl, ch_mean], axis=1)


def _conv7x7_sigmoid(pad_ref, w_ref, b_ref, scale_ref, H, W):
    """7x7 conv (2->1, stride 1, pad 3) + sigmoid, strip-mined over 8 rows."""
    f32 = jnp.float32
    bias = b_ref[0]
    for r0 in range(0, H, RSTRIP):
        rs = min(RSTRIP, H - r0)
        acc = jnp.full((rs, W), bias, dtype=f32)   # register-resident strip acc
        for cin in range(2):
            for ky in range(KSIZE):
                band = pad_ref[cin, r0 + ky:r0 + ky + rs, :]   # (rs, WC) load
                for kx in range(KSIZE):
                    w = w_ref[cin * KSIZE * KSIZE + ky * KSIZE + kx]
                    acc = acc + w * band[:, kx:kx + W]
        scale_ref[r0:r0 + rs, :] = jax.nn.sigmoid(acc)


def _channel_max_sum(x_ref, C):
    """Blocked (8-channel) max / sum over the channel axis -> two (H, W) maps."""
    f32 = jnp.float32
    step = CBLK if C >= CBLK else C
    v = x_ref[0:step].astype(f32)                 # (step, H, W)
    ch_max = jnp.max(v, axis=0)
    ch_sum = jnp.sum(v, axis=0)
    for c0 in range(step, C, step):
        cb = min(step, C - c0)
        v = x_ref[c0:c0 + cb].astype(f32)
        ch_max = jnp.maximum(ch_max, jnp.max(v, axis=0))
        ch_sum = ch_sum + jnp.sum(v, axis=0)
    return ch_max, ch_sum


# --------------------------------------------------------------------------- #
# fused single-kernel path (whole (C, H, W) slab resident per grid step)
# --------------------------------------------------------------------------- #
def _fused_kernel(x_ref, w_ref, b_ref, o_ref, pad_ref, scale_ref, *, C, H, W, WC):
    # x_ref/o_ref : (C, H, W)          VMEM (full contiguous HBM slab per batch)
    # w_ref       : (98,)   SMEM       flattened conv weight [cin, kh, kw]
    # b_ref       : (1,)    SMEM
    # pad_ref     : (2, H + 6, WC)     VMEM f32 scratch (zero-padded pooled maps)
    # scale_ref   : (H, W)             VMEM f32 scratch (sigmoid(conv) map)

    # pass 1: blocked channel max / mean
    ch_max, ch_sum = _channel_max_sum(x_ref, C)
    ch_mean = ch_sum * (1.0 / C)

    # 7x7 conv + sigmoid on the pooled maps
    _fill_padded_maps(pad_ref, ch_max, ch_mean, H, W, WC)
    _conv7x7_sigmoid(pad_ref, w_ref, b_ref, scale_ref, H, W)

    # pass 2: channel-blocked apply (x stays VMEM-resident, no extra HBM read)
    scale = scale_ref[...].astype(o_ref.dtype)    # cast once (bf16 apply path)
    step = CBLK if C >= CBLK else C
    for c0 in range(0, C, step):
        cb = min(step, C - c0)
        xv = x_ref[c0:c0 + cb]
        o_ref[c0:c0 + cb] = (xv * scale).astype(o_ref.dtype)


def _fused_vmem_need(C, H, W, itemsize):
    plane_x = _tile_bytes(H, W, itemsize)
    plane_f = _tile_bytes(H, W, 4)
    WC = _round_up(W + 2 * PAD, 128)
    block = C * plane_x
    scratch = 2 * _round_up(H + 2 * PAD, 8) * WC * 4 + plane_f
    temps = (3 * CBLK + 8) * plane_f
    return 4 * block + scratch + temps + (8 << 20)


def _spatial_gate_fused(x, w_flat, b, vmem_limit, donate_x):
    N, C, H, W = x.shape
    WC = _round_up(W + 2 * PAD, 128)
    itemsize = jnp.dtype(x.dtype).itemsize
    hw = H * W

    cost = pl.CostEstimate(
        flops=int(N * (3 * C * hw + 4 * KSIZE * KSIZE * hw)),
        transcendentals=int(N * hw),
        bytes_accessed=int(2 * N * C * hw * itemsize),
    )

    kernel = functools.partial(_fused_kernel, C=C, H=H, W=W, WC=WC)
    return pl.pallas_call(
        kernel,
        out_shape=jax.ShapeDtypeStruct((N, C, H, W), x.dtype),
        grid_spec=pltpu.PrefetchScalarGridSpec(
            num_scalar_prefetch=0,
            grid=(N,),
            in_specs=[
                pl.BlockSpec((None, C, H, W), lambda n: (n, 0, 0, 0)),
                pl.BlockSpec(memory_space=pltpu.SMEM),
                pl.BlockSpec(memory_space=pltpu.SMEM),
            ],
            out_specs=pl.BlockSpec((None, C, H, W), lambda n: (n, 0, 0, 0)),
            scratch_shapes=[
                pltpu.VMEM((2, H + 2 * PAD, WC), jnp.float32),
                pltpu.VMEM((H, W), jnp.float32),
            ],
        ),
        compiler_params=pltpu.CompilerParams(
            dimension_semantics=("parallel",),
            vmem_limit_bytes=vmem_limit,
        ),
        cost_estimate=cost,
        input_output_aliases=({0: 0} if donate_x else {}),
    )(x, w_flat, b)


# --------------------------------------------------------------------------- #
# C-blocked split path (fallback when the whole slab does not fit VMEM)
# --------------------------------------------------------------------------- #
def _reduce_conv_kernel(x_ref, w_ref, b_ref, scale_ref,
                        max_acc, sum_acc, pad_ref, *, C, H, W, WC):
    # x_ref : (CB, H, W) channel block; scale_ref : (H, W) output (written last)
    f32 = jnp.float32
    cb = pl.program_id(1)
    last = pl.num_programs(1) - 1

    @pl.when(cb == 0)
    def _():
        max_acc[...] = jnp.full(max_acc.shape, -jnp.inf, max_acc.dtype)
        sum_acc[...] = jnp.zeros(sum_acc.shape, sum_acc.dtype)

    v = x_ref[...].astype(f32)                       # (CB, H, W)
    max_acc[...] = jnp.maximum(max_acc[...], jnp.max(v, axis=0))
    sum_acc[...] = sum_acc[...] + jnp.sum(v, axis=0)

    @pl.when(cb == last)
    def _():
        ch_max = max_acc[...]
        ch_mean = sum_acc[...] * (1.0 / C)
        _fill_padded_maps(pad_ref, ch_max, ch_mean, H, W, WC)
        _conv7x7_sigmoid(pad_ref, w_ref, b_ref, scale_ref, H, W)


def _apply_kernel(x_ref, scale_ref, o_ref):
    scale = scale_ref[...].astype(o_ref.dtype)       # (H, W), cast once
    o_ref[...] = (x_ref[...] * scale).astype(o_ref.dtype)


def _split_vmem_limits(CB, H, W, itemsize, cap):
    plane_x = _tile_bytes(H, W, itemsize)
    plane_f = _tile_bytes(H, W, 4)
    WC = _round_up(W + 2 * PAD, 128)
    pad_scr = 2 * _round_up(H + 2 * PAD, 8) * WC * 4
    need_a = 2 * CB * plane_x + 4 * plane_f + pad_scr + (CB + 6) * plane_f + (8 << 20)
    need_b = 4 * CB * plane_x + 2 * plane_f + (2 * CB + 4) * plane_f + (8 << 20)
    clamp = lambda v: int(min(max(v, 32 << 20), int(0.9 * cap)))
    return clamp(need_a), clamp(need_b)


def _compute_scale_split(x, w_flat, b, CB, vmem_limit):
    N, C, H, W = x.shape
    WC = _round_up(W + 2 * PAD, 128)
    n_cb = C // CB
    kernel = functools.partial(_reduce_conv_kernel, C=C, H=H, W=W, WC=WC)
    return pl.pallas_call(
        kernel,
        out_shape=jax.ShapeDtypeStruct((N, H, W), jnp.float32),
        grid_spec=pltpu.PrefetchScalarGridSpec(
            num_scalar_prefetch=0,
            grid=(N, n_cb),
            in_specs=[
                pl.BlockSpec((None, CB, H, W), lambda n, c: (n, c, 0, 0)),
                pl.BlockSpec(memory_space=pltpu.SMEM),
                pl.BlockSpec(memory_space=pltpu.SMEM),
            ],
            out_specs=pl.BlockSpec((None, H, W), lambda n, c: (n, 0, 0)),
            scratch_shapes=[
                pltpu.VMEM((H, W), jnp.float32),                       # max acc
                pltpu.VMEM((H, W), jnp.float32),                       # sum acc
                pltpu.VMEM((2, H + 2 * PAD, WC), jnp.float32),         # conv pad
            ],
        ),
        compiler_params=pltpu.CompilerParams(
            dimension_semantics=("parallel", "arbitrary"),
            vmem_limit_bytes=vmem_limit,
        ),
    )(x, w_flat, b)


def _apply_split(x, scale, CB, vmem_limit, donate_x):
    N, C, H, W = x.shape
    n_cb = C // CB
    return pl.pallas_call(
        _apply_kernel,
        out_shape=jax.ShapeDtypeStruct((N, C, H, W), x.dtype),
        grid_spec=pltpu.PrefetchScalarGridSpec(
            num_scalar_prefetch=0,
            grid=(N, n_cb),
            in_specs=[
                pl.BlockSpec((None, CB, H, W), lambda n, c: (n, c, 0, 0)),
                pl.BlockSpec((None, H, W), lambda n, c: (n, 0, 0)),
            ],
            out_specs=pl.BlockSpec((None, CB, H, W), lambda n, c: (n, c, 0, 0)),
        ),
        compiler_params=pltpu.CompilerParams(
            dimension_semantics=("parallel", "parallel"),
            vmem_limit_bytes=vmem_limit,
        ),
        input_output_aliases=({0: 0} if donate_x else {}),
    )(x, scale)


# --------------------------------------------------------------------------- #
# public wrapper
# --------------------------------------------------------------------------- #
def spatial_gate(x, weight, bias, *, donate_x=False, force_split=False):
    """SpatialGate forward.  x: (N, C, H, W); weight: (1, 2, 7, 7); bias: (1,)."""
    N, C, H, W = x.shape
    w_flat = weight.reshape(-1).astype(jnp.float32)     # (98,), [cin, kh, kw]
    b = bias.reshape(-1).astype(jnp.float32)            # (1,)
    itemsize = jnp.dtype(x.dtype).itemsize

    cap = _vmem_capacity_bytes()
    need = _fused_vmem_need(C, H, W, itemsize)

    if force_split or need > int(0.85 * cap):
        cb = CBLK if C % CBLK == 0 else 1
        limit_a, limit_b = _split_vmem_limits(cb, H, W, itemsize, cap)
        scale = _compute_scale_split(x, w_flat, b, cb, limit_a)
        return _apply_split(x, scale, cb, limit_b, donate_x)

    vmem_limit = int(min(max(need, 32 << 20), int(0.9 * cap)))
    return _spatial_gate_fused(x, w_flat, b, vmem_limit, donate_x)


def spatial_gate_ref(x, weight, bias):
    """Pure-JAX reference matching the PyTorch SpatialGate forward."""
    ch_max = jnp.max(x, axis=1, keepdims=True)
    ch_mean = jnp.mean(x, axis=1, keepdims=True)
    pooled = jnp.concatenate([ch_max, ch_mean], axis=1)          # (N, 2, H, W)
    conv = jax.lax.conv_general_dilated(
        pooled, weight, window_strides=(1, 1),
        padding=[(PAD, PAD), (PAD, PAD)],
        dimension_numbers=("NCHW", "OIHW", "NCHW"))
    conv = conv + bias.reshape(1, 1, 1, 1)
    return x * jax.nn.sigmoid(conv)


# --------------------------------------------------------------------------- #
# self-test
# --------------------------------------------------------------------------- #
if __name__ == "__main__":
    key = jax.random.PRNGKey(0)
    kx, kw, kb = jax.random.split(key, 3)

    # Deterministic synthetic Conv2d(2, 1, 7, padding=3) parameters.
    fan_in = 2 * KSIZE * KSIZE
    bound = 1.0 / (fan_in ** 0.5)
    weight = jax.random.uniform(kw, (1, 2, KSIZE, KSIZE), jnp.float32,
                                -bound, bound)
    bias = jax.random.uniform(kb, (1,), jnp.float32, -bound, bound)

    def check(x, force_split, tag):
        out = spatial_gate(x, weight, bias, force_split=force_split)
        out = jax.block_until_ready(out)
        ref = spatial_gate_ref(x, weight, bias)
        assert out.shape == x.shape and out.dtype == x.dtype, f"shape/dtype ({tag})"
        assert jnp.allclose(out, ref, atol=1e-5, rtol=1e-5), f"mismatch ({tag})"

    # primary shape (fused path)
    x0 = jax.random.normal(kx, (2, 4, 16, 16), jnp.float32)
    check(x0, False, "fused 2x4x16x16")

    # odd spatial dims / C < 8: masked lanes, conv strip tail (fused path)
    x1 = jax.random.normal(jax.random.fold_in(kx, 1), (1, 6, 12, 20), jnp.float32)
    check(x1, False, "fused 1x6x12x20")

    # C-blocked split fallback, CB = 8
    x2 = jax.random.normal(jax.random.fold_in(kx, 2), (2, 16, 16, 16), jnp.float32)
    check(x2, True, "split CB=8")

    # C-blocked split fallback, CB = 1 (C not a multiple of 8)
    x3 = jax.random.normal(jax.random.fold_in(kx, 3), (2, 5, 12, 20), jnp.float32)
    check(x3, True, "split CB=1")

    print("KERNEL_OK")
</pallas_src>

<mosaic_0001>
module attributes {stable_mosaic.version = 11 : i64} {
  func.func @_fused_kernel(%arg0: i32, %arg1: memref<1x4x16x16xf32, #tpu.memory_space<vmem>>, %arg2: memref<98xf32, #tpu.memory_space<smem>>, %arg3: memref<1xf32, #tpu.memory_space<smem>>, %arg4: memref<1x4x16x16xf32, #tpu.memory_space<vmem>>, %arg5: memref<2x22x128xf32, #tpu.memory_space<vmem>>, %arg6: memref<16x16xf32, #tpu.memory_space<vmem>>) attributes {dimension_semantics = [#tpu.dimension_semantics<parallel>], iteration_bounds = array<i64: 2>, scalar_prefetch = 0 : i64, scratch_operands = 2 : i64, tpu.core_type = #tpu.core_type<tc>, window_params = [{transform_indices = @transform_0, window_bounds = array<i64: 1, 4, 16, 16>}, {transform_indices = @transform_1, window_bounds = array<i64: 98>}, {transform_indices = @transform_2, window_bounds = array<i64: 1>}, {transform_indices = @transform_3, window_bounds = array<i64: 1, 4, 16, 16>}]} {
    %c0 = arith.constant 0 : index
    %c0_0 = arith.constant 0 : index
    %c0_1 = arith.constant 0 : index
    %c0_2 = arith.constant 0 : index
    %0 = vector.load %arg1[%c0, %c0_0, %c0_1, %c0_2] : memref<1x4x16x16xf32, #tpu.memory_space<vmem>>, vector<1x4x16x16xf32>
    %1 = vector.shape_cast %0 : vector<1x4x16x16xf32> to vector<4x16x16xf32>
    %cst = arith.constant dense<0xFF800000> : vector<16x16xf32>
    %2 = vector.multi_reduction <maximumf>, %1, %cst [0] : vector<4x16x16xf32> to vector<16x16xf32>
    %cst_3 = arith.constant dense<0.000000e+00> : vector<16x16xf32>
    %3 = vector.multi_reduction <add>, %1, %cst_3 [0] : vector<4x16x16xf32> to vector<16x16xf32>
    %cst_4 = arith.constant 2.500000e-01 : f32
    %4 = vector.broadcast %cst_4 : f32 to vector<16x16xf32>
    %5 = arith.mulf %3, %4 : vector<16x16xf32>
    %cst_5 = arith.constant 0.000000e+00 : f32
    %6 = vector.broadcast %cst_5 : f32 to vector<2x3x128xf32>
    %c0_6 = arith.constant 0 : index
    %c0_7 = arith.constant 0 : index
    %c0_8 = arith.constant 0 : index
    %7 = vector.load %arg5[%c0_6, %c0_7, %c0_8] : memref<2x22x128xf32, #tpu.memory_space<vmem>>, vector<2x3x128xf32>
    tpu.vector_store %arg5[%c0_6, %c0_7, %c0_8], %6 {strides = array<i32>} : memref<2x22x128xf32, #tpu.memory_space<vmem>>, vector<2x3x128xf32>,
    %c0_9 = arith.constant 0 : index
    %c19 = arith.constant 19 : index
    %c0_10 = arith.constant 0 : index
    %8 = vector.load %arg5[%c0_9, %c19, %c0_10] : memref<2x22x128xf32, #tpu.memory_space<vmem>>, vector<2x3x128xf32>
    tpu.vector_store %arg5[%c0_9, %c19, %c0_10], %6 {strides = array<i32>} : memref<2x22x128xf32, #tpu.memory_space<vmem>>, vector<2x3x128xf32>,
    %cst_11 = arith.constant 0.000000e+00 : f32
    %9 = vector.broadcast %cst_11 : f32 to vector<2x16x109xf32>
    %c0_12 = arith.constant 0 : index
    %c3 = arith.constant 3 : index
    %c19_13 = arith.constant 19 : index
    %10 = vector.load %arg5[%c0_12, %c3, %c19_13] : memref<2x22x128xf32, #tpu.memory_space<vmem>>, vector<2x16x109xf32>
    tpu.vector_store %arg5[%c0_12, %c3, %c19_13], %9 {strides = array<i32>} : memref<2x22x128xf32, #tpu.memory_space<vmem>>, vector<2x16x109xf32>,
    %cst_14 = arith.constant 0.000000e+00 : f32
    %11 = vector.broadcast %cst_14 : f32 to vector<16x3xf32>
    %12 = tpu.concatenate %11, %2 in 1 : vector<16x3xf32>, vector<16x16xf32> -> vector<16x19xf32>
    %c0_15 = arith.constant 0 : index
    %c3_16 = arith.constant 3 : index
    %c0_17 = arith.constant 0 : index
    %13 = vector.load %arg5[%c0_15, %c3_16, %c0_17] : memref<2x22x128xf32, #tpu.memory_space<vmem>>, vector<1x16x19xf32>
    %14 = vector.shape_cast %13 : vector<1x16x19xf32> to vector<16x19xf32>
    %15 = vector.shape_cast %12 : vector<16x19xf32> to vector<1x16x19xf32>
    tpu.vector_store %arg5[%c0_15, %c3_16, %c0_17], %15 {strides = array<i32>} : memref<2x22x128xf32, #tpu.memory_space<vmem>>, vector<1x16x19xf32>,
    %16 = tpu.concatenate %11, %5 in 1 : vector<16x3xf32>, vector<16x16xf32> -> vector<16x19xf32>
    %c1 = arith.constant 1 : index
    %c3_18 = arith.constant 3 : index
    %c0_19 = arith.constant 0 : index
    %17 = vector.load %arg5[%c1, %c3_18, %c0_19] : memref<2x22x128xf32, #tpu.memory_space<vmem>>, vector<1x16x19xf32>
    %18 = vector.shape_cast %17 : vector<1x16x19xf32> to vector<16x19xf32>
    %19 = vector.shape_cast %16 : vector<16x19xf32> to vector<1x16x19xf32>
    tpu.vector_store %arg5[%c1, %c3_18, %c0_19], %19 {strides = array<i32>} : memref<2x22x128xf32, #tpu.memory_space<vmem>>, vector<1x16x19xf32>,
    %c0_20 = arith.constant 0 : index
    %20 = memref.load %arg3[%c0_20] : memref<1xf32, #tpu.memory_space<smem>>
    %21 = vector.broadcast %20 : f32 to vector<8x16xf32>
    %c0_21 = arith.constant 0 : index
    %c0_22 = arith.constant 0 : index
    %c0_23 = arith.constant 0 : index
    %22 = vector.load %arg5[%c0_21, %c0_22, %c0_23] : memref<2x22x128xf32, #tpu.memory_space<vmem>>, vector<1x8x128xf32>
    %23 = vector.shape_cast %22 : vector<1x8x128xf32> to vector<8x128xf32>
    %c0_24 = arith.constant 0 : index
    %24 = memref.load %arg2[%c0_24] : memref<98xf32, #tpu.memory_space<smem>>
    %25 = vector.extract_strided_slice %23 {offsets = [0, 0], sizes = [8, 16], strides = [1, 1]} : vector<8x128xf32> to vector<8x16xf32>
    %26 = vector.broadcast %24 : f32 to vector<8x16xf32>
    %27 = arith.mulf %26, %25 : vector<8x16xf32>
    %28 = arith.addf %21, %27 : vector<8x16xf32>
    %c1_25 = arith.constant 1 : index
    %29 = memref.load %arg2[%c1_25] : memref<98xf32, #tpu.memory_space<smem>>
    %30 = vector.extract_strided_slice %23 {offsets = [0, 1], sizes = [8, 16], strides = [1, 1]} : vector<8x128xf32> to vector<8x16xf32>
    %31 = vector.broadcast %29 : f32 to vector<8x16xf32>
    %32 = arith.mulf %31, %30 : vector<8x16xf32>
    %33 = arith.addf %28, %32 : vector<8x16xf32>
    %c2 = arith.constant 2 : index
    %34 = memref.load %arg2[%c2] : memref<98xf32, #tpu.memory_space<smem>>
    %35 = vector.extract_strided_slice %23 {offsets = [0, 2], sizes = [8, 16], strides = [1, 1]} : vector<8x128xf32> to vector<8x16xf32>
    %36 = vector.broadcast %34 : f32 to vector<8x16xf32>
    %37 = arith.mulf %36, %35 : vector<8x16xf32>
    %38 = arith.addf %33, %37 : vector<8x16xf32>
    %c3_26 = arith.constant 3 : index
    %39 = memref.load %arg2[%c3_26] : memref<98xf32, #tpu.memory_space<smem>>
    %40 = vector.extract_strided_slice %23 {offsets = [0, 3], sizes = [8, 16], strides = [1, 1]} : vector<8x128xf32> to vector<8x16xf32>
    %41 = vector.broadcast %39 : f32 to vector<8x16xf32>
    %42 = arith.mulf %41, %40 : vector<8x16xf32>
    %43 = arith.addf %38, %42 : vector<8x16xf32>
    %c4 = arith.constant 4 : index
    %44 = memref.load %arg2[%c4] : memref<98xf32, #tpu.memory_space<smem>>
    %45 = vector.extract_strided_slice %23 {offsets = [0, 4], sizes = [8, 16], strides = [1, 1]} : vector<8x128xf32> to vector<8x16xf32>
    %46 = vector.broadcast %44 : f32 to vector<8x16xf32>
    %47 = arith.mulf %46, %45 : vector<8x16xf32>
    %48 = arith.addf %43, %47 : vector<8x16xf32>
    %c5 = arith.constant 5 : index
    %49 = memref.load %arg2[%c5] : memref<98xf32, #tpu.memory_space<smem>>
    %50 = vector.extract_strided_slice %23 {offsets = [0, 5], sizes = [8, 16], strides = [1, 1]} : vector<8x128xf32> to vector<8x16xf32>
    %51 = vector.broadcast %49 : f32 to vector<8x16xf32>
    %52 = arith.mulf %51, %50 : vector<8x16xf32>
    %53 = arith.addf %48, %52 : vector<8x16xf32>
    %c6 = arith.constant 6 : index
    %54 = memref.load %arg2[%c6] : memref<98xf32, #tpu.memory_space<smem>>
    %55 = vector.extract_strided_slice %23 {offsets = [0, 6], sizes = [8, 16], strides = [1, 1]} : vector<8x128xf32> to vector<8x16xf32>
    %56 = vector.broadcast %54 : f32 to vector<8x16xf32>
    %57 = arith.mulf %56, %55 : vector<8x16xf32>
    %58 = arith.addf %53, %57 : vector<8x16xf32>
    %c0_27 = arith.constant 0 : index
    %c1_28 = arith.constant 1 : index
    %c0_29 = arith.constant 0 : index
    %59 = vector.load %arg5[%c0_27, %c1_28, %c0_29] : memref<2x22x128xf32, #tpu.memory_space<vmem>>, vector<1x8x128xf32>
    %60 = vector.shape_cast %59 : vector<1x8x128xf32> to vector<8x128xf32>
    %c7 = arith.constant 7 : index
    %61 = memref.load %arg2[%c7] : memref<98xf32, #tpu.memory_space<smem>>
    %62 = vector.extract_strided_slice %60 {offsets = [0, 0], sizes = [8, 16], strides = [1, 1]} : vector<8x128xf32> to vector<8x16xf32>
    %63 = vector.broadcast %61 : f32 to vector<8x16xf32>
    %64 = arith.mulf %63, %62 : vector<8x16xf32>
    %65 = arith.addf %58, %64 : vector<8x16xf32>
    %c8 = arith.constant 8 : index
    %66 = memref.load %arg2[%c8] : memref<98xf32, #tpu.memory_space<smem>>
    %67 = vector.extract_strided_slice %60 {offsets = [0, 1], sizes = [8, 16], strides = [1, 1]} : vector<8x128xf32> to vector<8x16xf32>
    %68 = vector.broadcast %66 : f32 to vector<8x16xf32>
    %69 = arith.mulf %68, %67 : vector<8x16xf32>
    %70 = arith.addf %65, %69 : vector<8x16xf32>
    %c9 = arith.constant 9 : index
    %71 = memref.load %arg2[%c9] : memref<98xf32, #tpu.memory_space<smem>>
    %72 = vector.extract_strided_slice %60 {offsets = [0, 2], sizes = [8, 16], strides = [1, 1]} : vector<8x128xf32> to vector<8x16xf32>
    %73 = vector.broadcast %71 : f32 to vector<8x16xf32>
    %74 = arith.mulf %73, %72 : vector<8x16xf32>
    %75 = arith.addf %70, %74 : vector<8x16xf32>
    %c10 = arith.constant 10 : index
    %76 = memref.load %arg2[%c10] : memref<98xf32, #tpu.memory_space<smem>>
    %77 = vector.extract_strided_slice %60 {offsets = [0, 3], sizes = [8, 16], strides = [1, 1]} : vector<8x128xf32> to vector<8x16xf32>
    %78 = vector.broadcast %76 : f32 to vector<8x16xf32>
    %79 = arith.mulf %78, %77 : vector<8x16xf32>
    %80 = arith.addf %75, %79 : vector<8x16xf32>
    %c11 = arith.constant 11 : index
    %81 = memref.load %arg2[%c11] : memref<98xf32, #tpu.memory_space<smem>>
    %82 = vector.extract_strided_slice %60 {offsets = [0, 4], sizes = [8, 16], strides = [1, 1]} : vector<8x128xf32> to vector<8x16xf32>
    %83 = vector.broadcast %81 : f32 to vector<8x16xf32>
    %84 = arith.mulf %83, %82 : vector<8x16xf32>
    %85 = arith.addf %80, %84 : vector<8x16xf32>
    %c12 = arith.constant 12 : index
    %86 = memref.load %arg2[%c12] : memref<98xf32, #tpu.memory_space<smem>>
    %87 = vector.extract_strided_slice %60 {offsets = [0, 5], sizes = [8, 16], strides = [1, 1]} : vector<8x128xf32> to vector<8x16xf32>
    %88 = vector.broadcast %86 : f32 to vector<8x16xf32>
    %89 = arith.mulf %88, %87 : vector<8x16xf32>
    %90 = arith.addf %85, %89 : vector<8x16xf32>
    %c13 = arith.constant 13 : index
    %91 = memref.load %arg2[%c13] : memref<98xf32, #tpu.memory_space<smem>>
    %92 = vector.extract_strided_slice %60 {offsets = [0, 6], sizes = [8, 16], strides = [1, 1]} : vector<8x128xf32> to vector<8x16xf32>
    %93 = vector.broadcast %91 : f32 to vector<8x16xf32>
    %94 = arith.mulf %93, %92 : vector<8x16xf32>
    %95 = arith.addf %90, %94 : vector<8x16xf32>
    %c0_30 = arith.constant 0 : index
    %c2_31 = arith.constant 2 : index
    %c0_32 = arith.constant 0 : index
    %96 = vector.load %arg5[%c0_30, %c2_31, %c0_32] : memref<2x22x128xf32, #tpu.memory_space<vmem>>, vector<1x8x128xf32>
    %97 = vector.shape_cast %96 : vector<1x8x128xf32> to vector<8x128xf32>
    %c14 = arith.constant 14 : index
    %98 = memref.load %arg2[%c14] : memref<98xf32, #tpu.memory_space<smem>>
    %99 = vector.extract_strided_slice %97 {offsets = [0, 0], sizes = [8, 16], strides = [1, 1]} : vector<8x128xf32> to vector<8x16xf32>
    %100 = vector.broadcast %98 : f32 to vector<8x16xf32>
    %101 = arith.mulf %100, %99 : vector<8x16xf32>
    %102 = arith.addf %95, %101 : vector<8x16xf32>
    %c15 = arith.constant 15 : index
    %103 = memref.load %arg2[%c15] : memref<98xf32, #tpu.memory_space<smem>>
    %104 = vector.extract_strided_slice %97 {offsets = [0, 1], sizes = [8, 16], strides = [1, 1]} : vector<8x128xf32> to vector<8x16xf32>
    %105 = vector.broadcast %103 : f32 to vector<8x16xf32>
    %106 = arith.mulf %105, %104 : vector<8x16xf32>
    %107 = arith.addf %102, %106 : vector<8x16xf32>
    %c16 = arith.constant 16 : index
    %108 = memref.load %arg2[%c16] : memref<98xf32, #tpu.memory_space<smem>>
    %109 = vector.extract_strided_slice %97 {offsets = [0, 2], sizes = [8, 16], strides = [1, 1]} : vector<8x128xf32> to vector<8x16xf32>
    %110 = vector.broadcast %108 : f32 to vector<8x16xf32>
    %111 = arith.mulf %110, %109 : vector<8x16xf32>
    %112 = arith.addf %107, %111 : vector<8x16xf32>
    %c17 = arith.constant 17 : index
    %113 = memref.load %arg2[%c17] : memref<98xf32, #tpu.memory_space<smem>>
    %114 = vector.extract_strided_slice %97 {offsets = [0, 3], sizes = [8, 16], strides = [1, 1]} : vector<8x128xf32> to vector<8x16xf32>
    %115 = vector.broadcast %113 : f32 to vector<8x16xf32>
    %116 = arith.mulf %115, %114 : vector<8x16xf32>
    %117 = arith.addf %112, %116 : vector<8x16xf32>
    %c18 = arith.constant 18 : index
    %118 = memref.load %arg2[%c18] : memref<98xf32, #tpu.memory_space<smem>>
    %119 = vector.extract_strided_slice %97 {offsets = [0, 4], sizes = [8, 16], strides = [1, 1]} : vector<8x128xf32> to vector<8x16xf32>
    %120 = vector.broadcast %118 : f32 to vector<8x16xf32>
    %121 = arith.mulf %120, %119 : vector<8x16xf32>
    %122 = arith.addf %117, %121 : vector<8x16xf32>
    %c19_33 = arith.constant 19 : index
    %123 = memref.load %arg2[%c19_33] : memref<98xf32, #tpu.memory_space<smem>>
    %124 = vector.extract_strided_slice %97 {offsets = [0, 5], sizes = [8, 16], strides = [1, 1]} : vector<8x128xf32> to vector<8x16xf32>
    %125 = vector.broadcast %123 : f32 to vector<8x16xf32>
    %126 = arith.mulf %125, %124 : vector<8x16xf32>
    %127 = arith.addf %122, %126 : vector<8x16xf32>
    %c20 = arith.constant 20 : index
    %128 = memref.load %arg2[%c20] : memref<98xf32, #tpu.memory_space<smem>>
    %129 = vector.extract_strided_slice %97 {offsets = [0, 6], sizes = [8, 16], strides = [1, 1]} : vector<8x128xf32> to vector<8x16xf32>
    %130 = vector.broadcast %128 : f32 to vector<8x16xf32>
    %131 = arith.mulf %130, %129 : vector<8x16xf32>
    %132 = arith.addf %127, %131 : vector<8x16xf32>
    %c0_34 = arith.constant 0 : index
    %c3_35 = arith.constant 3 : index
    %c0_36 = arith.constant 0 : index
    %133 = vector.load %arg5[%c0_34, %c3_35, %c0_36] : memref<2x22x128xf32, #tpu.memory_space<vmem>>, vector<1x8x128xf32>
    %134 = vector.shape_cast %133 : vector<1x8x128xf32> to vector<8x128xf32>
    %c21 = arith.constant 21 : index
    %135 = memref.load %arg2[%c21] : memref<98xf32, #tpu.memory_space<smem>>
    %136 = vector.extract_strided_slice %134 {offsets = [0, 0], sizes = [8, 16], strides = [1, 1]} : vector<8x128xf32> to vector<8x16xf32>
    %137 = vector.broadcast %135 : f32 to vector<8x16xf32>
    %138 = arith.mulf %137, %136 : vector<8x16xf32>
    %139 = arith.addf %132, %138 : vector<8x16xf32>
    %c22 = arith.constant 22 : index
    %140 = memref.load %arg2[%c22] : memref<98xf32, #tpu.memory_space<smem>>
    %141 = vector.extract_strided_slice %134 {offsets = [0, 1], sizes = [8, 16], strides = [1, 1]} : vector<8x128xf32> to vector<8x16xf32>
    %142 = vector.broadcast %140 : f32 to vector<8x16xf32>
    %143 = arith.mulf %142, %141 : vector<8x16xf32>
    %144 = arith.addf %139, %143 : vector<8x16xf32>
    %c23 = arith.constant 23 : index
    %145 = memref.load %arg2[%c23] : memref<98xf32, #tpu.memory_space<smem>>
    %146 = vector.extract_strided_slice %134 {offsets = [0, 2], sizes = [8, 16], strides = [1, 1]} : vector<8x128xf32> to vector<8x16xf32>
    %147 = vector.broadcast %145 : f32 to vector<8x16xf32>
    %148 = arith.mulf %147, %146 : vector<8x16xf32>
    %149 = arith.addf %144, %148 : vector<8x16xf32>
    %c24 = arith.constant 24 : index
    %150 = memref.load %arg2[%c24] : memref<98xf32, #tpu.memory_space<smem>>
    %151 = vector.extract_strided_slice %134 {offsets = [0, 3], sizes = [8, 16], strides = [1, 1]} : vector<8x128xf32> to vector<8x16xf32>
    %152 = vector.broadcast %150 : f32 to vector<8x16xf32>
    %153 = arith.mulf %152, %151 : vector<8x16xf32>
    %154 = arith.addf %149, %153 : vector<8x16xf32>
    %c25 = arith.constant 25 : index
    %155 = memref.load %arg2[%c25] : memref<98xf32, #tpu.memory_space<smem>>
    %156 = vector.extract_strided_slice %134 {offsets = [0, 4], sizes = [8, 16], strides = [1, 1]} : vector<8x128xf32> to vector<8x16xf32>
    %157 = vector.broadcast %155 : f32 to vector<8x16xf32>
    %158 = arith.mulf %157, %156 : vector<8x16xf32>
    %159 = arith.addf %154, %158 : vector<8x16xf32>
    %c26 = arith.constant 26 : index
    %160 = memref.load %arg2[%c26] : memref<98xf32, #tpu.memory_space<smem>>
    %161 = vector.extract_strided_slice %134 {offsets = [0, 5], sizes = [8, 16], strides = [1, 1]} : vector<8x128xf32> to vector<8x16xf32>
    %162 = vector.broadcast %160 : f32 to vector<8x16xf32>
    %163 = arith.mulf %162, %161 : vector<8x16xf32>
    %164 = arith.addf %159, %163 : vector<8x16xf32>
    %c27 = arith.constant 27 : index
    %165 = memref.load %arg2[%c27] : memref<98xf32, #tpu.memory_space<smem>>
    %166 = vector.extract_strided_slice %134 {offsets = [0, 6], sizes = [8, 16], strides = [1, 1]} : vector<8x128xf32> to vector<8x16xf32>
    %167 = vector.broadcast %165 : f32 to vector<8x16xf32>
    %168 = arith.mulf %167, %166 : vector<8x16xf32>
    %169 = arith.addf %164, %168 : vector<8x16xf32>
    %c0_37 = arith.constant 0 : index
    %c4_38 = arith.constant 4 : index
    %c0_39 = arith.constant 0 : index
    %170 = vector.load %arg5[%c0_37, %c4_38, %c0_39] : memref<2x22x128xf32, #tpu.memory_space<vmem>>, vector<1x8x128xf32>
    %171 = vector.shape_cast %170 : vector<1x8x128xf32> to vector<8x128xf32>
    %c28 = arith.constant 28 : index
    %172 = memref.load %arg2[%c28] : memref<98xf32, #tpu.memory_space<smem>>
    %173 = vector.extract_strided_slice %171 {offsets = [0, 0], sizes = [8, 16], strides = [1, 1]} : vector<8x128xf32> to vector<8x16xf32>
    %174 = vector.broadcast %172 : f32 to vector<8x16xf32>
    %175 = arith.mulf %174, %173 : vector<8x16xf32>
    %176 = arith.addf %169, %175 : vector<8x16xf32>
    %c29 = arith.constant 29 : index
    %177 = memref.load %arg2[%c29] : memref<98xf32, #tpu.memory_space<smem>>
    %178 = vector.extract_strided_slice %171 {offsets = [0, 1], sizes = [8, 16], strides = [1, 1]} : vector<8x128xf32> to vector<8x16xf32>
    %179 = vector.broadcast %177 : f32 to vector<8x16xf32>
    %180 = arith.mulf %179, %178 : vector<8x16xf32>
    %181 = arith.addf %176, %180 : vector<8x16xf32>
    %c30 = arith.constant 30 : index
    %182 = memref.load %arg2[%c30] : memref<98xf32, #tpu.memory_space<smem>>
    %183 = vector.extract_strided_slice %171 {offsets = [0, 2], sizes = [8, 16], strides = [1, 1]} : vector<8x128xf32> to vector<8x16xf32>
    %184 = vector.broadcast %182 : f32 to vector<8x16xf32>
    %185 = arith.mulf %184, %183 : vector<8x16xf32>
    %186 = arith.addf %181, %185 : vector<8x16xf32>
    %c31 = arith.constant 31 : index
    %187 = memref.load %arg2[%c31] : memref<98xf32, #tpu.memory_space<smem>>
    %188 = vector.extract_strided_slice %171 {offsets = [0, 3], sizes = [8, 16], strides = [1, 1]} : vector<8x128xf32> to vector<8x16xf32>
    %189 = vector.broadcast %187 : f32 to vector<8x16xf32>
    %190 = arith.mulf %189, %188 : vector<8x16xf32>
    %191 = arith.addf %186, %190 : vector<8x16xf32>
    %c32 = arith.constant 32 : index
    %192 = memref.load %arg2[%c32] : memref<98xf32, #tpu.memory_space<smem>>
    %193 = vector.extract_strided_slice %171 {offsets = [0, 4], sizes = [8, 16], strides = [1, 1]} : vector<8x128xf32> to vector<8x16xf32>
    %194 = vector.broadcast %192 : f32 to vector<8x16xf32>
    %195 = arith.mulf %194, %193 : vector<8x16xf32>
    %196 = arith.addf %191, %195 : vector<8x16xf32>
    %c33 = arith.constant 33 : index
    %197 = memref.load %arg2[%c33] : memref<98xf32, #tpu.memory_space<smem>>
    %198 = vector.extract_strided_slice %171 {offsets = [0, 5], sizes = [8, 16], strides = [1, 1]} : vector<8x128xf32> to vector<8x16xf32>
    %199 = vector.broadcast %197 : f32 to vector<8x16xf32>
    %200 = arith.mulf %199, %198 : vector<8x16xf32>
    %201 = arith.addf %196, %200 : vector<8x16xf32>
    %c34 = arith.constant 34 : index
    %202 = memref.load %arg2[%c34] : memref<98xf32, #tpu.memory_space<smem>>
    %203 = vector.extract_strided_slice %171 {offsets = [0, 6], sizes = [8, 16], strides = [1, 1]} : vector<8x128xf32> to vector<8x16xf32>
    %204 = vector.broadcast %202 : f32 to vector<8x16xf32>
    %205 = arith.mulf %204, %203 : vector<8x16xf32>
    %206 = arith.addf %201, %205 : vector<8x16xf32>
    %c0_40 = arith.constant 0 : index
    %c5_41 = arith.constant 5 : index
    %c0_42 = arith.constant 0 : index
    %207 = vector.load %arg5[%c0_40, %c5_41, %c0_42] : memref<2x22x128xf32, #tpu.memory_space<vmem>>, vector<1x8x128xf32>
    %208 = vector.shape_cast %207 : vector<1x8x128xf32> to vector<8x128xf32>
    %c35 = arith.constant 35 : index
    %209 = memref.load %arg2[%c35] : memref<98xf32, #tpu.memory_space<smem>>
    %210 = vector.extract_strided_slice %208 {offsets = [0, 0], sizes = [8, 16], strides = [1, 1]} : vector<8x128xf32> to vector<8x16xf32>
    %211 = vector.broadcast %209 : f32 to vector<8x16xf32>
    %212 = arith.mulf %211, %210 : vector<8x16xf32>
    %213 = arith.addf %206, %212 : vector<8x16xf32>
    %c36 = arith.constant 36 : index
    %214 = memref.load %arg2[%c36] : memref<98xf32, #tpu.memory_space<smem>>
    %215 = vector.extract_strided_slice %208 {offsets = [0, 1], sizes = [8, 16], strides = [1, 1]} : vector<8x128xf32> to vector<8x16xf32>
    %216 = vector.broadcast %214 : f32 to vector<8x16xf32>
    %217 = arith.mulf %216, %215 : vector<8x16xf32>
    %218 = arith.addf %213, %217 : vector<8x16xf32>
    %c37 = arith.constant 37 : index
    %219 = memref.load %arg2[%c37] : memref<98xf32, #tpu.memory_space<smem>>
    %220 = vector.extract_strided_slice %208 {offsets = [0, 2], sizes = [8, 16], strides = [1, 1]} : vector<8x128xf32> to vector<8x16xf32>
    %221 = vector.broadcast %219 : f32 to vector<8x16xf32>
    %222 = arith.mulf %221, %220 : vector<8x16xf32>
    %223 = arith.addf %218, %222 : vector<8x16xf32>
    %c38 = arith.constant 38 : index
    %224 = memref.load %arg2[%c38] : memref<98xf32, #tpu.memory_space<smem>>
    %225 = vector.extract_strided_slice %208 {offsets = [0, 3], sizes = [8, 16], strides = [1, 1]} : vector<8x128xf32> to vector<8x16xf32>
    %226 = vector.broadcast %224 : f32 to vector<8x16xf32>
    %227 = arith.mulf %226, %225 : vector<8x16xf32>
    %228 = arith.addf %223, %227 : vector<8x16xf32>
    %c39 = arith.constant 39 : index
    %229 = memref.load %arg2[%c39] : memref<98xf32, #tpu.memory_space<smem>>
    %230 = vector.extract_strided_slice %208 {offsets = [0, 4], sizes = [8, 16], strides = [1, 1]} : vector<8x128xf32> to vector<8x16xf32>
    %231 = vector.broadcast %229 : f32 to vector<8x16xf32>
    %232 = arith.mulf %231, %230 : vector<8x16xf32>
    %233 = arith.addf %228, %232 : vector<8x16xf32>
    %c40 = arith.constant 40 : index
    %234 = memref.load %arg2[%c40] : memref<98xf32, #tpu.memory_space<smem>>
    %235 = vector.extract_strided_slice %208 {offsets = [0, 5], sizes = [8, 16], strides = [1, 1]} : vector<8x128xf32> to vector<8x16xf32>
    %236 = vector.broadcast %234 : f32 to vector<8x16xf32>
    %237 = arith.mulf %236, %235 : vector<8x16xf32>
    %238 = arith.addf %233, %237 : vector<8x16xf32>
    %c41 = arith.constant 41 : index
    %239 = memref.load %arg2[%c41] : memref<98xf32, #tpu.memory_space<smem>>
    %240 = vector.extract_strided_slice %208 {offsets = [0, 6], sizes = [8, 16], strides = [1, 1]} : vector<8x128xf32> to vector<8x16xf32>
    %241 = vector.broadcast %239 : f32 to vector<8x16xf32>
    %242 = arith.mulf %241, %240 : vector<8x16xf32>
    %243 = arith.addf %238, %242 : vector<8x16xf32>
    %c0_43 = arith.constant 0 : index
    %c6_44 = arith.constant 6 : index
    %c0_45 = arith.constant 0 : index
    %244 = vector.load %arg5[%c0_43, %c6_44, %c0_45] : memref<2x22x128xf32, #tpu.memory_space<vmem>>, vector<1x8x128xf32>
    %245 = vector.shape_cast %244 : vector<1x8x128xf32> to vector<8x128xf32>
    %c42 = arith.constant 42 : index
    %246 = memref.load %arg2[%c42] : memref<98xf32, #tpu.memory_space<smem>>
    %247 = vector.extract_strided_slice %245 {offsets = [0, 0], sizes = [8, 16], strides = [1, 1]} : vector<8x128xf32> to vector<8x16xf32>
    %248 = vector.broadcast %246 : f32 to vector<8x16xf32>
    %249 = arith.mulf %248, %247 : vector<8x16xf32>
    %250 = arith.addf %243, %249 : vector<8x16xf32>
    %c43 = arith.constant 43 : index
    %251 = memref.load %arg2[%c43] : memref<98xf32, #tpu.memory_space<smem>>
    %252 = vector.extract_strided_slice %245 {offsets = [0, 1], sizes = [8, 16], strides = [1, 1]} : vector<8x128xf32> to vector<8x16xf32>
    %253 = vector.broadcast %251 : f32 to vector<8x16xf32>
    %254 = arith.mulf %253, %252 : vector<8x16xf32>
    %255 = arith.addf %250, %254 : vector<8x16xf32>
    %c44 = arith.constant 44 : index
    %256 = memref.load %arg2[%c44] : memref<98xf32, #tpu.memory_space<smem>>
    %257 = vector.extract_strided_slice %245 {offsets = [0, 2], sizes = [8, 16], strides = [1, 1]} : vector<8x128xf32> to vector<8x16xf32>
    %258 = vector.broadcast %256 : f32 to vector<8x16xf32>
    %259 = arith.mulf %258, %257 : vector<8x16xf32>
    %260 = arith.addf %255, %259 : vector<8x16xf32>
    %c45 = arith.constant 45 : index
    %261 = memref.load %arg2[%c45] : memref<98xf32, #tpu.memory_space<smem>>
    %262 = vector.extract_strided_slice %245 {offsets = [0, 3], sizes = [8, 16], strides = [1, 1]} : vector<8x128xf32> to vector<8x16xf32>
    %263 = vector.broadcast %261 : f32 to vector<8x16xf32>
    %264 = arith.mulf %263, %262 : vector<8x16xf32>
    %265 = arith.addf %260, %264 : vector<8x16xf32>
    %c46 = arith.constant 46 : index
    %266 = memref.load %arg2[%c46] : memref<98xf32, #tpu.memory_space<smem>>
    %267 = vector.extract_strided_slice %245 {offsets = [0, 4], sizes = [8, 16], strides = [1, 1]} : vector<8x128xf32> to vector<8x16xf32>
    %268 = vector.broadcast %266 : f32 to vector<8x16xf32>
    %269 = arith.mulf %268, %267 : vector<8x16xf32>
    %270 = arith.addf %265, %269 : vector<8x16xf32>
    %c47 = arith.constant 47 : index
    %271 = memref.load %arg2[%c47] : memref<98xf32, #tpu.memory_space<smem>>
    %272 = vector.extract_strided_slice %245 {offsets = [0, 5], sizes = [8, 16], strides = [1, 1]} : vector<8x128xf32> to vector<8x16xf32>
    %273 = vector.broadcast %271 : f32 to vector<8x16xf32>
    %274 = arith.mulf %273, %272 : vector<8x16xf32>
    %275 = arith.addf %270, %274 : vector<8x16xf32>
    %c48 = arith.constant 48 : index
    %276 = memref.load %arg2[%c48] : memref<98xf32, #tpu.memory_space<smem>>
    %277 = vector.extract_strided_slice %245 {offsets = [0, 6], sizes = [8, 16], strides = [1, 1]} : vector<8x128xf32> to vector<8x16xf32>
    %278 = vector.broadcast %276 : f32 to vector<8x16xf32>
    %279 = arith.mulf %278, %277 : vector<8x16xf32>
    %280 = arith.addf %275, %279 : vector<8x16xf32>
    %c1_46 = arith.constant 1 : index
    %c0_47 = arith.constant 0 : index
    %c0_48 = arith.constant 0 : index
    %281 = vector.load %arg5[%c1_46, %c0_47, %c0_48] : memref<2x22x128xf32, #tpu.memory_space<vmem>>, vector<1x8x128xf32>
    %282 = vector.shape_cast %281 : vector<1x8x128xf32> to vector<8x128xf32>
    %c49 = arith.constant 49 : index
    %283 = memref.load %arg2[%c49] : memref<98xf32, #tpu.memory_space<smem>>
    %284 = vector.extract_strided_slice %282 {offsets = [0, 0], sizes = [8, 16], strides = [1, 1]} : vector<8x128xf32> to vector<8x16xf32>
    %285 = vector.broadcast %283 : f32 to vector<8x16xf32>
    %286 = arith.mulf %285, %284 : vector<8x16xf32>
    %287 = arith.addf %280, %286 : vector<8x16xf32>
    %c50 = arith.constant 50 : index
    %288 = memref.load %arg2[%c50] : memref<98xf32, #tpu.memory_space<smem>>
    %289 = vector.extract_strided_slice %282 {offsets = [0, 1], sizes = [8, 16], strides = [1, 1]} : vector<8x128xf32> to vector<8x16xf32>
    %290 = vector.broadcast %288 : f32 to vector<8x16xf32>
    %291 = arith.mulf %290, %289 : vector<8x16xf32>
    %292 = arith.addf %287, %291 : vector<8x16xf32>
    %c51 = arith.constant 51 : index
    %293 = memref.load %arg2[%c51] : memref<98xf32, #tpu.memory_space<smem>>
    %294 = vector.extract_strided_slice %282 {offsets = [0, 2], sizes = [8, 16], strides = [1, 1]} : vector<8x128xf32> to vector<8x16xf32>
    %295 = vector.broadcast %293 : f32 to vector<8x16xf32>
    %296 = arith.mulf %295, %294 : vector<8x16xf32>
    %297 = arith.addf %292, %296 : vector<8x16xf32>
    %c52 = arith.constant 52 : index
    %298 = memref.load %arg2[%c52] : memref<98xf32, #tpu.memory_space<smem>>
    %299 = vector.extract_strided_slice %282 {offsets = [0, 3], sizes = [8, 16], strides = [1, 1]} : vector<8x128xf32> to vector<8x16xf32>
    %300 = vector.broadcast %298 : f32 to vector<8x16xf32>
    %301 = arith.mulf %300, %299 : vector<8x16xf32>
    %302 = arith.addf %297, %301 : vector<8x16xf32>
    %c53 = arith.constant 53 : index
    %303 = memref.load %arg2[%c53] : memref<98xf32, #tpu.memory_space<smem>>
    %304 = vector.extract_strided_slice %282 {offsets = [0, 4], sizes = [8, 16], strides = [1, 1]} : vector<8x128xf32> to vector<8x16xf32>
    %305 = vector.broadcast %303 : f32 to vector<8x16xf32>
    %306 = arith.mulf %305, %304 : vector<8x16xf32>
    %307 = arith.addf %302, %306 : vector<8x16xf32>
    %c54 = arith.constant 54 : index
    %308 = memref.load %arg2[%c54] : memref<98xf32, #tpu.memory_space<smem>>
    %309 = vector.extract_strided_slice %282 {offsets = [0, 5], sizes = [8, 16], strides = [1, 1]} : vector<8x128xf32> to vector<8x16xf32>
    %310 = vector.broadcast %308 : f32 to vector<8x16xf32>
    %311 = arith.mulf %310, %309 : vector<8x16xf32>
    %312 = arith.addf %307, %311 : vector<8x16xf32>
    %c55 = arith.constant 55 : index
    %313 = memref.load %arg2[%c55] : memref<98xf32, #tpu.memory_space<smem>>
    %314 = vector.extract_strided_slice %282 {offsets = [0, 6], sizes = [8, 16], strides = [1, 1]} : vector<8x128xf32> to vector<8x16xf32>
    %315 = vector.broadcast %313 : f32 to vector<8x16xf32>
    %316 = arith.mulf %315, %314 : vector<8x16xf32>
    %317 = arith.addf %312, %316 : vector<8x16xf32>
    %c1_49 = arith.constant 1 : index
    %c1_50 = arith.constant 1 : index
    %c0_51 = arith.constant 0 : index
    %318 = vector.load %arg5[%c1_49, %c1_50, %c0_51] : memref<2x22x128xf32, #tpu.memory_space<vmem>>, vector<1x8x128xf32>
    %319 = vector.shape_cast %318 : vector<1x8x128xf32> to vector<8x128xf32>
    %c56 = arith.constant 56 : index
    %320 = memref.load %arg2[%c56] : memref<98xf32, #tpu.memory_space<smem>>
    %321 = vector.extract_strided_slice %319 {offsets = [0, 0], sizes = [8, 16], strides = [1, 1]} : vector<8x128xf32> to vector<8x16xf32>
    %322 = vector.broadcast %320 : f32 to vector<8x16xf32>
    %323 = arith.mulf %322, %321 : vector<8x16xf32>
    %324 = arith.addf %317, %323 : vector<8x16xf32>
    %c57 = arith.constant 57 : index
    %325 = memref.load %arg2[%c57] : memref<98xf32, #tpu.memory_space<smem>>
    %326 = vector.extract_strided_slice %319 {offsets = [0, 1], sizes = [8, 16], strides = [1, 1]} : vector<8x128xf32> to vector<8x16xf32>
    %327 = vector.broadcast %325 : f32 to vector<8x16xf32>
    %328 = arith.mulf %327, %326 : vector<8x16xf32>
    %329 = arith.addf %324, %328 : vector<8x16xf32>
    %c58 = arith.constant 58 : index
    %330 = memref.load %arg2[%c58] : memref<98xf32, #tpu.memory_space<smem>>
    %331 = vector.extract_strided_slice %319 {offsets = [0, 2], sizes = [8, 16], strides = [1, 1]} : vector<8x128xf32> to vector<8x16xf32>
    %332 = vector.broadcast %330 : f32 to vector<8x16xf32>
    %333 = arith.mulf %332, %331 : vector<8x16xf32>
    %334 = arith.addf %329, %333 : vector<8x16xf32>
    %c59 = arith.constant 59 : index
    %335 = memref.load %arg2[%c59] : memref<98xf32, #tpu.memory_space<smem>>
    %336 = vector.extract_strided_slice %319 {offsets = [0, 3], sizes = [8, 16], strides = [1, 1]} : vector<8x128xf32> to vector<8x16xf32>
    %337 = vector.broadcast %335 : f32 to vector<8x16xf32>
    %338 = arith.mulf %337, %336 : vector<8x16xf32>
    %339 = arith.addf %334, %338 : vector<8x16xf32>
    %c60 = arith.constant 60 : index
    %340 = memref.load %arg2[%c60] : memref<98xf32, #tpu.memory_space<smem>>
    %341 = vector.extract_strided_slice %319 {offsets = [0, 4], sizes = [8, 16], strides = [1, 1]} : vector<8x128xf32> to vector<8x16xf32>
    %342 = vector.broadcast %340 : f32 to vector<8x16xf32>
    %343 = arith.mulf %342, %341 : vector<8x16xf32>
    %344 = arith.addf %339, %343 : vector<8x16xf32>
    %c61 = arith.constant 61 : index
    %345 = memref.load %arg2[%c61] : memref<98xf32, #tpu.memory_space<smem>>
    %346 = vector.extract_strided_slice %319 {offsets = [0, 5], sizes = [8, 16], strides = [1, 1]} : vector<8x128xf32> to vector<8x16xf32>
    %347 = vector.broadcast %345 : f32 to vector<8x16xf32>
    %348 = arith.mulf %347, %346 : vector<8x16xf32>
    %349 = arith.addf %344, %348 : vector<8x16xf32>
    %c62 = arith.constant 62 : index
    %350 = memref.load %arg2[%c62] : memref<98xf32, #tpu.memory_space<smem>>
    %351 = vector.extract_strided_slice %319 {offsets = [0, 6], sizes = [8, 16], strides = [1, 1]} : vector<8x128xf32> to vector<8x16xf32>
    %352 = vector.broadcast %350 : f32 to vector<8x16xf32>
    %353 = arith.mulf %352, %351 : vector<8x16xf32>
    %354 = arith.addf %349, %353 : vector<8x16xf32>
    %c1_52 = arith.constant 1 : index
    %c2_53 = arith.constant 2 : index
    %c0_54 = arith.constant 0 : index
    %355 = vector.load %arg5[%c1_52, %c2_53, %c0_54] : memref<2x22x128xf32, #tpu.memory_space<vmem>>, vector<1x8x128xf32>
    %356 = vector.shape_cast %355 : vector<1x8x128xf32> to vector<8x128xf32>
    %c63 = arith.constant 63 : index
    %357 = memref.load %arg2[%c63] : memref<98xf32, #tpu.memory_space<smem>>
    %358 = vector.extract_strided_slice %356 {offsets = [0, 0], sizes = [8, 16], strides = [1, 1]} : vector<8x128xf32> to vector<8x16xf32>
    %359 = vector.broadcast %357 : f32 to vector<8x16xf32>
    %360 = arith.mulf %359, %358 : vector<8x16xf32>
    %361 = arith.addf %354, %360 : vector<8x16xf32>
    %c64 = arith.constant 64 : index
    %362 = memref.load %arg2[%c64] : memref<98xf32, #tpu.memory_space<smem>>
    %363 = vector.extract_strided_slice %356 {offsets = [0, 1], sizes = [8, 16], strides = [1, 1]} : vector<8x128xf32> to vector<8x16xf32>
    %364 = vector.broadcast %362 : f32 to vector<8x16xf32>
    %365 = arith.mulf %364, %363 : vector<8x16xf32>
    %366 = arith.addf %361, %365 : vector<8x16xf32>
    %c65 = arith.constant 65 : index
    %367 = memref.load %arg2[%c65] : memref<98xf32, #tpu.memory_space<smem>>
    %368 = vector.extract_strided_slice %356 {offsets = [0, 2], sizes = [8, 16], strides = [1, 1]} : vector<8x128xf32> to vector<8x16xf32>
    %369 = vector.broadcast %367 : f32 to vector<8x16xf32>
    %370 = arith.mulf %369, %368 : vector<8x16xf32>
    %371 = arith.addf %366, %370 : vector<8x16xf32>
    %c66 = arith.constant 66 : index
    %372 = memref.load %arg2[%c66] : memref<98xf32, #tpu.memory_space<smem>>
    %373 = vector.extract_strided_slice %356 {offsets = [0, 3], sizes = [8, 16], strides = [1, 1]} : vector<8x128xf32> to vector<8x16xf32>
    %374 = vector.broadcast %372 : f32 to vector<8x16xf32>
    %375 = arith.mulf %374, %373 : vector<8x16xf32>
    %376 = arith.addf %371, %375 : vector<8x16xf32>
    %c67 = arith.constant 67 : index
    %377 = memref.load %arg2[%c67] : memref<98xf32, #tpu.memory_space<smem>>
    %378 = vector.extract_strided_slice %356 {offsets = [0, 4], sizes = [8, 16], strides = [1, 1]} : vector<8x128xf32> to vector<8x16xf32>
    %379 = vector.broadcast %377 : f32 to vector<8x16xf32>
    %380 = arith.mulf %379, %378 : vector<8x16xf32>
    %381 = arith.addf %376, %380 : vector<8x16xf32>
    %c68 = arith.constant 68 : index
    %382 = memref.load %arg2[%c68] : memref<98xf32, #tpu.memory_space<smem>>
    %383 = vector.extract_strided_slice %356 {offsets = [0, 5], sizes = [8, 16], strides = [1, 1]} : vector<8x128xf32> to vector<8x16xf32>
    %384 = vector.broadcast %382 : f32 to vector<8x16xf32>
    %385 = arith.mulf %384, %383 : vector<8x16xf32>
    %386 = arith.addf %381, %385 : vector<8x16xf32>
    %c69 = arith.constant 69 : index
    %387 = memref.load %arg2[%c69] : memref<98xf32, #tpu.memory_space<smem>>
    %388 = vector.extract_strided_slice %356 {offsets = [0, 6], sizes = [8, 16], strides = [1, 1]} : vector<8x128xf32> to vector<8x16xf32>
    %389 = vector.broadcast %387 : f32 to vector<8x16xf32>
    %390 = arith.mulf %389, %388 : vector<8x16xf32>
    %391 = arith.addf %386, %390 : vector<8x16xf32>
    %c1_55 = arith.constant 1 : index
    %c3_56 = arith.constant 3 : index
    %c0_57 = arith.constant 0 : index
    %392 = vector.load %arg5[%c1_55, %c3_56, %c0_57] : memref<2x22x128xf32, #tpu.memory_space<vmem>>, vector<1x8x128xf32>
    %393 = vector.shape_cast %392 : vector<1x8x128xf32> to vector<8x128xf32>
    %c70 = arith.constant 70 : index
    %394 = memref.load %arg2[%c70] : memref<98xf32, #tpu.memory_space<smem>>
    %395 = vector.extract_strided_slice %393 {offsets = [0, 0], sizes = [8, 16], strides = [1, 1]} : vector<8x128xf32> to vector<8x16xf32>
    %396 = vector.broadcast %394 : f32 to vector<8x16xf32>
    %397 = arith.mulf %396, %395 : vector<8x16xf32>
    %398 = arith.addf %391, %397 : vector<8x16xf32>
    %c71 = arith.constant 71 : index
    %399 = memref.load %arg2[%c71] : memref<98xf32, #tpu.memory_space<smem>>
    %400 = vector.extract_strided_slice %393 {offsets = [0, 1], sizes = [8, 16], strides = [1, 1]} : vector<8x128xf32> to vector<8x16xf32>
    %401 = vector.broadcast %399 : f32 to vector<8x16xf32>
    %402 = arith.mulf %401, %400 : vector<8x16xf32>
    %403 = arith.addf %398, %402 : vector<8x16xf32>
    %c72 = arith.constant 72 : index
    %404 = memref.load %arg2[%c72] : memref<98xf32, #tpu.memory_space<smem>>
    %405 = vector.extract_strided_slice %393 {offsets = [0, 2], sizes = [8, 16], strides = [1, 1]} : vector<8x128xf32> to vector<8x16xf32>
    %406 = vector.broadcast %404 : f32 to vector<8x16xf32>
    %407 = arith.mulf %406, %405 : vector<8x16xf32>
    %408 = arith.addf %403, %407 : vector<8x16xf32>
    %c73 = arith.constant 73 : index
    %409 = memref.load %arg2[%c73] : memref<98xf32, #tpu.memory_space<smem>>
    %410 = vector.extract_strided_slice %393 {offsets = [0, 3], sizes = [8, 16], strides = [1, 1]} : vector<8x128xf32> to vector<8x16xf32>
    %411 = vector.broadcast %409 : f32 to vector<8x16xf32>
    %412 = arith.mulf %411, %410 : vector<8x16xf32>
    %413 = arith.addf %408, %412 : vector<8x16xf32>
    %c74 = arith.constant 74 : index
    %414 = memref.load %arg2[%c74] : memref<98xf32, #tpu.memory_space<smem>>
    %415 = vector.extract_strided_slice %393 {offsets = [0, 4], sizes = [8, 16], strides = [1, 1]} : vector<8x128xf32> to vector<8x16xf32>
    %416 = vector.broadcast %414 : f32 to vector<8x16xf32>
    %417 = arith.mulf %416, %415 : vector<8x16xf32>
    %418 = arith.addf %413, %417 : vector<8x16xf32>
    %c75 = arith.constant 75 : index
    %419 = memref.load %arg2[%c75] : memref<98xf32, #tpu.memory_space<smem>>
    %420 = vector.extract_strided_slice %393 {offsets = [0, 5], sizes = [8, 16], strides = [1, 1]} : vector<8x128xf32> to vector<8x16xf32>
    %421 = vector.broadcast %419 : f32 to vector<8x16xf32>
    %422 = arith.mulf %421, %420 : vector<8x16xf32>
    %423 = arith.addf %418, %422 : vector<8x16xf32>
    %c76 = arith.constant 76 : index
    %424 = memref.load %arg2[%c76] : memref<98xf32, #tpu.memory_space<smem>>
    %425 = vector.extract_strided_slice %393 {offsets = [0, 6], sizes = [8, 16], strides = [1, 1]} : vector<8x128xf32> to vector<8x16xf32>
    %426 = vector.broadcast %424 : f32 to vector<8x16xf32>
    %427 = arith.mulf %426, %425 : vector<8x16xf32>
    %428 = arith.addf %423, %427 : vector<8x16xf32>
    %c1_58 = arith.constant 1 : index
    %c4_59 = arith.constant 4 : index
    %c0_60 = arith.constant 0 : index
    %429 = vector.load %arg5[%c1_58, %c4_59, %c0_60] : memref<2x22x128xf32, #tpu.memory_space<vmem>>, vector<1x8x128xf32>
    %430 = vector.shape_cast %429 : vector<1x8x128xf32> to vector<8x128xf32>
    %c77 = arith.constant 77 : index
    %431 = memref.load %arg2[%c77] : memref<98xf32, #tpu.memory_space<smem>>
    %432 = vector.extract_strided_slice %430 {offsets = [0, 0], sizes = [8, 16], strides = [1, 1]} : vector<8x128xf32> to vector<8x16xf32>
    %433 = vector.broadcast %431 : f32 to vector<8x16xf32>
    %434 = arith.mulf %433, %432 : vector<8x16xf32>
    %435 = arith.addf %428, %434 : vector<8x16xf32>
    %c78 = arith.constant 78 : index
    %436 = memref.load %arg2[%c78] : memref<98xf32, #tpu.memory_space<smem>>
    %437 = vector.extract_strided_slice %430 {offsets = [0, 1], sizes = [8, 16], strides = [1, 1]} : vector<8x128xf32> to vector<8x16xf32>
    %438 = vector.broadcast %436 : f32 to vector<8x16xf32>
    %439 = arith.mulf %438, %437 : vector<8x16xf32>
    %440 = arith.addf %435, %439 : vector<8x16xf32>
    %c79 = arith.constant 79 : index
    %441 = memref.load %arg2[%c79] : memref<98xf32, #tpu.memory_space<smem>>
    %442 = vector.extract_strided_slice %430 {offsets = [0, 2], sizes = [8, 16], strides = [1, 1]} : vector<8x128xf32> to vector<8x16xf32>
    %443 = vector.broadcast %441 : f32 to vector<8x16xf32>
    %444 = arith.mulf %443, %442 : vector<8x16xf32>
    %445 = arith.addf %440, %444 : vector<8x16xf32>
    %c80 = arith.constant 80 : index
    %446 = memref.load %arg2[%c80] : memref<98xf32, #tpu.memory_space<smem>>
    %447 = vector.extract_strided_slice %430 {offsets = [0, 3], sizes = [8, 16], strides = [1, 1]} : vector<8x128xf32> to vector<8x16xf32>
    %448 = vector.broadcast %446 : f32 to vector<8x16xf32>
    %449 = arith.mulf %448, %447 : vector<8x16xf32>
    %450 = arith.addf %445, %449 : vector<8x16xf32>
    %c81 = arith.constant 81 : index
    %451 = memref.load %arg2[%c81] : memref<98xf32, #tpu.memory_space<smem>>
    %452 = vector.extract_strided_slice %430 {offsets = [0, 4], sizes = [8, 16], strides = [1, 1]} : vector<8x128xf32> to vector<8x16xf32>
    %453 = vector.broadcast %451 : f32 to vector<8x16xf32>
    %454 = arith.mulf %453, %452 : vector<8x16xf32>
    %455 = arith.addf %450, %454 : vector<8x16xf32>
    %c82 = arith.constant 82 : index
    %456 = memref.load %arg2[%c82] : memref<98xf32, #tpu.memory_space<smem>>
    %457 = vector.extract_strided_slice %430 {offsets = [0, 5], sizes = [8, 16], strides = [1, 1]} : vector<8x128xf32> to vector<8x16xf32>
    %458 = vector.broadcast %456 : f32 to vector<8x16xf32>
    %459 = arith.mulf %458, %457 : vector<8x16xf32>
    %460 = arith.addf %455, %459 : vector<8x16xf32>
    %c83 = arith.constant 83 : index
    %461 = memref.load %arg2[%c83] : memref<98xf32, #tpu.memory_space<smem>>
    %462 = vector.extract_strided_slice %430 {offsets = [0, 6], sizes = [8, 16], strides = [1, 1]} : vector<8x128xf32> to vector<8x16xf32>
    %463 = vector.broadcast %461 : f32 to vector<8x16xf32>
    %464 = arith.mulf %463, %462 : vector<8x16xf32>
    %465 = arith.addf %460, %464 : vector<8x16xf32>
    %c1_61 = arith.constant 1 : index
    %c5_62 = arith.constant 5 : index
    %c0_63 = arith.constant 0 : index
    %466 = vector.load %arg5[%c1_61, %c5_62, %c0_63] : memref<2x22x128xf32, #tpu.memory_space<vmem>>, vector<1x8x128xf32>
    %467 = vector.shape_cast %466 : vector<1x8x128xf32> to vector<8x128xf32>
    %c84 = arith.constant 84 : index
    %468 = memref.load %arg2[%c84] : memref<98xf32, #tpu.memory_space<smem>>
    %469 = vector.extract_strided_slice %467 {offsets = [0, 0], sizes = [8, 16], strides = [1, 1]} : vector<8x128xf32> to vector<8x16xf32>
    %470 = vector.broadcast %468 : f32 to vector<8x16xf32>
    %471 = arith.mulf %470, %469 : vector<8x16xf32>
    %472 = arith.addf %465, %471 : vector<8x16xf32>
    %c85 = arith.constant 85 : index
    %473 = memref.load %arg2[%c85] : memref<98xf32, #tpu.memory_space<smem>>
    %474 = vector.extract_strided_slice %467 {offsets = [0, 1], sizes = [8, 16], strides = [1, 1]} : vector<8x128xf32> to vector<8x16xf32>
    %475 = vector.broadcast %473 : f32 to vector<8x16xf32>
    %476 = arith.mulf %475, %474 : vector<8x16xf32>
    %477 = arith.addf %472, %476 : vector<8x16xf32>
    %c86 = arith.constant 86 : index
    %478 = memref.load %arg2[%c86] : memref<98xf32, #tpu.memory_space<smem>>
    %479 = vector.extract_strided_slice %467 {offsets = [0, 2], sizes = [8, 16], strides = [1, 1]} : vector<8x128xf32> to vector<8x16xf32>
    %480 = vector.broadcast %478 : f32 to vector<8x16xf32>
    %481 = arith.mulf %480, %479 : vector<8x16xf32>
    %482 = arith.addf %477, %481 : vector<8x16xf32>
    %c87 = arith.constant 87 : index
    %483 = memref.load %arg2[%c87] : memref<98xf32, #tpu.memory_space<smem>>
    %484 = vector.extract_strided_slice %467 {offsets = [0, 3], sizes = [8, 16], strides = [1, 1]} : vector<8x128xf32> to vector<8x16xf32>
    %485 = vector.broadcast %483 : f32 to vector<8x16xf32>
    %486 = arith.mulf %485, %484 : vector<8x16xf32>
    %487 = arith.addf %482, %486 : vector<8x16xf32>
    %c88 = arith.constant 88 : index
    %488 = memref.load %arg2[%c88] : memref<98xf32, #tpu.memory_space<smem>>
    %489 = vector.extract_strided_slice %467 {offsets = [0, 4], sizes = [8, 16], strides = [1, 1]} : vector<8x128xf32> to vector<8x16xf32>
    %490 = vector.broadcast %488 : f32 to vector<8x16xf32>
    %491 = arith.mulf %490, %489 : vector<8x16xf32>
    %492 = arith.addf %487, %491 : vector<8x16xf32>
    %c89 = arith.constant 89 : index
    %493 = memref.load %arg2[%c89] : memref<98xf32, #tpu.memory_space<smem>>
    %494 = vector.extract_strided_slice %467 {offsets = [0, 5], sizes = [8, 16], strides = [1, 1]} : vector<8x128xf32> to vector<8x16xf32>
    %495 = vector.broadcast %493 : f32 to vector<8x16xf32>
    %496 = arith.mulf %495, %494 : vector<8x16xf32>
    %497 = arith.addf %492, %496 : vector<8x16xf32>
    %c90 = arith.constant 90 : index
    %498 = memref.load %arg2[%c90] : memref<98xf32, #tpu.memory_space<smem>>
    %499 = vector.extract_strided_slice %467 {offsets = [0, 6], sizes = [8, 16], strides = [1, 1]} : vector<8x128xf32> to vector<8x16xf32>
    %500 = vector.broadcast %498 : f32 to vector<8x16xf32>
    %501 = arith.mulf %500, %499 : vector<8x16xf32>
    %502 = arith.addf %497, %501 : vector<8x16xf32>
    %c1_64 = arith.constant 1 : index
    %c6_65 = arith.constant 6 : index
    %c0_66 = arith.constant 0 : index
    %503 = vector.load %arg5[%c1_64, %c6_65, %c0_66] : memref<2x22x128xf32, #tpu.memory_space<vmem>>, vector<1x8x128xf32>
    %504 = vector.shape_cast %503 : vector<1x8x128xf32> to vector<8x128xf32>
    %c91 = arith.constant 91 : index
    %505 = memref.load %arg2[%c91] : memref<98xf32, #tpu.memory_space<smem>>
    %506 = vector.extract_strided_slice %504 {offsets = [0, 0], sizes = [8, 16], strides = [1, 1]} : vector<8x128xf32> to vector<8x16xf32>
    %507 = vector.broadcast %505 : f32 to vector<8x16xf32>
    %508 = arith.mulf %507, %506 : vector<8x16xf32>
    %509 = arith.addf %502, %508 : vector<8x16xf32>
    %c92 = arith.constant 92 : index
    %510 = memref.load %arg2[%c92] : memref<98xf32, #tpu.memory_space<smem>>
    %511 = vector.extract_strided_slice %504 {offsets = [0, 1], sizes = [8, 16], strides = [1, 1]} : vector<8x128xf32> to vector<8x16xf32>
    %512 = vector.broadcast %510 : f32 to vector<8x16xf32>
    %513 = arith.mulf %512, %511 : vector<8x16xf32>
    %514 = arith.addf %509, %513 : vector<8x16xf32>
    %c93 = arith.constant 93 : index
    %515 = memref.load %arg2[%c93] : memref<98xf32, #tpu.memory_space<smem>>
    %516 = vector.extract_strided_slice %504 {offsets = [0, 2], sizes = [8, 16], strides = [1, 1]} : vector<8x128xf32> to vector<8x16xf32>
    %517 = vector.broadcast %515 : f32 to vector<8x16xf32>
    %518 = arith.mulf %517, %516 : vector<8x16xf32>
    %519 = arith.addf %514, %518 : vector<8x16xf32>
    %c94 = arith.constant 94 : index
    %520 = memref.load %arg2[%c94] : memref<98xf32, #tpu.memory_space<smem>>
    %521 = vector.extract_strided_slice %504 {offsets = [0, 3], sizes = [8, 16], strides = [1, 1]} : vector<8x128xf32> to vector<8x16xf32>
    %522 = vector.broadcast %520 : f32 to vector<8x16xf32>
    %523 = arith.mulf %522, %521 : vector<8x16xf32>
    %524 = arith.addf %519, %523 : vector<8x16xf32>
    %c95 = arith.constant 95 : index
    %525 = memref.load %arg2[%c95] : memref<98xf32, #tpu.memory_space<smem>>
    %526 = vector.extract_strided_slice %504 {offsets = [0, 4], sizes = [8, 16], strides = [1, 1]} : vector<8x128xf32> to vector<8x16xf32>
    %527 = vector.broadcast %525 : f32 to vector<8x16xf32>
    %528 = arith.mulf %527, %526 : vector<8x16xf32>
    %529 = arith.addf %524, %528 : vector<8x16xf32>
    %c96 = arith.constant 96 : index
    %530 = memref.load %arg2[%c96] : memref<98xf32, #tpu.memory_space<smem>>
    %531 = vector.extract_strided_slice %504 {offsets = [0, 5], sizes = [8, 16], strides = [1, 1]} : vector<8x128xf32> to vector<8x16xf32>
    %532 = vector.broadcast %530 : f32 to vector<8x16xf32>
    %533 = arith.mulf %532, %531 : vector<8x16xf32>
    %534 = arith.addf %529, %533 : vector<8x16xf32>
    %c97 = arith.constant 97 : index
    %535 = memref.load %arg2[%c97] : memref<98xf32, #tpu.memory_space<smem>>
    %536 = vector.extract_strided_slice %504 {offsets = [0, 6], sizes = [8, 16], strides = [1, 1]} : vector<8x128xf32> to vector<8x16xf32>
    %537 = vector.broadcast %535 : f32 to vector<8x16xf32>
    %538 = arith.mulf %537, %536 : vector<8x16xf32>
    %539 = arith.addf %534, %538 : vector<8x16xf32>
    %540 = arith.negf %539 : vector<8x16xf32>
    %541 = math.exp %540 : vector<8x16xf32>
    %cst_67 = arith.constant 1.000000e+00 : f32
    %542 = vector.broadcast %cst_67 : f32 to vector<8x16xf32>
    %543 = arith.addf %542, %541 : vector<8x16xf32>
    %544 = arith.divf %542, %543 : vector<8x16xf32>
    %c0_68 = arith.constant 0 : index
    %c0_69 = arith.constant 0 : index
    %545 = vector.load %arg6[%c0_68, %c0_69] : memref<16x16xf32, #tpu.memory_space<vmem>>, vector<8x16xf32>
    tpu.vector_store %arg6[%c0_68, %c0_69], %544 {strides = array<i32>} : memref<16x16xf32, #tpu.memory_space<vmem>>, vector<8x16xf32>,
    %546 = vector.broadcast %20 : f32 to vector<8x16xf32>
    %c0_70 = arith.constant 0 : index
    %c8_71 = arith.constant 8 : index
    %c0_72 = arith.constant 0 : index
    %547 = vector.load %arg5[%c0_70, %c8_71, %c0_72] : memref<2x22x128xf32, #tpu.memory_space<vmem>>, vector<1x8x128xf32>
    %548 = vector.shape_cast %547 : vector<1x8x128xf32> to vector<8x128xf32>
    %c0_73 = arith.constant 0 : index
    %549 = memref.load %arg2[%c0_73] : memref<98xf32, #tpu.memory_space<smem>>
    %550 = vector.extract_strided_slice %548 {offsets = [0, 0], sizes = [8, 16], strides = [1, 1]} : vector<8x128xf32> to vector<8x16xf32>
    %551 = vector.broadcast %549 : f32 to vector<8x16xf32>
    %552 = arith.mulf %551, %550 : vector<8x16xf32>
    %553 = arith.addf %546, %552 : vector<8x16xf32>
    %c1_74 = arith.constant 1 : index
    %554 = memref.load %arg2[%c1_74] : memref<98xf32, #tpu.memory_space<smem>>
    %555 = vector.extract_strided_slice %548 {offsets = [0, 1], sizes = [8, 16], strides = [1, 1]} : vector<8x128xf32> to vector<8x16xf32>
    %556 = vector.broadcast %554 : f32 to vector<8x16xf32>
    %557 = arith.mulf %556, %555 : vector<8x16xf32>
    %558 = arith.addf %553, %557 : vector<8x16xf32>
    %c2_75 = arith.constant 2 : index
    %559 = memref.load %arg2[%c2_75] : memref<98xf32, #tpu.memory_space<smem>>
    %560 = vector.extract_strided_slice %548 {offsets = [0, 2], sizes = [8, 16], strides = [1, 1]} : vector<8x128xf32> to vector<8x16xf32>
    %561 = vector.broadcast %559 : f32 to vector<8x16xf32>
    %562 = arith.mulf %561, %560 : vector<8x16xf32>
    %563 = arith.addf %558, %562 : vector<8x16xf32>
    %c3_76 = arith.constant 3 : index
    %564 = memref.load %arg2[%c3_76] : memref<98xf32, #tpu.memory_space<smem>>
    %565 = vector.extract_strided_slice %548 {offsets = [0, 3], sizes = [8, 16], strides = [1, 1]} : vector<8x128xf32> to vector<8x16xf32>
    %566 = vector.broadcast %564 : f32 to vector<8x16xf32>
    %567 = arith.mulf %566, %565 : vector<8x16xf32>
    %568 = arith.addf %563, %567 : vector<8x16xf32>
    %c4_77 = arith.constant 4 : index
    %569 = memref.load %arg2[%c4_77] : memref<98xf32, #tpu.memory_space<smem>>
    %570 = vector.extract_strided_slice %548 {offsets = [0, 4], sizes = [8, 16], strides = [1, 1]} : vector<8x128xf32> to vector<8x16xf32>
    %571 = vector.broadcast %569 : f32 to vector<8x16xf32>
    %572 = arith.mulf %571, %570 : vector<8x16xf32>
    %573 = arith.addf %568, %572 : vector<8x16xf32>
    %c5_78 = arith.constant 5 : index
    %574 = memref.load %arg2[%c5_78] : memref<98xf32, #tpu.memory_space<smem>>
    %575 = vector.extract_strided_slice %548 {offsets = [0, 5], sizes = [8, 16], strides = [1, 1]} : vector<8x128xf32> to vector<8x16xf32>
    %576 = vector.broadcast %574 : f32 to vector<8x16xf32>
    %577 = arith.mulf %576, %575 : vector<8x16xf32>
    %578 = arith.addf %573, %577 : vector<8x16xf32>
    %c6_79 = arith.constant 6 : index
    %579 = memref.load %arg2[%c6_79] : memref<98xf32, #tpu.memory_space<smem>>
    %580 = vector.extract_strided_slice %548 {offsets = [0, 6], sizes = [8, 16], strides = [1, 1]} : vector<8x128xf32> to vector<8x16xf32>
    %581 = vector.broadcast %579 : f32 to vector<8x16xf32>
    %582 = arith.mulf %581, %580 : vector<8x16xf32>
    %583 = arith.addf %578, %582 : vector<8x16xf32>
    %c0_80 = arith.constant 0 : index
    %c9_81 = arith.constant 9 : index
    %c0_82 = arith.constant 0 : index
    %584 = vector.load %arg5[%c0_80, %c9_81, %c0_82] : memref<2x22x128xf32, #tpu.memory_space<vmem>>, vector<1x8x128xf32>
    %585 = vector.shape_cast %584 : vector<1x8x128xf32> to vector<8x128xf32>
    %c7_83 = arith.constant 7 : index
    %586 = memref.load %arg2[%c7_83] : memref<98xf32, #tpu.memory_space<smem>>
    %587 = vector.extract_strided_slice %585 {offsets = [0, 0], sizes = [8, 16], strides = [1, 1]} : vector<8x128xf32> to vector<8x16xf32>
    %588 = vector.broadcast %586 : f32 to vector<8x16xf32>
    %589 = arith.mulf %588, %587 : vector<8x16xf32>
    %590 = arith.addf %583, %589 : vector<8x16xf32>
    %c8_84 = arith.constant 8 : index
    %591 = memref.load %arg2[%c8_84] : memref<98xf32, #tpu.memory_space<smem>>
    %592 = vector.extract_strided_slice %585 {offsets = [0, 1], sizes = [8, 16], strides = [1, 1]} : vector<8x128xf32> to vector<8x16xf32>
    %593 = vector.broadcast %591 : f32 to vector<8x16xf32>
    %594 = arith.mulf %593, %592 : vector<8x16xf32>
    %595 = arith.addf %590, %594 : vector<8x16xf32>
    %c9_85 = arith.constant 9 : index
    %596 = memref.load %arg2[%c9_85] : memref<98xf32, #tpu.memory_space<smem>>
    %597 = vector.extract_strided_slice %585 {offsets = [0, 2], sizes = [8, 16], strides = [1, 1]} : vector<8x128xf32> to vector<8x16xf32>
    %598 = vector.broadcast %596 : f32 to vector<8x16xf32>
    %599 = arith.mulf %598, %597 : vector<8x16xf32>
    %600 = arith.addf %595, %599 : vector<8x16xf32>
    %c10_86 = arith.constant 10 : index
    %601 = memref.load %arg2[%c10_86] : memref<98xf32, #tpu.memory_space<smem>>
    %602 = vector.extract_strided_slice %585 {offsets = [0, 3], sizes = [8, 16], strides = [1, 1]} : vector<8x128xf32> to vector<8x16xf32>
    %603 = vector.broadcast %601 : f32 to vector<8x16xf32>
    %604 = arith.mulf %603, %602 : vector<8x16xf32>
    %605 = arith.addf %600, %604 : vector<8x16xf32>
    %c11_87 = arith.constant 11 : index
    %606 = memref.load %arg2[%c11_87] : memref<98xf32, #tpu.memory_space<smem>>
    %607 = vector.extract_strided_slice %585 {offsets = [0, 4], sizes = [8, 16], strides = [1, 1]} : vector<8x128xf32> to vector<8x16xf32>
    %608 = vector.broadcast %606 : f32 to vector<8x16xf32>
    %609 = arith.mulf %608, %607 : vector<8x16xf32>
    %610 = arith.addf %605, %609 : vector<8x16xf32>
    %c12_88 = arith.constant 12 : index
    %611 = memref.load %arg2[%c12_88] : memref<98xf32, #tpu.memory_space<smem>>
    %612 = vector.extract_strided_slice %585 {offsets = [0, 5], sizes = [8, 16], strides = [1, 1]} : vector<8x128xf32> to vector<8x16xf32>
    %613 = vector.broadcast %611 : f32 to vector<8x16xf32>
    %614 = arith.mulf %613, %612 : vector<8x16xf32>
    %615 = arith.addf %610, %614 : vector<8x16xf32>
    %c13_89 = arith.constant 13 : index
    %616 = memref.load %arg2[%c13_89] : memref<98xf32, #tpu.memory_space<smem>>
    %617 = vector.extract_strided_slice %585 {offsets = [0, 6], sizes = [8, 16], strides = [1, 1]} : vector<8x128xf32> to vector<8x16xf32>
    %618 = vector.broadcast %616 : f32 to vector<8x16xf32>
    %619 = arith.mulf %618, %617 : vector<8x16xf32>
    %620 = arith.addf %615, %619 : vector<8x16xf32>
    %c0_90 = arith.constant 0 : index
    %c10_91 = arith.constant 10 : index
    %c0_92 = arith.constant 0 : index
    %621 = vector.load %arg5[%c0_90, %c10_91, %c0_92] : memref<2x22x128xf32, #tpu.memory_space<vmem>>, vector<1x8x128xf32>
    %622 = vector.shape_cast %621 : vector<1x8x128xf32> to vector<8x128xf32>
    %c14_93 = arith.constant 14 : index
    %623 = memref.load %arg2[%c14_93] : memref<98xf32, #tpu.memory_space<smem>>
    %624 = vector.extract_strided_slice %622 {offsets = [0, 0], sizes = [8, 16], strides = [1, 1]} : vector<8x128xf32> to vector<8x16xf32>
    %625 = vector.broadcast %623 : f32 to vector<8x16xf32>
    %626 = arith.mulf %625, %624 : vector<8x16xf32>
    %627 = arith.addf %620, %626 : vector<8x16xf32>
    %c15_94 = arith.constant 15 : index
    %628 = memref.load %arg2[%c15_94] : memref<98xf32, #tpu.memory_space<smem>>
    %629 = vector.extract_strided_slice %622 {offsets = [0, 1], sizes = [8, 16], strides = [1, 1]} : vector<8x128xf32> to vector<8x16xf32>
    %630 = vector.broadcast %628 : f32 to vector<8x16xf32>
    %631 = arith.mulf %630, %629 : vector<8x16xf32>
    %632 = arith.addf %627, %631 : vector<8x16xf32>
    %c16_95 = arith.constant 16 : index
    %633 = memref.load %arg2[%c16_95] : memref<98xf32, #tpu.memory_space<smem>>
    %634 = vector.extract_strided_slice %622 {offsets = [0, 2], sizes = [8, 16], strides = [1, 1]} : vector<8x128xf32> to vector<8x16xf32>
    %635 = vector.broadcast %633 : f32 to vector<8x16xf32>
    %636 = arith.mulf %635, %634 : vector<8x16xf32>
    %637 = arith.addf %632, %636 : vector<8x16xf32>
    %c17_96 = arith.constant 17 : index
    %638 = memref.load %arg2[%c17_96] : memref<98xf32, #tpu.memory_space<smem>>
    %639 = vector.extract_strided_slice %622 {offsets = [0, 3], sizes = [8, 16], strides = [1, 1]} : vector<8x128xf32> to vector<8x16xf32>
    %640 = vector.broadcast %638 : f32 to vector<8x16xf32>
    %641 = arith.mulf %640, %639 : vector<8x16xf32>
    %642 = arith.addf %637, %641 : vector<8x16xf32>
    %c18_97 = arith.constant 18 : index
    %643 = memref.load %arg2[%c18_97] : memref<98xf32, #tpu.memory_space<smem>>
    %644 = vector.extract_strided_slice %622 {offsets = [0, 4], sizes = [8, 16], strides = [1, 1]} : vector<8x128xf32> to vector<8x16xf32>
    %645 = vector.broadcast %643 : f32 to vector<8x16xf32>
    %646 = arith.mulf %645, %644 : vector<8x16xf32>
    %647 = arith.addf %642, %646 : vector<8x16xf32>
    %c19_98 = arith.constant 19 : index
    %648 = memref.load %arg2[%c19_98] : memref<98xf32, #tpu.memory_space<smem>>
    %649 = vector.extract_strided_slice %622 {offsets = [0, 5], sizes = [8, 16], strides = [1, 1]} : vector<8x128xf32> to vector<8x16xf32>
    %650 = vector.broadcast %648 : f32 to vector<8x16xf32>
    %651 = arith.mulf %650, %649 : vector<8x16xf32>
    %652 = arith.addf %647, %651 : vector<8x16xf32>
    %c20_99 = arith.constant 20 : index
    %653 = memref.load %arg2[%c20_99] : memref<98xf32, #tpu.memory_space<smem>>
    %654 = vector.extract_strided_slice %622 {offsets = [0, 6], sizes = [8, 16], strides = [1, 1]} : vector<8x128xf32> to vector<8x16xf32>
    %655 = vector.broadcast %653 : f32 to vector<8x16xf32>
    %656 = arith.mulf %655, %654 : vector<8x16xf32>
    %657 = arith.addf %652, %656 : vector<8x16xf32>
    %c0_100 = arith.constant 0 : index
    %c11_101 = arith.constant 11 : index
    %c0_102 = arith.constant 0 : index
    %658 = vector.load %arg5[%c0_100, %c11_101, %c0_102] : memref<2x22x128xf32, #tpu.memory_space<vmem>>, vector<1x8x128xf32>
    %659 = vector.shape_cast %658 : vector<1x8x128xf32> to vector<8x128xf32>
    %c21_103 = arith.constant 21 : index
    %660 = memref.load %arg2[%c21_103] : memref<98xf32, #tpu.memory_space<smem>>
    %661 = vector.extract_strided_slice %659 {offsets = [0, 0], sizes = [8, 16], strides = [1, 1]} : vector<8x128xf32> to vector<8x16xf32>
    %662 = vector.broadcast %660 : f32 to vector<8x16xf32>
    %663 = arith.mulf %662, %661 : vector<8x16xf32>
    %664 = arith.addf %657, %663 : vector<8x16xf32>
    %c22_104 = arith.constant 22 : index
    %665 = memref.load %arg2[%c22_104] : memref<98xf32, #tpu.memory_space<smem>>
    %666 = vector.extract_strided_slice %659 {offsets = [0, 1], sizes = [8, 16], strides = [1, 1]} : vector<8x128xf32> to vector<8x16xf32>
    %667 = vector.broadcast %665 : f32 to vector<8x16xf32>
    %668 = arith.mulf %667, %666 : vector<8x16xf32>
    %669 = arith.addf %664, %668 : vector<8x16xf32>
    %c23_105 = arith.constant 23 : index
    %670 = memref.load %arg2[%c23_105] : memref<98xf32, #tpu.memory_space<smem>>
    %671 = vector.extract_strided_slice %659 {offsets = [0, 2], sizes = [8, 16], strides = [1, 1]} : vector<8x128xf32> to vector<8x16xf32>
    %672 = vector.broadcast %670 : f32 to vector<8x16xf32>
    %673 = arith.mulf %672, %671 : vector<8x16xf32>
    %674 = arith.addf %669, %673 : vector<8x16xf32>
    %c24_106 = arith.constant 24 : index
    %675 = memref.load %arg2[%c24_106] : memref<98xf32, #tpu.memory_space<smem>>
    %676 = vector.extract_strided_slice %659 {offsets = [0, 3], sizes = [8, 16], strides = [1, 1]} : vector<8x128xf32> to vector<8x16xf32>
    %677 = vector.broadcast %675 : f32 to vector<8x16xf32>
    %678 = arith.mulf %677, %676 : vector<8x16xf32>
    %679 = arith.addf %674, %678 : vector<8x16xf32>
    %c25_107 = arith.constant 25 : index
    %680 = memref.load %arg2[%c25_107] : memref<98xf32, #tpu.memory_space<smem>>
    %681 = vector.extract_strided_slice %659 {offsets = [0, 4], sizes = [8, 16], strides = [1, 1]} : vector<8x128xf32> to vector<8x16xf32>
    %682 = vector.broadcast %680 : f32 to vector<8x16xf32>
    %683 = arith.mulf %682, %681 : vector<8x16xf32>
    %684 = arith.addf %679, %683 : vector<8x16xf32>
    %c26_108 = arith.constant 26 : index
    %685 = memref.load %arg2[%c26_108] : memref<98xf32, #tpu.memory_space<smem>>
    %686 = vector.extract_strided_slice %659 {offsets = [0, 5], sizes = [8, 16], strides = [1, 1]} : vector<8x128xf32> to vector<8x16xf32>
    %687 = vector.broadcast %685 : f32 to vector<8x16xf32>
    %688 = arith.mulf %687, %686 : vector<8x16xf32>
    %689 = arith.addf %684, %688 : vector<8x16xf32>
    %c27_109 = arith.constant 27 : index
    %690 = memref.load %arg2[%c27_109] : memref<98xf32, #tpu.memory_space<smem>>
    %691 = vector.extract_strided_slice %659 {offsets = [0, 6], sizes = [8, 16], strides = [1, 1]} : vector<8x128xf32> to vector<8x16xf32>
    %692 = vector.broadcast %690 : f32 to vector<8x16xf32>
    %693 = arith.mulf %692, %691 : vector<8x16xf32>
    %694 = arith.addf %689, %693 : vector<8x16xf32>
    %c0_110 = arith.constant 0 : index
    %c12_111 = arith.constant 12 : index
    %c0_112 = arith.constant 0 : index
    %695 = vector.load %arg5[%c0_110, %c12_111, %c0_112] : memref<2x22x128xf32, #tpu.memory_space<vmem>>, vector<1x8x128xf32>
    %696 = vector.shape_cast %695 : vector<1x8x128xf32> to vector<8x128xf32>
    %c28_113 = arith.constant 28 : index
    %697 = memref.load %arg2[%c28_113] : memref<98xf32, #tpu.memory_space<smem>>
    %698 = vector.extract_strided_slice %696 {offsets = [0, 0], sizes = [8, 16], strides = [1, 1]} : vector<8x128xf32> to vector<8x16xf32>
    %699 = vector.broadcast %697 : f32 to vector<8x16xf32>
    %700 = arith.mulf %699, %698 : vector<8x16xf32>
    %701 = arith.addf %694, %700 : vector<8x16xf32>
    %c29_114 = arith.constant 29 : index
    %702 = memref.load %arg2[%c29_114] : memref<98xf32, #tpu.memory_space<smem>>
    %703 = vector.extract_strided_slice %696 {offsets = [0, 1], sizes = [8, 16], strides = [1, 1]} : vector<8x128xf32> to vector<8x16xf32>
    %704 = vector.broadcast %702 : f32 to vector<8x16xf32>
    %705 = arith.mulf %704, %703 : vector<8x16xf32>
    %706 = arith.addf %701, %705 : vector<8x16xf32>
    %c30_115 = arith.constant 30 : index
    %707 = memref.load %arg2[%c30_115] : memref<98xf32, #tpu.memory_space<smem>>
    %708 = vector.extract_strided_slice %696 {offsets = [0, 2], sizes = [8, 16], strides = [1, 1]} : vector<8x128xf32> to vector<8x16xf32>
    %709 = vector.broadcast %707 : f32 to vector<8x16xf32>
    %710 = arith.mulf %709, %708 : vector<8x16xf32>
    %711 = arith.addf %706, %710 : vector<8x16xf32>
    %c31_116 = arith.constant 31 : index
    %712 = memref.load %arg2[%c31_116] : memref<98xf32, #tpu.memory_space<smem>>
    %713 = vector.extract_strided_slice %696 {offsets = [0, 3], sizes = [8, 16], strides = [1, 1]} : vector<8x128xf32> to vector<8x16xf32>
    %714 = vector.broadcast %712 : f32 to vector<8x16xf32>
    %715 = arith.mulf %714, %713 : vector<8x16xf32>
    %716 = arith.addf %711, %715 : vector<8x16xf32>
    %c32_117 = arith.constant 32 : index
    %717 = memref.load %arg2[%c32_117] : memref<98xf32, #tpu.memory_space<smem>>
    %718 = vector.extract_strided_slice %696 {offsets = [0, 4], sizes = [8, 16], strides = [1, 1]} : vector<8x128xf32> to vector<8x16xf32>
    %719 = vector.broadcast %717 : f32 to vector<8x16xf32>
    %720 = arith.mulf %719, %718 : vector<8x16xf32>
    %721 = arith.addf %716, %720 : vector<8x16xf32>
    %c33_118 = arith.constant 33 : index
    %722 = memref.load %arg2[%c33_118] : memref<98xf32, #tpu.memory_space<smem>>
    %723 = vector.extract_strided_slice %696 {offsets = [0, 5], sizes = [8, 16], strides = [1, 1]} : vector<8x128xf32> to vector<8x16xf32>
    %724 = vector.broadcast %722 : f32 to vector<8x16xf32>
    %725 = arith.mulf %724, %723 : vector<8x16xf32>
    %726 = arith.addf %721, %725 : vector<8x16xf32>
    %c34_119 = arith.constant 34 : index
    %727 = memref.load %arg2[%c34_119] : memref<98xf32, #tpu.memory_space<smem>>
    %728 = vector.extract_strided_slice %696 {offsets = [0, 6], sizes = [8, 16], strides = [1, 1]} : vector<8x128xf32> to vector<8x16xf32>
    %729 = vector.broadcast %727 : f32 to vector<8x16xf32>
    %730 = arith.mulf %729, %728 : vector<8x16xf32>
    %731 = arith.addf %726, %730 : vector<8x16xf32>
    %c0_120 = arith.constant 0 : index
    %c13_121 = arith.constant 13 : index
    %c0_122 = arith.constant 0 : index
    %732 = vector.load %arg5[%c0_120, %c13_121, %c0_122] : memref<2x22x128xf32, #tpu.memory_space<vmem>>, vector<1x8x128xf32>
    %733 = vector.shape_cast %732 : vector<1x8x128xf32> to vector<8x128xf32>
    %c35_123 = arith.constant 35 : index
    %734 = memref.load %arg2[%c35_123] : memref<98xf32, #tpu.memory_space<smem>>
    %735 = vector.extract_strided_slice %733 {offsets = [0, 0], sizes = [8, 16], strides = [1, 1]} : vector<8x128xf32> to vector<8x16xf32>
    %736 = vector.broadcast %734 : f32 to vector<8x16xf32>
    %737 = arith.mulf %736, %735 : vector<8x16xf32>
    %738 = arith.addf %731, %737 : vector<8x16xf32>
    %c36_124 = arith.constant 36 : index
    %739 = memref.load %arg2[%c36_124] : memref<98xf32, #tpu.memory_space<smem>>
    %740 = vector.extract_strided_slice %733 {offsets = [0, 1], sizes = [8, 16], strides = [1, 1]} : vector<8x128xf32> to vector<8x16xf32>
    %741 = vector.broadcast %739 : f32 to vector<8x16xf32>
    %742 = arith.mulf %741, %740 : vector<8x16xf32>
    %743 = arith.addf %738, %742 : vector<8x16xf32>
    %c37_125 = arith.constant 37 : index
    %744 = memref.load %arg2[%c37_125] : memref<98xf32, #tpu.memory_space<smem>>
    %745 = vector.extract_strided_slice %733 {offsets = [0, 2], sizes = [8, 16], strides = [1, 1]} : vector<8x128xf32> to vector<8x16xf32>
    %746 = vector.broadcast %744 : f32 to vector<8x16xf32>
    %747 = arith.mulf %746, %745 : vector<8x16xf32>
    %748 = arith.addf %743, %747 : vector<8x16xf32>
    %c38_126 = arith.constant 38 : index
    %749 = memref.load %arg2[%c38_126] : memref<98xf32, #tpu.memory_space<smem>>
    %750 = vector.extract_strided_slice %733 {offsets = [0, 3], sizes = [8, 16], strides = [1, 1]} : vector<8x128xf32> to vector<8x16xf32>
    %751 = vector.broadcast %749 : f32 to vector<8x16xf32>
    %752 = arith.mulf %751, %750 : vector<8x16xf32>
    %753 = arith.addf %748, %752 : vector<8x16xf32>
    %c39_127 = arith.constant 39 : index
    %754 = memref.load %arg2[%c39_127] : memref<98xf32, #tpu.memory_space<smem>>
    %755 = vector.extract_strided_slice %733 {offsets = [0, 4], sizes = [8, 16], strides = [1, 1]} : vector<8x128xf32> to vector<8x16xf32>
    %756 = vector.broadcast %754 : f32 to vector<8x16xf32>
    %757 = arith.mulf %756, %755 : vector<8x16xf32>
    %758 = arith.addf %753, %757 : vector<8x16xf32>
    %c40_128 = arith.constant 40 : index
    %759 = memref.load %arg2[%c40_128] : memref<98xf32, #tpu.memory_space<smem>>
    %760 = vector.extract_strided_slice %733 {offsets = [0, 5], sizes = [8, 16], strides = [1, 1]} : vector<8x128xf32> to vector<8x16xf32>
    %761 = vector.broadcast %759 : f32 to vector<8x16xf32>
    %762 = arith.mulf %761, %760 : vector<8x16xf32>
    %763 = arith.addf %758, %762 : vector<8x16xf32>
    %c41_129 = arith.constant 41 : index
    %764 = memref.load %arg2[%c41_129] : memref<98xf32, #tpu.memory_space<smem>>
    %765 = vector.extract_strided_slice %733 {offsets = [0, 6], sizes = [8, 16], strides = [1, 1]} : vector<8x128xf32> to vector<8x16xf32>
    %766 = vector.broadcast %764 : f32 to vector<8x16xf32>
    %767 = arith.mulf %766, %765 : vector<8x16xf32>
    %768 = arith.addf %763, %767 : vector<8x16xf32>
    %c0_130 = arith.constant 0 : index
    %c14_131 = arith.constant 14 : index
    %c0_132 = arith.constant 0 : index
    %769 = vector.load %arg5[%c0_130, %c14_131, %c0_132] : memref<2x22x128xf32, #tpu.memory_space<vmem>>, vector<1x8x128xf32>
    %770 = vector.shape_cast %769 : vector<1x8x128xf32> to vector<8x128xf32>
    %c42_133 = arith.constant 42 : index
    %771 = memref.load %arg2[%c42_133] : memref<98xf32, #tpu.memory_space<smem>>
    %772 = vector.extract_strided_slice %770 {offsets = [0, 0], sizes = [8, 16], strides = [1, 1]} : vector<8x128xf32> to vector<8x16xf32>
    %773 = vector.broadcast %771 : f32 to vector<8x16xf32>
    %774 = arith.mulf %773, %772 : vector<8x16xf32>
    %775 = arith.addf %768, %774 : vector<8x16xf32>
    %c43_134 = arith.constant 43 : index
    %776 = memref.load %arg2[%c43_134] : memref<98xf32, #tpu.memory_space<smem>>
    %777 = vector.extract_strided_slice %770 {offsets = [0, 1], sizes = [8, 16], strides = [1, 1]} : vector<8x128xf32> to vector<8x16xf32>
    %778 = vector.broadcast %776 : f32 to vector<8x16xf32>
    %779 = arith.mulf %778, %777 : vector<8x16xf32>
    %780 = arith.addf %775, %779 : vector<8x16xf32>
    %c44_135 = arith.constant 44 : index
    %781 = memref.load %arg2[%c44_135] : memref<98xf32, #tpu.memory_space<smem>>
    %782 = vector.extract_strided_slice %770 {offsets = [0, 2], sizes = [8, 16], strides = [1, 1]} : vector<8x128xf32> to vector<8x16xf32>
    %783 = vector.broadcast %781 : f32 to vector<8x16xf32>
    %784 = arith.mulf %783, %782 : vector<8x16xf32>
    %785 = arith.addf %780, %784 : vector<8x16xf32>
    %c45_136 = arith.constant 45 : index
    %786 = memref.load %arg2[%c45_136] : memref<98xf32, #tpu.memory_space<smem>>
    %787 = vector.extract_strided_slice %770 {offsets = [0, 3], sizes = [8, 16], strides = [1, 1]} : vector<8x128xf32> to vector<8x16xf32>
    %788 = vector.broadcast %786 : f32 to vector<8x16xf32>
    %789 = arith.mulf %788, %787 : vector<8x16xf32>
    %790 = arith.addf %785, %789 : vector<8x16xf32>
    %c46_137 = arith.constant 46 : index
    %791 = memref.load %arg2[%c46_137] : memref<98xf32, #tpu.memory_space<smem>>
    %792 = vector.extract_strided_slice %770 {offsets = [0, 4], sizes = [8, 16], strides = [1, 1]} : vector<8x128xf32> to vector<8x16xf32>
    %793 = vector.broadcast %791 : f32 to vector<8x16xf32>
    %794 = arith.mulf %793, %792 : vector<8x16xf32>
    %795 = arith.addf %790, %794 : vector<8x16xf32>
    %c47_138 = arith.constant 47 : index
    %796 = memref.load %arg2[%c47_138] : memref<98xf32, #tpu.memory_space<smem>>
    %797 = vector.extract_strided_slice %770 {offsets = [0, 5], sizes = [8, 16], strides = [1, 1]} : vector<8x128xf32> to vector<8x16xf32>
    %798 = vector.broadcast %796 : f32 to vector<8x16xf32>
    %799 = arith.mulf %798, %797 : vector<8x16xf32>
    %800 = arith.addf %795, %799 : vector<8x16xf32>
    %c48_139 = arith.constant 48 : index
    %801 = memref.load %arg2[%c48_139] : memref<98xf32, #tpu.memory_space<smem>>
    %802 = vector.extract_strided_slice %770 {offsets = [0, 6], sizes = [8, 16], strides = [1, 1]} : vector<8x128xf32> to vector<8x16xf32>
    %803 = vector.broadcast %801 : f32 to vector<8x16xf32>
    %804 = arith.mulf %803, %802 : vector<8x16xf32>
    %805 = arith.addf %800, %804 : vector<8x16xf32>
    %c1_140 = arith.constant 1 : index
    %c8_141 = arith.constant 8 : index
    %c0_142 = arith.constant 0 : index
    %806 = vector.load %arg5[%c1_140, %c8_141, %c0_142] : memref<2x22x128xf32, #tpu.memory_space<vmem>>, vector<1x8x128xf32>
    %807 = vector.shape_cast %806 : vector<1x8x128xf32> to vector<8x128xf32>
    %c49_143 = arith.constant 49 : index
    %808 = memref.load %arg2[%c49_143] : memref<98xf32, #tpu.memory_space<smem>>
    %809 = vector.extract_strided_slice %807 {offsets = [0, 0], sizes = [8, 16], strides = [1, 1]} : vector<8x128xf32> to vector<8x16xf32>
    %810 = vector.broadcast %808 : f32 to vector<8x16xf32>
    %811 = arith.mulf %810, %809 : vector<8x16xf32>
    %812 = arith.addf %805, %811 : vector<8x16xf32>
    %c50_144 = arith.constant 50 : index
    %813 = memref.load %arg2[%c50_144] : memref<98xf32, #tpu.memory_space<smem>>
    %814 = vector.extract_strided_slice %807 {offsets = [0, 1], sizes = [8, 16], strides = [1, 1]} : vector<8x128xf32> to vector<8x16xf32>
    %815 = vector.broadcast %813 : f32 to vector<8x16xf32>
    %816 = arith.mulf %815, %814 : vector<8x16xf32>
    %817 = arith.addf %812, %816 : vector<8x16xf32>
    %c51_145 = arith.constant 51 : index
    %818 = memref.load %arg2[%c51_145] : memref<98xf32, #tpu.memory_space<smem>>
    %819 = vector.extract_strided_slice %807 {offsets = [0, 2], sizes = [8, 16], strides = [1, 1]} : vector<8x128xf32> to vector<8x16xf32>
    %820 = vector.broadcast %818 : f32 to vector<8x16xf32>
    %821 = arith.mulf %820, %819 : vector<8x16xf32>
    %822 = arith.addf %817, %821 : vector<8x16xf32>
    %c52_146 = arith.constant 52 : index
    %823 = memref.load %arg2[%c52_146] : memref<98xf32, #tpu.memory_space<smem>>
    %824 = vector.extract_strided_slice %807 {offsets = [0, 3], sizes = [8, 16], strides = [1, 1]} : vector<8x128xf32> to vector<8x16xf32>
    %825 = vector.broadcast %823 : f32 to vector<8x16xf32>
    %826 = arith.mulf %825, %824 : vector<8x16xf32>
    %827 = arith.addf %822, %826 : vector<8x16xf32>
    %c53_147 = arith.constant 53 : index
    %828 = memref.load %arg2[%c53_147] : memref<98xf32, #tpu.memory_space<smem>>
    %829 = vector.extract_strided_slice %807 {offsets = [0, 4], sizes = [8, 16], strides = [1, 1]} : vector<8x128xf32> to vector<8x16xf32>
    %830 = vector.broadcast %828 : f32 to vector<8x16xf32>
    %831 = arith.mulf %830, %829 : vector<8x16xf32>
    %832 = arith.addf %827, %831 : vector<8x16xf32>
    %c54_148 = arith.constant 54 : index
    %833 = memref.load %arg2[%c54_148] : memref<98xf32, #tpu.memory_space<smem>>
    %834 = vector.extract_strided_slice %807 {offsets = [0, 5], sizes = [8, 16], strides = [1, 1]} : vector<8x128xf32> to vector<8x16xf32>
    %835 = vector.broadcast %833 : f32 to vector<8x16xf32>
    %836 = arith.mulf %835, %834 : vector<8x16xf32>
    %837 = arith.addf %832, %836 : vector<8x16xf32>
    %c55_149 = arith.constant 55 : index
    %838 = memref.load %arg2[%c55_149] : memref<98xf32, #tpu.memory_space<smem>>
    %839 = vector.extract_strided_slice %807 {offsets = [0, 6], sizes = [8, 16], strides = [1, 1]} : vector<8x128xf32> to vector<8x16xf32>
    %840 = vector.broadcast %838 : f32 to vector<8x16xf32>
    %841 = arith.mulf %840, %839 : vector<8x16xf32>
    %842 = arith.addf %837, %841 : vector<8x16xf32>
    %c1_150 = arith.constant 1 : index
    %c9_151 = arith.constant 9 : index
    %c0_152 = arith.constant 0 : index
    %843 = vector.load %arg5[%c1_150, %c9_151, %c0_152] : memref<2x22x128xf32, #tpu.memory_space<vmem>>, vector<1x8x128xf32>
    %844 = vector.shape_cast %843 : vector<1x8x128xf32> to vector<8x128xf32>
    %c56_153 = arith.constant 56 : index
    %845 = memref.load %arg2[%c56_153] : memref<98xf32, #tpu.memory_space<smem>>
    %846 = vector.extract_strided_slice %844 {offsets = [0, 0], sizes = [8, 16], strides = [1, 1]} : vector<8x128xf32> to vector<8x16xf32>
    %847 = vector.broadcast %845 : f32 to vector<8x16xf32>
    %848 = arith.mulf %847, %846 : vector<8x16xf32>
    %849 = arith.addf %842, %848 : vector<8x16xf32>
    %c57_154 = arith.constant 57 : index
    %850 = memref.load %arg2[%c57_154] : memref<98xf32, #tpu.memory_space<smem>>
    %851 = vector.extract_strided_slice %844 {offsets = [0, 1], sizes = [8, 16], strides = [1, 1]} : vector<8x128xf32> to vector<8x16xf32>
    %852 = vector.broadcast %850 : f32 to vector<8x16xf32>
    %853 = arith.mulf %852, %851 : vector<8x16xf32>
    %854 = arith.addf %849, %853 : vector<8x16xf32>
    %c58_155 = arith.constant 58 : index
    %855 = memref.load %arg2[%c58_155] : memref<98xf32, #tpu.memory_space<smem>>
    %856 = vector.extract_strided_slice %844 {offsets = [0, 2], sizes = [8, 16], strides = [1, 1]} : vector<8x128xf32> to vector<8x16xf32>
    %857 = vector.broadcast %855 : f32 to vector<8x16xf32>
    %858 = arith.mulf %857, %856 : vector<8x16xf32>
    %859 = arith.addf %854, %858 : vector<8x16xf32>
    %c59_156 = arith.constant 59 : index
    %860 = memref.load %arg2[%c59_156] : memref<98xf32, #tpu.memory_space<smem>>
    %861 = vector.extract_strided_slice %844 {offsets = [0, 3], sizes = [8, 16], strides = [1, 1]} : vector<8x128xf32> to vector<8x16xf32>
    %862 = vector.broadcast %860 : f32 to vector<8x16xf32>
    %863 = arith.mulf %862, %861 : vector<8x16xf32>
    %864 = arith.addf %859, %863 : vector<8x16xf32>
    %c60_157 = arith.constant 60 : index
    %865 = memref.load %arg2[%c60_157] : memref<98xf32, #tpu.memory_space<smem>>
    %866 = vector.extract_strided_slice %844 {offsets = [0, 4], sizes = [8, 16], strides = [1, 1]} : vector<8x128xf32> to vector<8x16xf32>
    %867 = vector.broadcast %865 : f32 to vector<8x16xf32>
    %868 = arith.mulf %867, %866 : vector<8x16xf32>
    %869 = arith.addf %864, %868 : vector<8x16xf32>
    %c61_158 = arith.constant 61 : index
    %870 = memref.load %arg2[%c61_158] : memref<98xf32, #tpu.memory_space<smem>>
    %871 = vector.extract_strided_slice %844 {offsets = [0, 5], sizes = [8, 16], strides = [1, 1]} : vector<8x128xf32> to vector<8x16xf32>
    %872 = vector.broadcast %870 : f32 to vector<8x16xf32>
    %873 = arith.mulf %872, %871 : vector<8x16xf32>
    %874 = arith.addf %869, %873 : vector<8x16xf32>
    %c62_159 = arith.constant 62 : index
    %875 = memref.load %arg2[%c62_159] : memref<98xf32, #tpu.memory_space<smem>>
    %876 = vector.extract_strided_slice %844 {offsets = [0, 6], sizes = [8, 16], strides = [1, 1]} : vector<8x128xf32> to vector<8x16xf32>
    %877 = vector.broadcast %875 : f32 to vector<8x16xf32>
    %878 = arith.mulf %877, %876 : vector<8x16xf32>
    %879 = arith.addf %874, %878 : vector<8x16xf32>
    %c1_160 = arith.constant 1 : index
    %c10_161 = arith.constant 10 : index
    %c0_162 = arith.constant 0 : index
    %880 = vector.load %arg5[%c1_160, %c10_161, %c0_162] : memref<2x22x128xf32, #tpu.memory_space<vmem>>, vector<1x8x128xf32>
    %881 = vector.shape_cast %880 : vector<1x8x128xf32> to vector<8x128xf32>
    %c63_163 = arith.constant 63 : index
    %882 = memref.load %arg2[%c63_163] : memref<98xf32, #tpu.memory_space<smem>>
    %883 = vector.extract_strided_slice %881 {offsets = [0, 0], sizes = [8, 16], strides = [1, 1]} : vector<8x128xf32> to vector<8x16xf32>
    %884 = vector.broadcast %882 : f32 to vector<8x16xf32>
    %885 = arith.mulf %884, %883 : vector<8x16xf32>
    %886 = arith.addf %879, %885 : vector<8x16xf32>
    %c64_164 = arith.constant 64 : index
    %887 = memref.load %arg2[%c64_164] : memref<98xf32, #tpu.memory_space<smem>>
    %888 = vector.extract_strided_slice %881 {offsets = [0, 1], sizes = [8, 16], strides = [1, 1]} : vector<8x128xf32> to vector<8x16xf32>
    %889 = vector.broadcast %887 : f32 to vector<8x16xf32>
    %890 = arith.mulf %889, %888 : vector<8x16xf32>
    %891 = arith.addf %886, %890 : vector<8x16xf32>
    %c65_165 = arith.constant 65 : index
    %892 = memref.load %arg2[%c65_165] : memref<98xf32, #tpu.memory_space<smem>>
    %893 = vector.extract_strided_slice %881 {offsets = [0, 2], sizes = [8, 16], strides = [1, 1]} : vector<8x128xf32> to vector<8x16xf32>
    %894 = vector.broadcast %892 : f32 to vector<8x16xf32>
    %895 = arith.mulf %894, %893 : vector<8x16xf32>
    %896 = arith.addf %891, %895 : vector<8x16xf32>
    %c66_166 = arith.constant 66 : index
    %897 = memref.load %arg2[%c66_166] : memref<98xf32, #tpu.memory_space<smem>>
    %898 = vector.extract_strided_slice %881 {offsets = [0, 3], sizes = [8, 16], strides = [1, 1]} : vector<8x128xf32> to vector<8x16xf32>
    %899 = vector.broadcast %897 : f32 to vector<8x16xf32>
    %900 = arith.mulf %899, %898 : vector<8x16xf32>
    %901 = arith.addf %896, %900 : vector<8x16xf32>
    %c67_167 = arith.constant 67 : index
    %902 = memref.load %arg2[%c67_167] : memref<98xf32, #tpu.memory_space<smem>>
    %903 = vector.extract_strided_slice %881 {offsets = [0, 4], sizes = [8, 16], strides = [1, 1]} : vector<8x128xf32> to vector<8x16xf32>
    %904 = vector.broadcast %902 : f32 to vector<8x16xf32>
    %905 = arith.mulf %904, %903 : vector<8x16xf32>
    %906 = arith.addf %901, %905 : vector<8x16xf32>
    %c68_168 = arith.constant 68 : index
    %907 = memref.load %arg2[%c68_168] : memref<98xf32, #tpu.memory_space<smem>>
    %908 = vector.extract_strided_slice %881 {offsets = [0, 5], sizes = [8, 16], strides = [1, 1]} : vector<8x128xf32> to vector<8x16xf32>
    %909 = vector.broadcast %907 : f32 to vector<8x16xf32>
    %910 = arith.mulf %909, %908 : vector<8x16xf32>
    %911 = arith.addf %906, %910 : vector<8x16xf32>
    %c69_169 = arith.constant 69 : index
    %912 = memref.load %arg2[%c69_169] : memref<98xf32, #tpu.memory_space<smem>>
    %913 = vector.extract_strided_slice %881 {offsets = [0, 6], sizes = [8, 16], strides = [1, 1]} : vector<8x128xf32> to vector<8x16xf32>
    %914 = vector.broadcast %912 : f32 to vector<8x16xf32>
    %915 = arith.mulf %914, %913 : vector<8x16xf32>
    %916 = arith.addf %911, %915 : vector<8x16xf32>
    %c1_170 = arith.constant 1 : index
    %c11_171 = arith.constant 11 : index
    %c0_172 = arith.constant 0 : index
    %917 = vector.load %arg5[%c1_170, %c11_171, %c0_172] : memref<2x22x128xf32, #tpu.memory_space<vmem>>, vector<1x8x128xf32>
    %918 = vector.shape_cast %917 : vector<1x8x128xf32> to vector<8x128xf32>
    %c70_173 = arith.constant 70 : index
    %919 = memref.load %arg2[%c70_173] : memref<98xf32, #tpu.memory_space<smem>>
    %920 = vector.extract_strided_slice %918 {offsets = [0, 0], sizes = [8, 16], strides = [1, 1]} : vector<8x128xf32> to vector<8x16xf32>
    %921 = vector.broadcast %919 : f32 to vector<8x16xf32>
    %922 = arith.mulf %921, %920 : vector<8x16xf32>
    %923 = arith.addf %916, %922 : vector<8x16xf32>
    %c71_174 = arith.constant 71 : index
    %924 = memref.load %arg2[%c71_174] : memref<98xf32, #tpu.memory_space<smem>>
    %925 = vector.extract_strided_slice %918 {offsets = [0, 1], sizes = [8, 16], strides = [1, 1]} : vector<8x128xf32> to vector<8x16xf32>
    %926 = vector.broadcast %924 : f32 to vector<8x16xf32>
    %927 = arith.mulf %926, %925 : vector<8x16xf32>
    %928 = arith.addf %923, %927 : vector<8x16xf32>
    %c72_175 = arith.constant 72 : index
    %929 = memref.load %arg2[%c72_175] : memref<98xf32, #tpu.memory_space<smem>>
    %930 = vector.extract_strided_slice %918 {offsets = [0, 2], sizes = [8, 16], strides = [1, 1]} : vector<8x128xf32> to vector<8x16xf32>
    %931 = vector.broadcast %929 : f32 to vector<8x16xf32>
    %932 = arith.mulf %931, %930 : vector<8x16xf32>
    %933 = arith.addf %928, %932 : vector<8x16xf32>
    %c73_176 = arith.constant 73 : index
    %934 = memref.load %arg2[%c73_176] : memref<98xf32, #tpu.memory_space<smem>>
    %935 = vector.extract_strided_slice %918 {offsets = [0, 3], sizes = [8, 16], strides = [1, 1]} : vector<8x128xf32> to vector<8x16xf32>
    %936 = vector.broadcast %934 : f32 to vector<8x16xf32>
    %937 = arith.mulf %936, %935 : vector<8x16xf32>
    %938 = arith.addf %933, %937 : vector<8x16xf32>
    %c74_177 = arith.constant 74 : index
    %939 = memref.load %arg2[%c74_177] : memref<98xf32, #tpu.memory_space<smem>>
    %940 = vector.extract_strided_slice %918 {offsets = [0, 4], sizes = [8, 16], strides = [1, 1]} : vector<8x128xf32> to vector<8x16xf32>
    %941 = vector.broadcast %939 : f32 to vector<8x16xf32>
    %942 = arith.mulf %941, %940 : vector<8x16xf32>
    %943 = arith.addf %938, %942 : vector<8x16xf32>
    %c75_178 = arith.constant 75 : index
    %944 = memref.load %arg2[%c75_178] : memref<98xf32, #tpu.memory_space<smem>>
    %945 = vector.extract_strided_slice %918 {offsets = [0, 5], sizes = [8, 16], strides = [1, 1]} : vector<8x128xf32> to vector<8x16xf32>
    %946 = vector.broadcast %944 : f32 to vector<8x16xf32>
    %947 = arith.mulf %946, %945 : vector<8x16xf32>
    %948 = arith.addf %943, %947 : vector<8x16xf32>
    %c76_179 = arith.constant 76 : index
    %949 = memref.load %arg2[%c76_179] : memref<98xf32, #tpu.memory_space<smem>>
    %950 = vector.extract_strided_slice %918 {offsets = [0, 6], sizes = [8, 16], strides = [1, 1]} : vector<8x128xf32> to vector<8x16xf32>
    %951 = vector.broadcast %949 : f32 to vector<8x16xf32>
    %952 = arith.mulf %951, %950 : vector<8x16xf32>
    %953 = arith.addf %948, %952 : vector<8x16xf32>
    %c1_180 = arith.constant 1 : index
    %c12_181 = arith.constant 12 : index
    %c0_182 = arith.constant 0 : index
    %954 = vector.load %arg5[%c1_180, %c12_181, %c0_182] : memref<2x22x128xf32, #tpu.memory_space<vmem>>, vector<1x8x128xf32>
    %955 = vector.shape_cast %954 : vector<1x8x128xf32> to vector<8x128xf32>
    %c77_183 = arith.constant 77 : index
    %956 = memref.load %arg2[%c77_183] : memref<98xf32, #tpu.memory_space<smem>>
    %957 = vector.extract_strided_slice %955 {offsets = [0, 0], sizes = [8, 16], strides = [1, 1]} : vector<8x128xf32> to vector<8x16xf32>
    %958 = vector.broadcast %956 : f32 to vector<8x16xf32>
    %959 = arith.mulf %958, %957 : vector<8x16xf32>
    %960 = arith.addf %953, %959 : vector<8x16xf32>
    %c78_184 = arith.constant 78 : index
    %961 = memref.load %arg2[%c78_184] : memref<98xf32, #tpu.memory_space<smem>>
    %962 = vector.extract_strided_slice %955 {offsets = [0, 1], sizes = [8, 16], strides = [1, 1]} : vector<8x128xf32> to vector<8x16xf32>
    %963 = vector.broadcast %961 : f32 to vector<8x16xf32>
    %964 = arith.mulf %963, %962 : vector<8x16xf32>
    %965 = arith.addf %960, %964 : vector<8x16xf32>
    %c79_185 = arith.constant 79 : index
    %966 = memref.load %arg2[%c79_185] : memref<98xf32, #tpu.memory_space<smem>>
    %967 = vector.extract_strided_slice %955 {offsets = [0, 2], sizes = [8, 16], strides = [1, 1]} : vector<8x128xf32> to vector<8x16xf32>
    %968 = vector.broadcast %966 : f32 to vector<8x16xf32>
    %969 = arith.mulf %968, %967 : vector<8x16xf32>
    %970 = arith.addf %965, %969 : vector<8x16xf32>
    %c80_186 = arith.constant 80 : index
    %971 = memref.load %arg2[%c80_186] : memref<98xf32, #tpu.memory_space<smem>>
    %972 = vector.extract_strided_slice %955 {offsets = [0, 3], sizes = [8, 16], strides = [1, 1]} : vector<8x128xf32> to vector<8x16xf32>
    %973 = vector.broadcast %971 : f32 to vector<8x16xf32>
    %974 = arith.mulf %973, %972 : vector<8x16xf32>
    %975 = arith.addf %970, %974 : vector<8x16xf32>
    %c81_187 = arith.constant 81 : index
    %976 = memref.load %arg2[%c81_187] : memref<98xf32, #tpu.memory_space<smem>>
    %977 = vector.extract_strided_slice %955 {offsets = [0, 4], sizes = [8, 16], strides = [1, 1]} : vector<8x128xf32> to vector<8x16xf32>
    %978 = vector.broadcast %976 : f32 to vector<8x16xf32>
    %979 = arith.mulf %978, %977 : vector<8x16xf32>
    %980 = arith.addf %975, %979 : vector<8x16xf32>
    %c82_188 = arith.constant 82 : index
    %981 = memref.load %arg2[%c82_188] : memref<98xf32, #tpu.memory_space<smem>>
    %982 = vector.extract_strided_slice %955 {offsets = [0, 5], sizes = [8, 16], strides = [1, 1]} : vector<8x128xf32> to vector<8x16xf32>
    %983 = vector.broadcast %981 : f32 to vector<8x16xf32>
    %984 = arith.mulf %983, %982 : vector<8x16xf32>
    %985 = arith.addf %980, %984 : vector<8x16xf32>
    %c83_189 = arith.constant 83 : index
    %986 = memref.load %arg2[%c83_189] : memref<98xf32, #tpu.memory_space<smem>>
    %987 = vector.extract_strided_slice %955 {offsets = [0, 6], sizes = [8, 16], strides = [1, 1]} : vector<8x128xf32> to vector<8x16xf32>
    %988 = vector.broadcast %986 : f32 to vector<8x16xf32>
    %989 = arith.mulf %988, %987 : vector<8x16xf32>
    %990 = arith.addf %985, %989 : vector<8x16xf32>
    %c1_190 = arith.constant 1 : index
    %c13_191 = arith.constant 13 : index
    %c0_192 = arith.constant 0 : index
    %991 = vector.load %arg5[%c1_190, %c13_191, %c0_192] : memref<2x22x128xf32, #tpu.memory_space<vmem>>, vector<1x8x128xf32>
    %992 = vector.shape_cast %991 : vector<1x8x128xf32> to vector<8x128xf32>
    %c84_193 = arith.constant 84 : index
    %993 = memref.load %arg2[%c84_193] : memref<98xf32, #tpu.memory_space<smem>>
    %994 = vector.extract_strided_slice %992 {offsets = [0, 0], sizes = [8, 16], strides = [1, 1]} : vector<8x128xf32> to vector<8x16xf32>
    %995 = vector.broadcast %993 : f32 to vector<8x16xf32>
    %996 = arith.mulf %995, %994 : vector<8x16xf32>
    %997 = arith.addf %990, %996 : vector<8x16xf32>
    %c85_194 = arith.constant 85 : index
    %998 = memref.load %arg2[%c85_194] : memref<98xf32, #tpu.memory_space<smem>>
    %999 = vector.extract_strided_slice %992 {offsets = [0, 1], sizes = [8, 16], strides = [1, 1]} : vector<8x128xf32> to vector<8x16xf32>
    %1000 = vector.broadcast %998 : f32 to vector<8x16xf32>
    %1001 = arith.mulf %1000, %999 : vector<8x16xf32>
    %1002 = arith.addf %997, %1001 : vector<8x16xf32>
    %c86_195 = arith.constant 86 : index
    %1003 = memref.load %arg2[%c86_195] : memref<98xf32, #tpu.memory_space<smem>>
    %1004 = vector.extract_strided_slice %992 {offsets = [0, 2], sizes = [8, 16], strides = [1, 1]} : vector<8x128xf32> to vector<8x16xf32>
    %1005 = vector.broadcast %1003 : f32 to vector<8x16xf32>
    %1006 = arith.mulf %1005, %1004 : vector<8x16xf32>
    %1007 = arith.addf %1002, %1006 : vector<8x16xf32>
    %c87_196 = arith.constant 87 : index
    %1008 = memref.load %arg2[%c87_196] : memref<98xf32, #tpu.memory_space<smem>>
    %1009 = vector.extract_strided_slice %992 {offsets = [0, 3], sizes = [8, 16], strides = [1, 1]} : vector<8x128xf32> to vector<8x16xf32>
    %1010 = vector.broadcast %1008 : f32 to vector<8x16xf32>
    %1011 = arith.mulf %1010, %1009 : vector<8x16xf32>
    %1012 = arith.addf %1007, %1011 : vector<8x16xf32>
    %c88_197 = arith.constant 88 : index
    %1013 = memref.load %arg2[%c88_197] : memref<98xf32, #tpu.memory_space<smem>>
    %1014 = vector.extract_strided_slice %992 {offsets = [0, 4], sizes = [8, 16], strides = [1, 1]} : vector<8x128xf32> to vector<8x16xf32>
    %1015 = vector.broadcast %1013 : f32 to vector<8x16xf32>
    %1016 = arith.mulf %1015, %1014 : vector<8x16xf32>
    %1017 = arith.addf %1012, %1016 : vector<8x16xf32>
    %c89_198 = arith.constant 89 : index
    %1018 = memref.load %arg2[%c89_198] : memref<98xf32, #tpu.memory_space<smem>>
    %1019 = vector.extract_strided_slice %992 {offsets = [0, 5], sizes = [8, 16], strides = [1, 1]} : vector<8x128xf32> to vector<8x16xf32>
    %1020 = vector.broadcast %1018 : f32 to vector<8x16xf32>
    %1021 = arith.mulf %1020, %1019 : vector<8x16xf32>
    %1022 = arith.addf %1017, %1021 : vector<8x16xf32>
    %c90_199 = arith.constant 90 : index
    %1023 = memref.load %arg2[%c90_199] : memref<98xf32, #tpu.memory_space<smem>>
    %1024 = vector.extract_strided_slice %992 {offsets = [0, 6], sizes = [8, 16], strides = [1, 1]} : vector<8x128xf32> to vector<8x16xf32>
    %1025 = vector.broadcast %1023 : f32 to vector<8x16xf32>
    %1026 = arith.mulf %1025, %1024 : vector<8x16xf32>
    %1027 = arith.addf %1022, %1026 : vector<8x16xf32>
    %c1_200 = arith.constant 1 : index
    %c14_201 = arith.constant 14 : index
    %c0_202 = arith.constant 0 : index
    %1028 = vector.load %arg5[%c1_200, %c14_201, %c0_202] : memref<2x22x128xf32, #tpu.memory_space<vmem>>, vector<1x8x128xf32>
    %1029 = vector.shape_cast %1028 : vector<1x8x128xf32> to vector<8x128xf32>
    %c91_203 = arith.constant 91 : index
    %1030 = memref.load %arg2[%c91_203] : memref<98xf32, #tpu.memory_space<smem>>
    %1031 = vector.extract_strided_slice %1029 {offsets = [0, 0], sizes = [8, 16], strides = [1, 1]} : vector<8x128xf32> to vector<8x16xf32>
    %1032 = vector.broadcast %1030 : f32 to vector<8x16xf32>
    %1033 = arith.mulf %1032, %1031 : vector<8x16xf32>
    %1034 = arith.addf %1027, %1033 : vector<8x16xf32>
    %c92_204 = arith.constant 92 : index
    %1035 = memref.load %arg2[%c92_204] : memref<98xf32, #tpu.memory_space<smem>>
    %1036 = vector.extract_strided_slice %1029 {offsets = [0, 1], sizes = [8, 16], strides = [1, 1]} : vector<8x128xf32> to vector<8x16xf32>
    %1037 = vector.broadcast %1035 : f32 to vector<8x16xf32>
    %1038 = arith.mulf %1037, %1036 : vector<8x16xf32>
    %1039 = arith.addf %1034, %1038 : vector<8x16xf32>
    %c93_205 = arith.constant 93 : index
    %1040 = memref.load %arg2[%c93_205] : memref<98xf32, #tpu.memory_space<smem>>
    %1041 = vector.extract_strided_slice %1029 {offsets = [0, 2], sizes = [8, 16], strides = [1, 1]} : vector<8x128xf32> to vector<8x16xf32>
    %1042 = vector.broadcast %1040 : f32 to vector<8x16xf32>
    %1043 = arith.mulf %1042, %1041 : vector<8x16xf32>
    %1044 = arith.addf %1039, %1043 : vector<8x16xf32>
    %c94_206 = arith.constant 94 : index
    %1045 = memref.load %arg2[%c94_206] : memref<98xf32, #tpu.memory_space<smem>>
    %1046 = vector.extract_strided_slice %1029 {offsets = [0, 3], sizes = [8, 16], strides = [1, 1]} : vector<8x128xf32> to vector<8x16xf32>
    %1047 = vector.broadcast %1045 : f32 to vector<8x16xf32>
    %1048 = arith.mulf %1047, %1046 : vector<8x16xf32>
    %1049 = arith.addf %1044, %1048 : vector<8x16xf32>
    %c95_207 = arith.constant 95 : index
    %1050 = memref.load %arg2[%c95_207] : memref<98xf32, #tpu.memory_space<smem>>
    %1051 = vector.extract_strided_slice %1029 {offsets = [0, 4], sizes = [8, 16], strides = [1, 1]} : vector<8x128xf32> to vector<8x16xf32>
    %1052 = vector.broadcast %1050 : f32 to vector<8x16xf32>
    %1053 = arith.mulf %1052, %1051 : vector<8x16xf32>
    %1054 = arith.addf %1049, %1053 : vector<8x16xf32>
    %c96_208 = arith.constant 96 : index
    %1055 = memref.load %arg2[%c96_208] : memref<98xf32, #tpu.memory_space<smem>>
    %1056 = vector.extract_strided_slice %1029 {offsets = [0, 5], sizes = [8, 16], strides = [1, 1]} : vector<8x128xf32> to vector<8x16xf32>
    %1057 = vector.broadcast %1055 : f32 to vector<8x16xf32>
    %1058 = arith.mulf %1057, %1056 : vector<8x16xf32>
    %1059 = arith.addf %1054, %1058 : vector<8x16xf32>
    %c97_209 = arith.constant 97 : index
    %1060 = memref.load %arg2[%c97_209] : memref<98xf32, #tpu.memory_space<smem>>
    %1061 = vector.extract_strided_slice %1029 {offsets = [0, 6], sizes = [8, 16], strides = [1, 1]} : vector<8x128xf32> to vector<8x16xf32>
    %1062 = vector.broadcast %1060 : f32 to vector<8x16xf32>
    %1063 = arith.mulf %1062, %1061 : vector<8x16xf32>
    %1064 = arith.addf %1059, %1063 : vector<8x16xf32>
    %1065 = arith.negf %1064 : vector<8x16xf32>
    %1066 = math.exp %1065 : vector<8x16xf32>
    %cst_210 = arith.constant 1.000000e+00 : f32
    %1067 = vector.broadcast %cst_210 : f32 to vector<8x16xf32>
    %1068 = arith.addf %1067, %1066 : vector<8x16xf32>
    %1069 = arith.divf %1067, %1068 : vector<8x16xf32>
    %c8_211 = arith.constant 8 : index
    %c0_212 = arith.constant 0 : index
    %1070 = vector.load %arg6[%c8_211, %c0_212] : memref<16x16xf32, #tpu.memory_space<vmem>>, vector<8x16xf32>
    tpu.vector_store %arg6[%c8_211, %c0_212], %1069 {strides = array<i32>} : memref<16x16xf32, #tpu.memory_space<vmem>>, vector<8x16xf32>,
    %c0_213 = arith.constant 0 : index
    %c0_214 = arith.constant 0 : index
    %1071 = vector.load %arg6[%c0_213, %c0_214] : memref<16x16xf32, #tpu.memory_space<vmem>>, vector<16x16xf32>
    %c0_215 = arith.constant 0 : index
    %c0_216 = arith.constant 0 : index
    %c0_217 = arith.constant 0 : index
    %c0_218 = arith.constant 0 : index
    %1072 = vector.load %arg1[%c0_215, %c0_216, %c0_217, %c0_218] : memref<1x4x16x16xf32, #tpu.memory_space<vmem>>, vector<1x4x16x16xf32>
    %1073 = vector.shape_cast %1072 : vector<1x4x16x16xf32> to vector<4x16x16xf32>
    %1074 = vector.shape_cast %1071 : vector<16x16xf32> to vector<1x16x16xf32>
    %1075 = vector.broadcast %1074 : vector<1x16x16xf32> to vector<4x16x16xf32>
    %1076 = arith.mulf %1073, %1075 : vector<4x16x16xf32>
    %c0_219 = arith.constant 0 : index
    %c0_220 = arith.constant 0 : index
    %c0_221 = arith.constant 0 : index
    %c0_222 = arith.constant 0 : index
    %1077 = vector.load %arg4[%c0_219, %c0_220, %c0_221, %c0_222] : memref<1x4x16x16xf32, #tpu.memory_space<vmem>>, vector<1x4x16x16xf32>
    %1078 = vector.shape_cast %1077 : vector<1x4x16x16xf32> to vector<4x16x16xf32>
    %1079 = vector.shape_cast %1076 : vector<4x16x16xf32> to vector<1x4x16x16xf32>
    tpu.vector_store %arg4[%c0_219, %c0_220, %c0_221, %c0_222], %1079 {strides = array<i32>} : memref<1x4x16x16xf32, #tpu.memory_space<vmem>>, vector<1x4x16x16xf32>,
    return
  }
  func.func @transform_0(%arg0: i32) -> (i32, i32, i32, i32) {
    %c0_i32 = arith.constant 0 : i32
    %c0_i32_0 = arith.constant 0 : i32
    %c0_i32_1 = arith.constant 0 : i32
    %c0_i32_2 = arith.constant 0 : i32
    return %arg0, %c0_i32, %c0_i32_0, %c0_i32_1 : i32, i32, i32, i32
  }
  func.func @transform_1(%arg0: i32) -> i32 {
    %c0_i32 = arith.constant 0 : i32
    %c0_i32_0 = arith.constant 0 : i32
    return %c0_i32 : i32
  }
  func.func @transform_2(%arg0: i32) -> i32 {
    %c0_i32 = arith.constant 0 : i32
    %c0_i32_0 = arith.constant 0 : i32
    return %c0_i32 : i32
  }
  func.func @transform_3(%arg0: i32) -> (i32, i32, i32, i32) {
    %c0_i32 = arith.constant 0 : i32
    %c0_i32_0 = arith.constant 0 : i32
    %c0_i32_1 = arith.constant 0 : i32
    %c0_i32_2 = arith.constant 0 : i32
    return %arg0, %c0_i32, %c0_i32_0, %c0_i32_1 : i32, i32, i32, i32
  }
}

</mosaic_0001>

<llo_original>
// kernel: tpu_custom_call.1
$region0: #{tpu_custom_call.1}
  #allocation0 [shape = 'u32[]', space=smem, size = 0x4, offset = 0x4, fixed_abs, tag = 'smem constant byte address 0x4 - core index']
  #allocation1 [shape = 'u32[144,128]{1,0:T(1,128)}', space=vmem, size = 0x12000, scoped, tag = 'internal scratch']
  #allocation2 [shape = 'f32[2,22,128]{2,1,0:T(8,128)}', space=vmem, size = 0x6000, scoped, tag = 'scratch operand']
  #allocation3 [shape = 'f32[16,16]{1,0:T(8,128)}', space=vmem, size = 0x2000, scoped, tag = 'scratch operand']
  #allocation4 [shape = 'f32[1]{0:T(128)S(6)}', space=smem, size = 0x200, scoped, tag = 'scoped memory for tpu_custom_call.1']
  %s0 = inlined_call_operand.hbm [shape: f32[2,4,16,16], index: 0, kind: input, shape index: {}]
  %s1 = inlined_call_operand.vmem [shape: f32[98], index: 1, kind: input, shape index: {}]
  %s2 = inlined_call_operand.<no memory space> [shape: f32[1], index: 2, kind: input, shape index: {}]
  %s3 = inlined_call_operand.hbm [shape: f32[2,4,16,16], index: 3, kind: output, shape index: {}]
  %s4 = sld [smem:[#allocation0]]
  $region53: #{tpu_custom_call.1} parent=0
    _
  %s6 = ssub.s32 1, %s4
  %s7 = scalar_select 0, %s6, %s4
  %8 = sst [smem:[#allocation4]] %s2
  $region1: #{tpu_custom_call.1} parent=0
    #allocation5 [shape = 'u8[65536]{0}', space=vmem, size = 0x10000, scoped, tag = 'input window, operand 0']
    #allocation6 [shape = 's32[2]{0}', space=sflag, size = 0x8, scoped, tag = 'scoped memory for tpu_custom_call.1']
    #allocation7 [shape = 's32[2]{0}', space=sflag, size = 0x8, scoped, tag = 'scoped memory for tpu_custom_call.1']
    #allocation8 [shape = 's32[2]{0}', space=sflag, size = 0x8, scoped, tag = 'scoped memory for tpu_custom_call.1']
    #allocation9 [shape = 'u8[512]{0}', space=smem, size = 0x200, scoped, tag = 'input window, operand 1, single buffered']
    #allocation10 [shape = 'u8[65536]{0}', space=vmem, size = 0x10000, scoped, tag = 'output window, operand 0']
    %9 = vsyncpa [#allocation6], 0
    %s10 = scalar_lea.sflag [#allocation6], 1
    %11 = vsyncpa %s10, 0
    %12 = vsyncpa [#allocation8], 0
    %13 = vsyncpa [#allocation7], 0
    %s14 = scalar_lea.sflag [#allocation7], 1
    %15 = vsyncpa %s14, 0
    loop: start=0, step=1, limit=4
    $region2: #{tpu_custom_call.1} parent=1 // loop_pre_header
      _
    $region3: #{tpu_custom_call.1} parent=1 // loop_header
      %s17 = sphi 0, %s21
      %p18 = scmp.ge.s32.totalorder %s17, 4
      %s27 = sphi 0, %s29
      %s30 = sphi 0, %s27
      %s31 = sphi 0, %s30
      %s47 = sphi 0, %s31
      %s51 = sphi 0, %s51
      %s53 = sphi 0, %s51
      %s54 = sphi 0, %s53
      %s68 = sphi 0, %s54
      %s72 = sphi 0, %s72
      %s74 = sphi 0, %s72
      %s75 = sphi 0, %s74
      %s89 = sphi 0, %s75
      %s95 = sphi 0, %s97
      %s98 = sphi 0, %s95
      %s99 = sphi 0, %s98
      %s115 = sphi 0, %s99
    $region4: #{tpu_custom_call.1} parent=1 // loop_header_branch
      %20 = sbr.rel (%p18) target = $region8
    $region5: #{tpu_custom_call.1} parent=1 // loop_body
      %s22 = ssub.s32 %s17, 1
      %s23 = ssub.s32 %s17, 2
      %s24 = sadd.s32 %s17, 1
      %s25 = ssub.s32 %s17, %s24
      %p26 = scmp.eq.s32.totalorder %s25, 0
      %s28 = sadd.s32 %s27, 1
      %s29 = scalar_select %p26, %s27, %s28
      %p32 = pneg %p26
      %p33 = scmp.eq.s32.totalorder %s17, 1
      %p34 = por %p32, %p33
      %p35 = scmp.ne.s32.totalorder %s27, %s30
      %p36 = scmp.eq.s32.totalorder %s17, 0
      %p37 = por %p35, %p36
      %p38 = scmp.ne.s32.totalorder %s27, %s30
      %p39 = scmp.eq.s32.totalorder %s22, 1
      %p40 = por %p38, %p39
      %p41 = scmp.ne.s32.totalorder %s30, %s31
      %p42 = scmp.eq.s32.totalorder %s22, 0
      %p43 = por %p41, %p42
      %p44 = scmp.ne.s32.totalorder %s30, %s31
      %p45 = scmp.eq.s32.totalorder %s23, 1
      %p46 = por %p44, %p45
      %p48 = scmp.ne.s32.totalorder %s31, %s47
      %p49 = scmp.eq.s32.totalorder %s23, 0
      %p50 = por %p48, %p49
      %s52 = sadd.s32 %s51, 1
      %p55 = scmp.eq.s32.totalorder %s17, 1
      %p56 = scmp.ne.s32.totalorder %s51, %s53
      %p57 = scmp.eq.s32.totalorder %s17, 0
      %p58 = por %p56, %p57
      %p59 = scmp.ne.s32.totalorder %s51, %s53
      %p60 = scmp.eq.s32.totalorder %s22, 1
      %p61 = por %p59, %p60
      %p62 = scmp.ne.s32.totalorder %s53, %s54
      %p63 = scmp.eq.s32.totalorder %s22, 0
      %p64 = por %p62, %p63
      %p65 = scmp.ne.s32.totalorder %s53, %s54
      %p66 = scmp.eq.s32.totalorder %s23, 1
      %p67 = por %p65, %p66
      %p69 = scmp.ne.s32.totalorder %s54, %s68
      %p70 = scmp.eq.s32.totalorder %s23, 0
      %p71 = por %p69, %p70
      %s73 = sadd.s32 %s72, 1
      %p76 = scmp.eq.s32.totalorder %s17, 1
      %p77 = scmp.ne.s32.totalorder %s72, %s74
      %p78 = scmp.eq.s32.totalorder %s17, 0
      %p79 = por %p77, %p78
      %p80 = scmp.ne.s32.totalorder %s72, %s74
      %p81 = scmp.eq.s32.totalorder %s22, 1
      %p82 = por %p80, %p81
      %p83 = scmp.ne.s32.totalorder %s74, %s75
      %p84 = scmp.eq.s32.totalorder %s22, 0
      %p85 = por %p83, %p84
      %p86 = scmp.ne.s32.totalorder %s74, %s75
      %p87 = scmp.eq.s32.totalorder %s23, 1
      %p88 = por %p86, %p87
      %p90 = scmp.ne.s32.totalorder %s75, %s89
      %p91 = scmp.eq.s32.totalorder %s23, 0
      %p92 = por %p90, %p91
      %s93 = ssub.s32 %s17, %s24
      %p94 = scmp.eq.s32.totalorder %s93, 0
      %s96 = sadd.s32 %s95, 1
      %s97 = scalar_select %p94, %s95, %s96
      %p100 = pneg %p94
      %p101 = scmp.eq.s32.totalorder %s17, 1
      %p102 = por %p100, %p101
      %p103 = scmp.ne.s32.totalorder %s95, %s98
      %p104 = scmp.eq.s32.totalorder %s17, 0
      %p105 = por %p103, %p104
      %p106 = scmp.ne.s32.totalorder %s95, %s98
      %p107 = scmp.eq.s32.totalorder %s22, 1
      %p108 = por %p106, %p107
      %p109 = scmp.ne.s32.totalorder %s98, %s99
      %p110 = scmp.eq.s32.totalorder %s22, 0
      %p111 = por %p109, %p110
      %p112 = scmp.ne.s32.totalorder %s98, %s99
      %p113 = scmp.eq.s32.totalorder %s23, 1
      %p114 = por %p112, %p113
      %p116 = scmp.ne.s32.totalorder %s99, %s115
      %p117 = scmp.eq.s32.totalorder %s23, 0
      %p118 = por %p116, %p117
      %p119 = scmp.le.s32.totalorder 1, %s17
      %p120 = scmp.lt.s32.totalorder %s17, 3
      %p121 = pnand %p119, %p120
      %p122 = pneg %p121
      // Predicated region
      $region9: #{tpu_custom_call.1} parent=5 // pred_check
        _
      $region10: #{tpu_custom_call.1} parent=5 // pred_check_branch
        %124 = sbr.rel (%p121) target = $region12
      $region11: #{tpu_custom_call.1} parent=5 // pred_region
        %s125 = ssub.s32 %s17, 1
        // Predicated region
        $region13: #{tpu_custom_call.1} parent=11 // pred_check
          %p126 = pneg %p64
        $region14: #{tpu_custom_call.1} parent=11 // pred_check_branch
          %128 = sbr.rel (%p126) target = $region16
        $region15: #{tpu_custom_call.1} parent=11 // pred_region
          %s130 = ssub.s32 16, 16
          %131 = vsyncadd [#allocation8], %s130
          %s133 = sshll.u32 %s1, 4
          %s134 = int_to_ptr.vmem [resolvable:$true] %s133
          %136 = dma.vmem_to_smem %s134, 16, [#allocation9], [#allocation8]
        $region16: #{tpu_custom_call.1} parent=11 // pred_fallthru
          _
        // Predicated region
        $region17: #{tpu_custom_call.1} parent=11 // pred_check
          %p137 = pneg %p85
        $region18: #{tpu_custom_call.1} parent=11 // pred_check_branch
          %139 = sbr.rel (%p137) target = $region20
        $region19: #{tpu_custom_call.1} parent=11 // pred_region
          _
        $region20: #{tpu_custom_call.1} parent=11 // pred_fallthru
          _
      $region12: #{tpu_custom_call.1} parent=5 // pred_fallthru
        _
      %p140 = scmp.lt.s32.totalorder %s17, 2
      // Predicated region
      $region21: #{tpu_custom_call.1} parent=5 // pred_check
        %p141 = pneg %p140
      $region22: #{tpu_custom_call.1} parent=5 // pred_check_branch
        %143 = sbr.rel (%p141) target = $region24
      $region23: #{tpu_custom_call.1} parent=5 // pred_region
        // Predicated region
        $region25: #{tpu_custom_call.1} parent=23 // pred_check
          %p144 = pneg %p37
        $region26: #{tpu_custom_call.1} parent=23 // pred_check_branch
          %146 = sbr.rel (%p144) target = $region28
        $region27: #{tpu_custom_call.1} parent=23 // pred_region
          %s147 = sand.u32 %s27, 1
          %s148 = scalar_lea.sflag [#allocation6], %s147
          %s149 = sand.u32 %s27, 1
          %s150 = smul.addr %s149, 64
          %s151 = scalar_lea.vmem [#allocation5], %s150
          %s153 = ssub.s32 1024, 1024
          %154 = vsyncadd %s148, %s153
          %s155 = smul.addr %s17, 8
          %s156 = smul.addr %s155, 128
          %s157 = scalar_lea.hbm %s0, %s156
          %s158 = sshll.u32 %s151, 4
          %s159 = int_to_ptr.vmem [resolvable:$true] %s158
          %164 = dma.hbm_to_vmem [thread:$0]  %s157, 1024, %s159, %s148, 128, 128, 8
        $region28: #{tpu_custom_call.1} parent=23 // pred_fallthru
          _
      $region24: #{tpu_custom_call.1} parent=5 // pred_fallthru
        _
      %p165 = scmp.le.s32.totalorder 1, %s17
      %p166 = scmp.lt.s32.totalorder %s17, 3
      %p167 = pnand %p165, %p166
      %p168 = pneg %p167
      // Predicated region
      $region29: #{tpu_custom_call.1} parent=5 // pred_check
        _
      $region30: #{tpu_custom_call.1} parent=5 // pred_check_branch
        %170 = sbr.rel (%p167) target = $region32
      $region31: #{tpu_custom_call.1} parent=5 // pred_region
        %s171 = ssub.s32 %s17, 1
        %s172 = sand.u32 %s30, 1
        %s173 = scalar_lea.sflag [#allocation6], %s172
        %s174 = sand.u32 %s30, 1
        %s175 = smul.addr %s174, 64
        %s176 = scalar_lea.vmem [#allocation5], %s175
        // Predicated region
        $region33: #{tpu_custom_call.1} parent=31 // pred_check
          %p177 = pneg %p43
        $region34: #{tpu_custom_call.1} parent=31 // pred_check_branch
          %179 = sbr.rel (%p177) target = $region36
        $region35: #{tpu_custom_call.1} parent=31 // pred_region
          %180 = dma.done %s173, 1024
        $region36: #{tpu_custom_call.1} parent=31 // pred_fallthru
          _
        // Predicated region
        $region37: #{tpu_custom_call.1} parent=31 // pred_check
          %p181 = pneg %p64
        $region38: #{tpu_custom_call.1} parent=31 // pred_check_branch
          %183 = sbr.rel (%p181) target = $region40
        $region39: #{tpu_custom_call.1} parent=31 // pred_region
          %184 = dma.done [#allocation8], 16
        $region40: #{tpu_custom_call.1} parent=31 // pred_fallthru
          _
        %185 = sfence
        %s186 = sand.u32 %s30, 1
        %s187 = scalar_lea.sflag [#allocation6], %s186
        %s188 = sand.u32 %s30, 1
        %s189 = smul.addr %s188, 64
        %s190 = scalar_lea.vmem [#allocation5], %s189
        %p191 = pneg %p43
        %p192 = pneg %p40
        %p193 = pneg %p64
        %p194 = pneg %p61
        %p195 = pneg %p85
        %p196 = pneg %p82
        %p197 = pneg %p111
        %p198 = pneg %p108
        %s199 = sand.u32 %s98, 1
        %s200 = scalar_lea.sflag [#allocation7], %s199
        %s201 = sand.u32 %s98, 1
        %s202 = smul.addr %s201, 64
        %s203 = scalar_lea.vmem [#allocation10], %s202
        %v204 = vld [vmem:[%s176] sm:$0xff]
        %v205 = vld [vmem:[%s176 + $0x8] sm:$0xff]
        %v206 = vld [vmem:[%s176 + $0x10] sm:$0xff]
        %v207 = vld [vmem:[%s176 + $0x18] sm:$0xff]
        %v208 = vld [vmem:[%s176 + $0x20] sm:$0xff]
        %v209 = vld [vmem:[%s176 + $0x28] sm:$0xff]
        %v210 = vld [vmem:[%s176 + $0x30] sm:$0xff]
        %v211 = vld [vmem:[%s176 + $0x38] sm:$0xff]
        %vm212 = vcmask 130048
        %v213 = vsel %vm212, %v204, -inf
        %v214 = vsel %vm212, %v206, -inf
        %v215 = vsel %vm212, %v208, -inf
        %v216 = vmax.f32 %v213, %v215
        %v217 = vsel %vm212, %v210, -inf
        %v218 = vmax.f32 %v214, %v217
        %v219 = vmax.f32 %v216, %v218
        %v220 = vsel %vm212, %v205, -inf
        %v221 = vsel %vm212, %v207, -inf
        %v222 = vsel %vm212, %v209, -inf
        %v223 = vmax.f32 %v220, %v222
        %v224 = vsel %vm212, %v211, -inf
        %v225 = vmax.f32 %v221, %v224
        %v226 = vmax.f32 %v223, %v225
        %v227 = vsel %vm212, %v204, 0.0
        %v228 = vsel %vm212, %v206, 0.0
        %v229 = vadd.f32 %v227, %v228
        %v230 = vsel %vm212, %v208, 0.0
        %v231 = vadd.f32 %v229, %v230
        %v232 = vsel %vm212, %v210, 0.0
        %v233 = vadd.f32 %v231, %v232
        %v234 = vsel %vm212, %v205, 0.0
        %v235 = vsel %vm212, %v207, 0.0
        %v236 = vadd.f32 %v234, %v235
        %v237 = vsel %vm212, %v209, 0.0
        %v238 = vadd.f32 %v236, %v237
        %v239 = vsel %vm212, %v211, 0.0
        %v240 = vadd.f32 %v238, %v239
        %v241 = vmul.f32 %v233, 0.25
        %v242 = vmul.f32 %v240, 0.25
        %243 = vst [vmem:[#allocation2] sm:$0x7] 0.0
        %244 = vst [vmem:[#allocation2 + $0x18] sm:$0x7] 0.0
        %245 = vst [vmem:[#allocation2 + $0x13] sm:$0x7] 0.0
        %246 = vst [vmem:[#allocation2 + $0x2b] sm:$0x7] 0.0
        %vm247 = vcmask 1047704
        %248 = vst.msk [vmem:[#allocation2 + $0x3] sm:$0xff] %vm247, 0.0
        %249 = vst.msk [vmem:[#allocation2 + $0xb] sm:$0xff] %vm247, 0.0
        %250 = vst.msk [vmem:[#allocation2 + $0x1b] sm:$0xff] %vm247, 0.0
        %251 = vst.msk [vmem:[#allocation2 + $0x23] sm:$0xff] %vm247, 0.0
        %254 = vrot.lane.b32.xlu0 %v219, 3
        %v255 = vpop.permute.xlu0 %254
        %256 = vrot.lane.b32.xlu0 %v226, 3
        %v257 = vpop.permute.xlu0 %256
        %vm260 = vcmask 23552
        %v261 = vsel %vm260, 0.0, %v255
        %v262 = vsel %vm260, 0.0, %v257
        %vm263 = vcmask 154624
        %264 = vst.msk [vmem:[#allocation2 + $0x3] sm:$0xff] %vm263, %v261
        %265 = vst.msk [vmem:[#allocation2 + $0xb] sm:$0xff] %vm263, %v262
        %268 = vrot.lane.b32.xlu0 %v241, 3
        %v269 = vpop.permute.xlu0 %268
        %270 = vrot.lane.b32.xlu0 %v242, 3
        %v271 = vpop.permute.xlu0 %270
        %v274 = vsel %vm260, 0.0, %v269
        %v275 = vsel %vm260, 0.0, %v271
        %s276 = scalar_lea.vmem [#allocation2], 24
        %277 = vst.msk [vmem:[%s276 + $0x3] sm:$0xff] %vm263, %v274
        %278 = vst.msk [vmem:[%s276 + $0xb] sm:$0xff] %vm263, %v275
        %s279 = sld [smem:[#allocation4]]
        %v280 = vstv %s279
        %v281 = vld [vmem:[#allocation2] sm:$0xff]
        %s282 = sld [smem:[#allocation9]]
        %v283 = vstv %s282
        %v284 = vmul.f32 %v283, %v281
        %v285 = vadd.f32 %v280, %v284
        %s286 = sld [smem:[#allocation9 + $0x1]]
        %v287 = vstv %s286
        %v288 = vmul.f32 %v287, %v281
        %290 = vrot.lane.b32.xlu0 %v288, 127
        %v291 = vpop.permute.xlu0 %290
        %v293 = vadd.f32 %v285, %v291
        %s294 = sld [smem:[#allocation9 + $0x2]]
        %v295 = vstv %s294
        %v296 = vmul.f32 %v295, %v281
        %298 = vrot.lane.b32.xlu0 %v296, 126
        %v299 = vpop.permute.xlu0 %298
        %v301 = vadd.f32 %v293, %v299
        %s302 = sld [smem:[#allocation9 + $0x3]]
        %v303 = vstv %s302
        %v304 = vmul.f32 %v303, %v281
        %306 = vrot.lane.b32.xlu0 %v304, 125
        %v307 = vpop.permute.xlu0 %306
        %v309 = vadd.f32 %v301, %v307
        %s310 = sld [smem:[#allocation9 + $0x4]]
        %v311 = vstv %s310
        %v312 = vmul.f32 %v311, %v281
        %314 = vrot.lane.b32.xlu0 %v312, 124
        %v315 = vpop.permute.xlu0 %314
        %v317 = vadd.f32 %v309, %v315
        %s318 = sld [smem:[#allocation9 + $0x5]]
        %v319 = vstv %s318
        %v320 = vmul.f32 %v319, %v281
        %322 = vrot.lane.b32.xlu0 %v320, 123
        %v323 = vpop.permute.xlu0 %322
        %v325 = vadd.f32 %v317, %v323
        %s326 = sld [smem:[#allocation9 + $0x6]]
        %v327 = vstv %s326
        %v328 = vmul.f32 %v327, %v281
        %330 = vrot.lane.b32.xlu0 %v328, 122
        %v331 = vpop.permute.xlu0 %330
        %v333 = vadd.f32 %v325, %v331
        %v334 = vld [vmem:[#allocation2 + $0x1] sm:$0xff]
        %s335 = sld [smem:[#allocation9 + $0x7]]
        %v336 = vstv %s335
        %v337 = vmul.f32 %v336, %v334
        %v338 = vadd.f32 %v333, %v337
        %s339 = sld [smem:[#allocation9 + $0x8]]
        %v340 = vstv %s339
        %v341 = vmul.f32 %v340, %v334
        %343 = vrot.lane.b32.xlu0 %v341, 127
        %v344 = vpop.permute.xlu0 %343
        %v346 = vadd.f32 %v338, %v344
        %s347 = sld [smem:[#allocation9 + $0x9]]
        %v348 = vstv %s347
        %v349 = vmul.f32 %v348, %v334
        %351 = vrot.lane.b32.xlu0 %v349, 126
        %v352 = vpop.permute.xlu0 %351
        %v354 = vadd.f32 %v346, %v352
        %s355 = sld [smem:[#allocation9 + $0xa]]
        %v356 = vstv %s355
        %v357 = vmul.f32 %v356, %v334
        %359 = vrot.lane.b32.xlu0 %v357, 125
        %v360 = vpop.permute.xlu0 %359
        %v362 = vadd.f32 %v354, %v360
        %s363 = sld [smem:[#allocation9 + $0xb]]
        %v364 = vstv %s363
        %v365 = vmul.f32 %v364, %v334
        %367 = vrot.lane.b32.xlu0 %v365, 124
        %v368 = vpop.permute.xlu0 %367
        %v370 = vadd.f32 %v362, %v368
        %s371 = sld [smem:[#allocation9 + $0xc]]
        %v372 = vstv %s371
        %v373 = vmul.f32 %v372, %v334
        %375 = vrot.lane.b32.xlu0 %v373, 123
        %v376 = vpop.permute.xlu0 %375
        %v378 = vadd.f32 %v370, %v376
        %s379 = sld [smem:[#allocation9 + $0xd]]
        %v380 = vstv %s379
        %v381 = vmul.f32 %v380, %v334
        %383 = vrot.lane.b32.xlu0 %v381, 122
        %v384 = vpop.permute.xlu0 %383
        %v386 = vadd.f32 %v378, %v384
        %v387 = vld [vmem:[#allocation2 + $0x2] sm:$0xff]
        %s388 = sld [smem:[#allocation9 + $0xe]]
        %v389 = vstv %s388
        %v390 = vmul.f32 %v389, %v387
        %v391 = vadd.f32 %v386, %v390
        %s392 = sld [smem:[#allocation9 + $0xf]]
        %v393 = vstv %s392
        %v394 = vmul.f32 %v393, %v387
        %396 = vrot.lane.b32.xlu0 %v394, 127
        %v397 = vpop.permute.xlu0 %396
        %v399 = vadd.f32 %v391, %v397
        %s400 = sld [smem:[#allocation9 + $0x10]]
        %v401 = vstv %s400
        %v402 = vmul.f32 %v401, %v387
        %404 = vrot.lane.b32.xlu0 %v402, 126
        %v405 = vpop.permute.xlu0 %404
        %v407 = vadd.f32 %v399, %v405
        %s408 = sld [smem:[#allocation9 + $0x11]]
        %v409 = vstv %s408
        %v410 = vmul.f32 %v409, %v387
        %412 = vrot.lane.b32.xlu0 %v410, 125
        %v413 = vpop.permute.xlu0 %412
        %v415 = vadd.f32 %v407, %v413
        %s416 = sld [smem:[#allocation9 + $0x12]]
        %v417 = vstv %s416
        %v418 = vmul.f32 %v417, %v387
        %420 = vrot.lane.b32.xlu0 %v418, 124
        %v421 = vpop.permute.xlu0 %420
        %v423 = vadd.f32 %v415, %v421
        %s424 = sld [smem:[#allocation9 + $0x13]]
        %v425 = vstv %s424
        %v426 = vmul.f32 %v425, %v387
        %428 = vrot.lane.b32.xlu0 %v426, 123
        %v429 = vpop.permute.xlu0 %428
        %v431 = vadd.f32 %v423, %v429
        %s432 = sld [smem:[#allocation9 + $0x14]]
        %v433 = vstv %s432
        %v434 = vmul.f32 %v433, %v387
        %436 = vrot.lane.b32.xlu0 %v434, 122
        %v437 = vpop.permute.xlu0 %436
        %v439 = vadd.f32 %v431, %v437
        %v440 = vld [vmem:[#allocation2 + $0x3] sm:$0xff]
        %s441 = sld [smem:[#allocation9 + $0x15]]
        %v442 = vstv %s441
        %v443 = vmul.f32 %v442, %v440
        %v444 = vadd.f32 %v439, %v443
        %s445 = sld [smem:[#allocation9 + $0x16]]
        %v446 = vstv %s445
        %v447 = vmul.f32 %v446, %v440
        %449 = vrot.lane.b32.xlu0 %v447, 127
        %v450 = vpop.permute.xlu0 %449
        %v452 = vadd.f32 %v444, %v450
        %s453 = sld [smem:[#allocation9 + $0x17]]
        %v454 = vstv %s453
        %v455 = vmul.f32 %v454, %v440
        %457 = vrot.lane.b32.xlu0 %v455, 126
        %v458 = vpop.permute.xlu0 %457
        %v460 = vadd.f32 %v452, %v458
        %s461 = sld [smem:[#allocation9 + $0x18]]
        %v462 = vstv %s461
        %v463 = vmul.f32 %v462, %v440
        %465 = vrot.lane.b32.xlu0 %v463, 125
        %v466 = vpop.permute.xlu0 %465
        %v468 = vadd.f32 %v460, %v466
        %s469 = sld [smem:[#allocation9 + $0x19]]
        %v470 = vstv %s469
        %v471 = vmul.f32 %v470, %v440
        %473 = vrot.lane.b32.xlu0 %v471, 124
        %v474 = vpop.permute.xlu0 %473
        %v476 = vadd.f32 %v468, %v474
        %s477 = sld [smem:[#allocation9 + $0x1a]]
        %v478 = vstv %s477
        %v479 = vmul.f32 %v478, %v440
        %481 = vrot.lane.b32.xlu0 %v479, 123
        %v482 = vpop.permute.xlu0 %481
        %v484 = vadd.f32 %v476, %v482
        %s485 = sld [smem:[#allocation9 + $0x1b]]
        %v486 = vstv %s485
        %v487 = vmul.f32 %v486, %v440
        %489 = vrot.lane.b32.xlu0 %v487, 122
        %v490 = vpop.permute.xlu0 %489
        %v492 = vadd.f32 %v484, %v490
        %v493 = vld [vmem:[#allocation2 + $0x4] sm:$0xff]
        %s494 = sld [smem:[#allocation9 + $0x1c]]
        %v495 = vstv %s494
        %v496 = vmul.f32 %v495, %v493
        %v497 = vadd.f32 %v492, %v496
        %s498 = sld [smem:[#allocation9 + $0x1d]]
        %v499 = vstv %s498
        %v500 = vmul.f32 %v499, %v493
        %502 = vrot.lane.b32.xlu0 %v500, 127
        %v503 = vpop.permute.xlu0 %502
        %v505 = vadd.f32 %v497, %v503
        %s506 = sld [smem:[#allocation9 + $0x1e]]
        %v507 = vstv %s506
        %v508 = vmul.f32 %v507, %v493
        %510 = vrot.lane.b32.xlu0 %v508, 126
        %v511 = vpop.permute.xlu0 %510
        %v513 = vadd.f32 %v505, %v511
        %s514 = sld [smem:[#allocation9 + $0x1f]]
        %v515 = vstv %s514
        %v516 = vmul.f32 %v515, %v493
        %518 = vrot.lane.b32.xlu0 %v516, 125
        %v519 = vpop.permute.xlu0 %518
        %v521 = vadd.f32 %v513, %v519
        %s522 = sld [smem:[#allocation9 + $0x20]]
        %v523 = vstv %s522
        %v524 = vmul.f32 %v523, %v493
        %526 = vrot.lane.b32.xlu0 %v524, 124
        %v527 = vpop.permute.xlu0 %526
        %v529 = vadd.f32 %v521, %v527
        %s530 = sld [smem:[#allocation9 + $0x21]]
        %v531 = vstv %s530
        %v532 = vmul.f32 %v531, %v493
        %534 = vrot.lane.b32.xlu0 %v532, 123
        %v535 = vpop.permute.xlu0 %534
        %v537 = vadd.f32 %v529, %v535
        %s538 = sld [smem:[#allocation9 + $0x22]]
        %v539 = vstv %s538
        %v540 = vmul.f32 %v539, %v493
        %542 = vrot.lane.b32.xlu0 %v540, 122
        %v543 = vpop.permute.xlu0 %542
        %v545 = vadd.f32 %v537, %v543
        %v546 = vld [vmem:[#allocation2 + $0x5] sm:$0xff]
        %s547 = sld [smem:[#allocation9 + $0x23]]
        %v548 = vstv %s547
        %v549 = vmul.f32 %v548, %v546
        %v550 = vadd.f32 %v545, %v549
        %s551 = sld [smem:[#allocation9 + $0x24]]
        %v552 = vstv %s551
        %v553 = vmul.f32 %v552, %v546
        %555 = vrot.lane.b32.xlu0 %v553, 127
        %v556 = vpop.permute.xlu0 %555
        %v558 = vadd.f32 %v550, %v556
        %s559 = sld [smem:[#allocation9 + $0x25]]
        %v560 = vstv %s559
        %v561 = vmul.f32 %v560, %v546
        %563 = vrot.lane.b32.xlu0 %v561, 126
        %v564 = vpop.permute.xlu0 %563
        %v566 = vadd.f32 %v558, %v564
        %s567 = sld [smem:[#allocation9 + $0x26]]
        %v568 = vstv %s567
        %v569 = vmul.f32 %v568, %v546
        %571 = vrot.lane.b32.xlu0 %v569, 125
        %v572 = vpop.permute.xlu0 %571
        %v574 = vadd.f32 %v566, %v572
        %s575 = sld [smem:[#allocation9 + $0x27]]
        %v576 = vstv %s575
        %v577 = vmul.f32 %v576, %v546
        %579 = vrot.lane.b32.xlu0 %v577, 124
        %v580 = vpop.permute.xlu0 %579
        %v582 = vadd.f32 %v574, %v580
        %s583 = sld [smem:[#allocation9 + $0x28]]
        %v584 = vstv %s583
        %v585 = vmul.f32 %v584, %v546
        %587 = vrot.lane.b32.xlu0 %v585, 123
        %v588 = vpop.permute.xlu0 %587
        %v590 = vadd.f32 %v582, %v588
        %s591 = sld [smem:[#allocation9 + $0x29]]
        %v592 = vstv %s591
        %v593 = vmul.f32 %v592, %v546
        %595 = vrot.lane.b32.xlu0 %v593, 122
        %v596 = vpop.permute.xlu0 %595
        %v598 = vadd.f32 %v590, %v596
        %v599 = vld [vmem:[#allocation2 + $0x6] sm:$0xff]
        %s600 = sld [smem:[#allocation9 + $0x2a]]
        %v601 = vstv %s600
        %v602 = vmul.f32 %v601, %v599
        %v603 = vadd.f32 %v598, %v602
        %s604 = sld [smem:[#allocation9 + $0x2b]]
        %v605 = vstv %s604
        %v606 = vmul.f32 %v605, %v599
        %608 = vrot.lane.b32.xlu0 %v606, 127
        %v609 = vpop.permute.xlu0 %608
        %v611 = vadd.f32 %v603, %v609
        %s612 = sld [smem:[#allocation9 + $0x2c]]
        %v613 = vstv %s612
        %v614 = vmul.f32 %v613, %v599
        %616 = vrot.lane.b32.xlu0 %v614, 126
        %v617 = vpop.permute.xlu0 %616
        %v619 = vadd.f32 %v611, %v617
        %s620 = sld [smem:[#allocation9 + $0x2d]]
        %v621 = vstv %s620
        %v622 = vmul.f32 %v621, %v599
        %624 = vrot.lane.b32.xlu0 %v622, 125
        %v625 = vpop.permute.xlu0 %624
        %v627 = vadd.f32 %v619, %v625
        %s628 = sld [smem:[#allocation9 + $0x2e]]
        %v629 = vstv %s628
        %v630 = vmul.f32 %v629, %v599
        %632 = vrot.lane.b32.xlu0 %v630, 124
        %v633 = vpop.permute.xlu0 %632
        %v635 = vadd.f32 %v627, %v633
        %s636 = sld [smem:[#allocation9 + $0x2f]]
        %v637 = vstv %s636
        %v638 = vmul.f32 %v637, %v599
        %640 = vrot.lane.b32.xlu0 %v638, 123
        %v641 = vpop.permute.xlu0 %640
        %v643 = vadd.f32 %v635, %v641
        %s644 = sld [smem:[#allocation9 + $0x30]]
        %v645 = vstv %s644
        %v646 = vmul.f32 %v645, %v599
        %648 = vrot.lane.b32.xlu0 %v646, 122
        %v649 = vpop.permute.xlu0 %648
        %v651 = vadd.f32 %v643, %v649
        %v652 = vld [vmem:[%s276] sm:$0xff]
        %s653 = sld [smem:[#allocation9 + $0x31]]
        %v654 = vstv %s653
        %v655 = vmul.f32 %v654, %v652
        %v656 = vadd.f32 %v651, %v655
        %s657 = sld [smem:[#allocation9 + $0x32]]
        %v658 = vstv %s657
        %v659 = vmul.f32 %v658, %v652
        %661 = vrot.lane.b32.xlu0 %v659, 127
        %v662 = vpop.permute.xlu0 %661
        %v664 = vadd.f32 %v656, %v662
        %s665 = sld [smem:[#allocation9 + $0x33]]
        %v666 = vstv %s665
        %v667 = vmul.f32 %v666, %v652
        %669 = vrot.lane.b32.xlu0 %v667, 126
        %v670 = vpop.permute.xlu0 %669
        %v672 = vadd.f32 %v664, %v670
        %s673 = sld [smem:[#allocation9 + $0x34]]
        %v674 = vstv %s673
        %v675 = vmul.f32 %v674, %v652
        %677 = vrot.lane.b32.xlu0 %v675, 125
        %v678 = vpop.permute.xlu0 %677
        %v680 = vadd.f32 %v672, %v678
        %s681 = sld [smem:[#allocation9 + $0x35]]
        %v682 = vstv %s681
        %v683 = vmul.f32 %v682, %v652
        %685 = vrot.lane.b32.xlu0 %v683, 124
        %v686 = vpop.permute.xlu0 %685
        %v688 = vadd.f32 %v680, %v686
        %s689 = sld [smem:[#allocation9 + $0x36]]
        %v690 = vstv %s689
        %v691 = vmul.f32 %v690, %v652
        %693 = vrot.lane.b32.xlu0 %v691, 123
        %v694 = vpop.permute.xlu0 %693
        %v696 = vadd.f32 %v688, %v694
        %s697 = sld [smem:[#allocation9 + $0x37]]
        %v698 = vstv %s697
        %v699 = vmul.f32 %v698, %v652
        %701 = vrot.lane.b32.xlu0 %v699, 122
        %v702 = vpop.permute.xlu0 %701
        %v704 = vadd.f32 %v696, %v702
        %v705 = vld [vmem:[%s276 + $0x1] sm:$0xff]
        %s706 = sld [smem:[#allocation9 + $0x38]]
        %v707 = vstv %s706
        %v708 = vmul.f32 %v707, %v705
        %v709 = vadd.f32 %v704, %v708
        %s710 = sld [smem:[#allocation9 + $0x39]]
        %v711 = vstv %s710
        %v712 = vmul.f32 %v711, %v705
        %714 = vrot.lane.b32.xlu0 %v712, 127
        %v715 = vpop.permute.xlu0 %714
        %v717 = vadd.f32 %v709, %v715
        %s718 = sld [smem:[#allocation9 + $0x3a]]
        %v719 = vstv %s718
        %v720 = vmul.f32 %v719, %v705
        %722 = vrot.lane.b32.xlu0 %v720, 126
        %v723 = vpop.permute.xlu0 %722
        %v725 = vadd.f32 %v717, %v723
        %s726 = sld [smem:[#allocation9 + $0x3b]]
        %v727 = vstv %s726
        %v728 = vmul.f32 %v727, %v705
        %730 = vrot.lane.b32.xlu0 %v728, 125
        %v731 = vpop.permute.xlu0 %730
        %v733 = vadd.f32 %v725, %v731
        %s734 = sld [smem:[#allocation9 + $0x3c]]
        %v735 = vstv %s734
        %v736 = vmul.f32 %v735, %v705
        %738 = vrot.lane.b32.xlu0 %v736, 124
        %v739 = vpop.permute.xlu0 %738
        %v741 = vadd.f32 %v733, %v739
        %s742 = sld [smem:[#allocation9 + $0x3d]]
        %v743 = vstv %s742
        %v744 = vmul.f32 %v743, %v705
        %746 = vrot.lane.b32.xlu0 %v744, 123
        %v747 = vpop.permute.xlu0 %746
        %v749 = vadd.f32 %v741, %v747
        %s750 = sld [smem:[#allocation9 + $0x3e]]
        %v751 = vstv %s750
        %v752 = vmul.f32 %v751, %v705
        %754 = vrot.lane.b32.xlu0 %v752, 122
        %v755 = vpop.permute.xlu0 %754
        %v757 = vadd.f32 %v749, %v755
        %v758 = vld [vmem:[%s276 + $0x2] sm:$0xff]
        %s759 = sld [smem:[#allocation9 + $0x3f]]
        %v760 = vstv %s759
        %v761 = vmul.f32 %v760, %v758
        %v762 = vadd.f32 %v757, %v761
        %s763 = sld [smem:[#allocation9 + $0x40]]
        %v764 = vstv %s763
        %v765 = vmul.f32 %v764, %v758
        %767 = vrot.lane.b32.xlu0 %v765, 127
        %v768 = vpop.permute.xlu0 %767
        %v770 = vadd.f32 %v762, %v768
        %s771 = sld [smem:[#allocation9 + $0x41]]
        %v772 = vstv %s771
        %v773 = vmul.f32 %v772, %v758
        %775 = vrot.lane.b32.xlu0 %v773, 126
        %v776 = vpop.permute.xlu0 %775
        %v778 = vadd.f32 %v770, %v776
        %s779 = sld [smem:[#allocation9 + $0x42]]
        %v780 = vstv %s779
        %v781 = vmul.f32 %v780, %v758
        %783 = vrot.lane.b32.xlu0 %v781, 125
        %v784 = vpop.permute.xlu0 %783
        %v786 = vadd.f32 %v778, %v784
        %s787 = sld [smem:[#allocation9 + $0x43]]
        %v788 = vstv %s787
        %v789 = vmul.f32 %v788, %v758
        %791 = vrot.lane.b32.xlu0 %v789, 124
        %v792 = vpop.permute.xlu0 %791
        %v794 = vadd.f32 %v786, %v792
        %s795 = sld [smem:[#allocation9 + $0x44]]
        %v796 = vstv %s795
        %v797 = vmul.f32 %v796, %v758
        %799 = vrot.lane.b32.xlu0 %v797, 123
        %v800 = vpop.permute.xlu0 %799
        %v802 = vadd.f32 %v794, %v800
        %s803 = sld [smem:[#allocation9 + $0x45]]
        %v804 = vstv %s803
        %v805 = vmul.f32 %v804, %v758
        %807 = vrot.lane.b32.xlu0 %v805, 122
        %v808 = vpop.permute.xlu0 %807
        %v810 = vadd.f32 %v802, %v808
        %v811 = vld [vmem:[%s276 + $0x3] sm:$0xff]
        %s812 = sld [smem:[#allocation9 + $0x46]]
        %v813 = vstv %s812
        %v814 = vmul.f32 %v813, %v811
        %v815 = vadd.f32 %v810, %v814
        %s816 = sld [smem:[#allocation9 + $0x47]]
        %v817 = vstv %s816
        %v818 = vmul.f32 %v817, %v811
        %820 = vrot.lane.b32.xlu0 %v818, 127
        %v821 = vpop.permute.xlu0 %820
        %v823 = vadd.f32 %v815, %v821
        %s824 = sld [smem:[#allocation9 + $0x48]]
        %v825 = vstv %s824
        %v826 = vmul.f32 %v825, %v811
        %828 = vrot.lane.b32.xlu0 %v826, 126
        %v829 = vpop.permute.xlu0 %828
        %v831 = vadd.f32 %v823, %v829
        %s832 = sld [smem:[#allocation9 + $0x49]]
        %v833 = vstv %s832
        %v834 = vmul.f32 %v833, %v811
        %836 = vrot.lane.b32.xlu0 %v834, 125
        %v837 = vpop.permute.xlu0 %836
        %v839 = vadd.f32 %v831, %v837
        %s840 = sld [smem:[#allocation9 + $0x4a]]
        %v841 = vstv %s840
        %v842 = vmul.f32 %v841, %v811
        %844 = vrot.lane.b32.xlu0 %v842, 124
        %v845 = vpop.permute.xlu0 %844
        %v847 = vadd.f32 %v839, %v845
        %s848 = sld [smem:[#allocation9 + $0x4b]]
        %v849 = vstv %s848
        %v850 = vmul.f32 %v849, %v811
        %852 = vrot.lane.b32.xlu0 %v850, 123
        %v853 = vpop.permute.xlu0 %852
        %v855 = vadd.f32 %v847, %v853
        %s856 = sld [smem:[#allocation9 + $0x4c]]
        %v857 = vstv %s856
        %v858 = vmul.f32 %v857, %v811
        %860 = vrot.lane.b32.xlu0 %v858, 122
        %v861 = vpop.permute.xlu0 %860
        %v863 = vadd.f32 %v855, %v861
        %v864 = vld [vmem:[%s276 + $0x4] sm:$0xff]
        %s865 = sld [smem:[#allocation9 + $0x4d]]
        %v866 = vstv %s865
        %v867 = vmul.f32 %v866, %v864
        %v868 = vadd.f32 %v863, %v867
        %s869 = sld [smem:[#allocation9 + $0x4e]]
        %v870 = vstv %s869
        %v871 = vmul.f32 %v870, %v864
        %873 = vrot.lane.b32.xlu0 %v871, 127
        %v874 = vpop.permute.xlu0 %873
        %v876 = vadd.f32 %v868, %v874
        %s877 = sld [smem:[#allocation9 + $0x4f]]
        %v878 = vstv %s877
        %v879 = vmul.f32 %v878, %v864
        %881 = vrot.lane.b32.xlu0 %v879, 126
        %v882 = vpop.permute.xlu0 %881
        %v884 = vadd.f32 %v876, %v882
        %s885 = sld [smem:[#allocation9 + $0x50]]
        %v886 = vstv %s885
        %v887 = vmul.f32 %v886, %v864
        %889 = vrot.lane.b32.xlu0 %v887, 125
        %v890 = vpop.permute.xlu0 %889
        %v892 = vadd.f32 %v884, %v890
        %s893 = sld [smem:[#allocation9 + $0x51]]
        %v894 = vstv %s893
        %v895 = vmul.f32 %v894, %v864
        %897 = vrot.lane.b32.xlu0 %v895, 124
        %v898 = vpop.permute.xlu0 %897
        %v900 = vadd.f32 %v892, %v898
        %s901 = sld [smem:[#allocation9 + $0x52]]
        %v902 = vstv %s901
        %v903 = vmul.f32 %v902, %v864
        %905 = vrot.lane.b32.xlu0 %v903, 123
        %v906 = vpop.permute.xlu0 %905
        %v908 = vadd.f32 %v900, %v906
        %s909 = sld [smem:[#allocation9 + $0x53]]
        %v910 = vstv %s909
        %v911 = vmul.f32 %v910, %v864
        %913 = vrot.lane.b32.xlu0 %v911, 122
        %v914 = vpop.permute.xlu0 %913
        %v916 = vadd.f32 %v908, %v914
        %v917 = vld [vmem:[%s276 + $0x5] sm:$0xff]
        %s918 = sld [smem:[#allocation9 + $0x54]]
        %v919 = vstv %s918
        %v920 = vmul.f32 %v919, %v917
        %v921 = vadd.f32 %v916, %v920
        %s922 = sld [smem:[#allocation9 + $0x55]]
        %v923 = vstv %s922
        %v924 = vmul.f32 %v923, %v917
        %926 = vrot.lane.b32.xlu0 %v924, 127
        %v927 = vpop.permute.xlu0 %926
        %v929 = vadd.f32 %v921, %v927
        %s930 = sld [smem:[#allocation9 + $0x56]]
        %v931 = vstv %s930
        %v932 = vmul.f32 %v931, %v917
        %934 = vrot.lane.b32.xlu0 %v932, 126
        %v935 = vpop.permute.xlu0 %934
        %v937 = vadd.f32 %v929, %v935
        %s938 = sld [smem:[#allocation9 + $0x57]]
        %v939 = vstv %s938
        %v940 = vmul.f32 %v939, %v917
        %942 = vrot.lane.b32.xlu0 %v940, 125
        %v943 = vpop.permute.xlu0 %942
        %v945 = vadd.f32 %v937, %v943
        %s946 = sld [smem:[#allocation9 + $0x58]]
        %v947 = vstv %s946
        %v948 = vmul.f32 %v947, %v917
        %950 = vrot.lane.b32.xlu0 %v948, 124
        %v951 = vpop.permute.xlu0 %950
        %v953 = vadd.f32 %v945, %v951
        %s954 = sld [smem:[#allocation9 + $0x59]]
        %v955 = vstv %s954
        %v956 = vmul.f32 %v955, %v917
        %958 = vrot.lane.b32.xlu0 %v956, 123
        %v959 = vpop.permute.xlu0 %958
        %v961 = vadd.f32 %v953, %v959
        %s962 = sld [smem:[#allocation9 + $0x5a]]
        %v963 = vstv %s962
        %v964 = vmul.f32 %v963, %v917
        %966 = vrot.lane.b32.xlu0 %v964, 122
        %v967 = vpop.permute.xlu0 %966
        %v969 = vadd.f32 %v961, %v967
        %v970 = vld [vmem:[%s276 + $0x6] sm:$0xff]
        %s971 = sld [smem:[#allocation9 + $0x5b]]
        %v972 = vstv %s971
        %v973 = vmul.f32 %v972, %v970
        %v974 = vadd.f32 %v969, %v973
        %s975 = sld [smem:[#allocation9 + $0x5c]]
        %v976 = vstv %s975
        %v977 = vmul.f32 %v976, %v970
        %979 = vrot.lane.b32.xlu0 %v977, 127
        %v980 = vpop.permute.xlu0 %979
        %v982 = vadd.f32 %v974, %v980
        %s983 = sld [smem:[#allocation9 + $0x5d]]
        %v984 = vstv %s983
        %v985 = vmul.f32 %v984, %v970
        %987 = vrot.lane.b32.xlu0 %v985, 126
        %v988 = vpop.permute.xlu0 %987
        %v990 = vadd.f32 %v982, %v988
        %s991 = sld [smem:[#allocation9 + $0x5e]]
        %v992 = vstv %s991
        %v993 = vmul.f32 %v992, %v970
        %995 = vrot.lane.b32.xlu0 %v993, 125
        %v996 = vpop.permute.xlu0 %995
        %v998 = vadd.f32 %v990, %v996
        %s999 = sld [smem:[#allocation9 + $0x5f]]
        %v1000 = vstv %s999
        %v1001 = vmul.f32 %v1000, %v970
        %1003 = vrot.lane.b32.xlu0 %v1001, 124
        %v1004 = vpop.permute.xlu0 %1003
        %v1006 = vadd.f32 %v998, %v1004
        %s1007 = sld [smem:[#allocation9 + $0x60]]
        %v1008 = vstv %s1007
        %v1009 = vmul.f32 %v1008, %v970
        %1011 = vrot.lane.b32.xlu0 %v1009, 123
        %v1012 = vpop.permute.xlu0 %1011
        %v1014 = vadd.f32 %v1006, %v1012
        %s1015 = sld [smem:[#allocation9 + $0x61]]
        %v1016 = vstv %s1015
        %v1017 = vmul.f32 %v1016, %v970
        %1019 = vrot.lane.b32.xlu0 %v1017, 122
        %v1020 = vpop.permute.xlu0 %1019
        %v1022 = vadd.f32 %v1014, %v1020
        %v1023 = vxor.u32 %v1022, 2147483648
        %v1024 = vmul.f32 %v1023, 1.442695
        %v1025 = vpow.pop %v1024
        %v1026 = vadd.f32 %v1025, 1.0
        %v1027 = vrcp.pop %v1026
        %v1028 = vmul.f32 1.0, %v1027
        %1029 = vst.msk [vmem:[#allocation3] sm:$0xff] %vm212, %v1028
        %v1030 = vld [vmem:[#allocation2 + $0x8] sm:$0xff]
        %s1031 = sld [smem:[#allocation9]]
        %v1032 = vstv %s1031
        %v1033 = vmul.f32 %v1032, %v1030
        %v1034 = vadd.f32 %v280, %v1033
        %s1035 = sld [smem:[#allocation9 + $0x1]]
        %v1036 = vstv %s1035
        %v1037 = vmul.f32 %v1036, %v1030
        %1039 = vrot.lane.b32.xlu0 %v1037, 127
        %v1040 = vpop.permute.xlu0 %1039
        %v1042 = vadd.f32 %v1034, %v1040
        %s1043 = sld [smem:[#allocation9 + $0x2]]
        %v1044 = vstv %s1043
        %v1045 = vmul.f32 %v1044, %v1030
        %1047 = vrot.lane.b32.xlu0 %v1045, 126
        %v1048 = vpop.permute.xlu0 %1047
        %v1050 = vadd.f32 %v1042, %v1048
        %s1051 = sld [smem:[#allocation9 + $0x3]]
        %v1052 = vstv %s1051
        %v1053 = vmul.f32 %v1052, %v1030
        %1055 = vrot.lane.b32.xlu0 %v1053, 125
        %v1056 = vpop.permute.xlu0 %1055
        %v1058 = vadd.f32 %v1050, %v1056
        %s1059 = sld [smem:[#allocation9 + $0x4]]
        %v1060 = vstv %s1059
        %v1061 = vmul.f32 %v1060, %v1030
        %1063 = vrot.lane.b32.xlu0 %v1061, 124
        %v1064 = vpop.permute.xlu0 %1063
        %v1066 = vadd.f32 %v1058, %v1064
        %s1067 = sld [smem:[#allocation9 + $0x5]]
        %v1068 = vstv %s1067
        %v1069 = vmul.f32 %v1068, %v1030
        %1071 = vrot.lane.b32.xlu0 %v1069, 123
        %v1072 = vpop.permute.xlu0 %1071
        %v1074 = vadd.f32 %v1066, %v1072
        %s1075 = sld [smem:[#allocation9 + $0x6]]
        %v1076 = vstv %s1075
        %v1077 = vmul.f32 %v1076, %v1030
        %1079 = vrot.lane.b32.xlu0 %v1077, 122
        %v1080 = vpop.permute.xlu0 %1079
        %v1082 = vadd.f32 %v1074, %v1080
        %v1083 = vld [vmem:[#allocation2 + $0x9] sm:$0xff]
        %s1084 = sld [smem:[#allocation9 + $0x7]]
        %v1085 = vstv %s1084
        %v1086 = vmul.f32 %v1085, %v1083
        %v1087 = vadd.f32 %v1082, %v1086
        %s1088 = sld [smem:[#allocation9 + $0x8]]
        %v1089 = vstv %s1088
        %v1090 = vmul.f32 %v1089, %v1083
        %1092 = vrot.lane.b32.xlu0 %v1090, 127
        %v1093 = vpop.permute.xlu0 %1092
        %v1095 = vadd.f32 %v1087, %v1093
        %s1096 = sld [smem:[#allocation9 + $0x9]]
        %v1097 = vstv %s1096
        %v1098 = vmul.f32 %v1097, %v1083
        %1100 = vrot.lane.b32.xlu0 %v1098, 126
        %v1101 = vpop.permute.xlu0 %1100
        %v1103 = vadd.f32 %v1095, %v1101
        %s1104 = sld [smem:[#allocation9 + $0xa]]
        %v1105 = vstv %s1104
        %v1106 = vmul.f32 %v1105, %v1083
        %1108 = vrot.lane.b32.xlu0 %v1106, 125
        %v1109 = vpop.permute.xlu0 %1108
        %v1111 = vadd.f32 %v1103, %v1109
        %s1112 = sld [smem:[#allocation9 + $0xb]]
        %v1113 = vstv %s1112
        %v1114 = vmul.f32 %v1113, %v1083
        %1116 = vrot.lane.b32.xlu0 %v1114, 124
        %v1117 = vpop.permute.xlu0 %1116
        %v1119 = vadd.f32 %v1111, %v1117
        %s1120 = sld [smem:[#allocation9 + $0xc]]
        %v1121 = vstv %s1120
        %v1122 = vmul.f32 %v1121, %v1083
        %1124 = vrot.lane.b32.xlu0 %v1122, 123
        %v1125 = vpop.permute.xlu0 %1124
        %v1127 = vadd.f32 %v1119, %v1125
        %s1128 = sld [smem:[#allocation9 + $0xd]]
        %v1129 = vstv %s1128
        %v1130 = vmul.f32 %v1129, %v1083
        %1132 = vrot.lane.b32.xlu0 %v1130, 122
        %v1133 = vpop.permute.xlu0 %1132
        %v1135 = vadd.f32 %v1127, %v1133
        %v1136 = vld [vmem:[#allocation2 + $0xa] sm:$0xff]
        %s1137 = sld [smem:[#allocation9 + $0xe]]
        %v1138 = vstv %s1137
        %v1139 = vmul.f32 %v1138, %v1136
        %v1140 = vadd.f32 %v1135, %v1139
        %s1141 = sld [smem:[#allocation9 + $0xf]]
        %v1142 = vstv %s1141
        %v1143 = vmul.f32 %v1142, %v1136
        %1145 = vrot.lane.b32.xlu0 %v1143, 127
        %v1146 = vpop.permute.xlu0 %1145
        %v1148 = vadd.f32 %v1140, %v1146
        %s1149 = sld [smem:[#allocation9 + $0x10]]
        %v1150 = vstv %s1149
        %v1151 = vmul.f32 %v1150, %v1136
        %1153 = vrot.lane.b32.xlu0 %v1151, 126
        %v1154 = vpop.permute.xlu0 %1153
        %v1156 = vadd.f32 %v1148, %v1154
        %s1157 = sld [smem:[#allocation9 + $0x11]]
        %v1158 = vstv %s1157
        %v1159 = vmul.f32 %v1158, %v1136
        %1161 = vrot.lane.b32.xlu0 %v1159, 125
        %v1162 = vpop.permute.xlu0 %1161
        %v1164 = vadd.f32 %v1156, %v1162
        %s1165 = sld [smem:[#allocation9 + $0x12]]
        %v1166 = vstv %s1165
        %v1167 = vmul.f32 %v1166, %v1136
        %1169 = vrot.lane.b32.xlu0 %v1167, 124
        %v1170 = vpop.permute.xlu0 %1169
        %v1172 = vadd.f32 %v1164, %v1170
        %s1173 = sld [smem:[#allocation9 + $0x13]]
        %v1174 = vstv %s1173
        %v1175 = vmul.f32 %v1174, %v1136
        %1177 = vrot.lane.b32.xlu0 %v1175, 123
        %v1178 = vpop.permute.xlu0 %1177
        %v1180 = vadd.f32 %v1172, %v1178
        %s1181 = sld [smem:[#allocation9 + $0x14]]
        %v1182 = vstv %s1181
        %v1183 = vmul.f32 %v1182, %v1136
        %1185 = vrot.lane.b32.xlu0 %v1183, 122
        %v1186 = vpop.permute.xlu0 %1185
        %v1188 = vadd.f32 %v1180, %v1186
        %v1189 = vld [vmem:[#allocation2 + $0xb] sm:$0xff]
        %s1190 = sld [smem:[#allocation9 + $0x15]]
        %v1191 = vstv %s1190
        %v1192 = vmul.f32 %v1191, %v1189
        %v1193 = vadd.f32 %v1188, %v1192
        %s1194 = sld [smem:[#allocation9 + $0x16]]
        %v1195 = vstv %s1194
        %v1196 = vmul.f32 %v1195, %v1189
        %1198 = vrot.lane.b32.xlu0 %v1196, 127
        %v1199 = vpop.permute.xlu0 %1198
        %v1201 = vadd.f32 %v1193, %v1199
        %s1202 = sld [smem:[#allocation9 + $0x17]]
        %v1203 = vstv %s1202
        %v1204 = vmul.f32 %v1203, %v1189
        %1206 = vrot.lane.b32.xlu0 %v1204, 126
        %v1207 = vpop.permute.xlu0 %1206
        %v1209 = vadd.f32 %v1201, %v1207
        %s1210 = sld [smem:[#allocation9 + $0x18]]
        %v1211 = vstv %s1210
        %v1212 = vmul.f32 %v1211, %v1189
        %1214 = vrot.lane.b32.xlu0 %v1212, 125
        %v1215 = vpop.permute.xlu0 %1214
        %v1217 = vadd.f32 %v1209, %v1215
        %s1218 = sld [smem:[#allocation9 + $0x19]]
        %v1219 = vstv %s1218
        %v1220 = vmul.f32 %v1219, %v1189
        %1222 = vrot.lane.b32.xlu0 %v1220, 124
        %v1223 = vpop.permute.xlu0 %1222
        %v1225 = vadd.f32 %v1217, %v1223
        %s1226 = sld [smem:[#allocation9 + $0x1a]]
        %v1227 = vstv %s1226
        %v1228 = vmul.f32 %v1227, %v1189
        %1230 = vrot.lane.b32.xlu0 %v1228, 123
        %v1231 = vpop.permute.xlu0 %1230
        %v1233 = vadd.f32 %v1225, %v1231
        %s1234 = sld [smem:[#allocation9 + $0x1b]]
        %v1235 = vstv %s1234
        %v1236 = vmul.f32 %v1235, %v1189
        %1238 = vrot.lane.b32.xlu0 %v1236, 122
        %v1239 = vpop.permute.xlu0 %1238
        %v1241 = vadd.f32 %v1233, %v1239
        %v1242 = vld [vmem:[#allocation2 + $0xc] sm:$0xff]
        %s1243 = sld [smem:[#allocation9 + $0x1c]]
        %v1244 = vstv %s1243
        %v1245 = vmul.f32 %v1244, %v1242
        %v1246 = vadd.f32 %v1241, %v1245
        %s1247 = sld [smem:[#allocation9 + $0x1d]]
        %v1248 = vstv %s1247
        %v1249 = vmul.f32 %v1248, %v1242
        %1251 = vrot.lane.b32.xlu0 %v1249, 127
        %v1252 = vpop.permute.xlu0 %1251
        %v1254 = vadd.f32 %v1246, %v1252
        %s1255 = sld [smem:[#allocation9 + $0x1e]]
        %v1256 = vstv %s1255
        %v1257 = vmul.f32 %v1256, %v1242
        %1259 = vrot.lane.b32.xlu0 %v1257, 126
        %v1260 = vpop.permute.xlu0 %1259
        %v1262 = vadd.f32 %v1254, %v1260
        %s1263 = sld [smem:[#allocation9 + $0x1f]]
        %v1264 = vstv %s1263
        %v1265 = vmul.f32 %v1264, %v1242
        %1267 = vrot.lane.b32.xlu0 %v1265, 125
        %v1268 = vpop.permute.xlu0 %1267
        %v1270 = vadd.f32 %v1262, %v1268
        %s1271 = sld [smem:[#allocation9 + $0x20]]
        %v1272 = vstv %s1271
        %v1273 = vmul.f32 %v1272, %v1242
        %1275 = vrot.lane.b32.xlu0 %v1273, 124
        %v1276 = vpop.permute.xlu0 %1275
        %v1278 = vadd.f32 %v1270, %v1276
        %s1279 = sld [smem:[#allocation9 + $0x21]]
        %v1280 = vstv %s1279
        %v1281 = vmul.f32 %v1280, %v1242
        %1283 = vrot.lane.b32.xlu0 %v1281, 123
        %v1284 = vpop.permute.xlu0 %1283
        %v1286 = vadd.f32 %v1278, %v1284
        %s1287 = sld [smem:[#allocation9 + $0x22]]
        %v1288 = vstv %s1287
        %v1289 = vmul.f32 %v1288, %v1242
        %1291 = vrot.lane.b32.xlu0 %v1289, 122
        %v1292 = vpop.permute.xlu0 %1291
        %v1294 = vadd.f32 %v1286, %v1292
        %v1295 = vld [vmem:[#allocation2 + $0xd] sm:$0xff]
        %s1296 = sld [smem:[#allocation9 + $0x23]]
        %v1297 = vstv %s1296
        %v1298 = vmul.f32 %v1297, %v1295
        %v1299 = vadd.f32 %v1294, %v1298
        %s1300 = sld [smem:[#allocation9 + $0x24]]
        %v1301 = vstv %s1300
        %v1302 = vmul.f32 %v1301, %v1295
        %1304 = vrot.lane.b32.xlu0 %v1302, 127
        %v1305 = vpop.permute.xlu0 %1304
        %v1307 = vadd.f32 %v1299, %v1305
        %s1308 = sld [smem:[#allocation9 + $0x25]]
        %v1309 = vstv %s1308
        %v1310 = vmul.f32 %v1309, %v1295
        %1312 = vrot.lane.b32.xlu0 %v1310, 126
        %v1313 = vpop.permute.xlu0 %1312
        %v1315 = vadd.f32 %v1307, %v1313
        %s1316 = sld [smem:[#allocation9 + $0x26]]
        %v1317 = vstv %s1316
        %v1318 = vmul.f32 %v1317, %v1295
        %1320 = vrot.lane.b32.xlu0 %v1318, 125
        %v1321 = vpop.permute.xlu0 %1320
        %v1323 = vadd.f32 %v1315, %v1321
        %s1324 = sld [smem:[#allocation9 + $0x27]]
        %v1325 = vstv %s1324
        %v1326 = vmul.f32 %v1325, %v1295
        %1328 = vrot.lane.b32.xlu0 %v1326, 124
        %v1329 = vpop.permute.xlu0 %1328
        %v1331 = vadd.f32 %v1323, %v1329
        %s1332 = sld [smem:[#allocation9 + $0x28]]
        %v1333 = vstv %s1332
        %v1334 = vmul.f32 %v1333, %v1295
        %1336 = vrot.lane.b32.xlu0 %v1334, 123
        %v1337 = vpop.permute.xlu0 %1336
        %v1339 = vadd.f32 %v1331, %v1337
        %s1340 = sld [smem:[#allocation9 + $0x29]]
        %v1341 = vstv %s1340
        %v1342 = vmul.f32 %v1341, %v1295
        %1344 = vrot.lane.b32.xlu0 %v1342, 122
        %v1345 = vpop.permute.xlu0 %1344
        %v1347 = vadd.f32 %v1339, %v1345
        %v1348 = vld [vmem:[#allocation2 + $0xe] sm:$0xff]
        %s1349 = sld [smem:[#allocation9 + $0x2a]]
        %v1350 = vstv %s1349
        %v1351 = vmul.f32 %v1350, %v1348
        %v1352 = vadd.f32 %v1347, %v1351
        %s1353 = sld [smem:[#allocation9 + $0x2b]]
        %v1354 = vstv %s1353
        %v1355 = vmul.f32 %v1354, %v1348
        %1357 = vrot.lane.b32.xlu0 %v1355, 127
        %v1358 = vpop.permute.xlu0 %1357
        %v1360 = vadd.f32 %v1352, %v1358
        %s1361 = sld [smem:[#allocation9 + $0x2c]]
        %v1362 = vstv %s1361
        %v1363 = vmul.f32 %v1362, %v1348
        %1365 = vrot.lane.b32.xlu0 %v1363, 126
        %v1366 = vpop.permute.xlu0 %1365
        %v1368 = vadd.f32 %v1360, %v1366
        %s1369 = sld [smem:[#allocation9 + $0x2d]]
        %v1370 = vstv %s1369
        %v1371 = vmul.f32 %v1370, %v1348
        %1373 = vrot.lane.b32.xlu0 %v1371, 125
        %v1374 = vpop.permute.xlu0 %1373
        %v1376 = vadd.f32 %v1368, %v1374
        %s1377 = sld [smem:[#allocation9 + $0x2e]]
        %v1378 = vstv %s1377
        %v1379 = vmul.f32 %v1378, %v1348
        %1381 = vrot.lane.b32.xlu0 %v1379, 124
        %v1382 = vpop.permute.xlu0 %1381
        %v1384 = vadd.f32 %v1376, %v1382
        %s1385 = sld [smem:[#allocation9 + $0x2f]]
        %v1386 = vstv %s1385
        %v1387 = vmul.f32 %v1386, %v1348
        %1389 = vrot.lane.b32.xlu0 %v1387, 123
        %v1390 = vpop.permute.xlu0 %1389
        %v1392 = vadd.f32 %v1384, %v1390
        %s1393 = sld [smem:[#allocation9 + $0x30]]
        %v1394 = vstv %s1393
        %v1395 = vmul.f32 %v1394, %v1348
        %1397 = vrot.lane.b32.xlu0 %v1395, 122
        %v1398 = vpop.permute.xlu0 %1397
        %v1400 = vadd.f32 %v1392, %v1398
        %v1401 = vld [vmem:[%s276 + $0x8] sm:$0xff]
        %s1402 = sld [smem:[#allocation9 + $0x31]]
        %v1403 = vstv %s1402
        %v1404 = vmul.f32 %v1403, %v1401
        %v1405 = vadd.f32 %v1400, %v1404
        %s1406 = sld [smem:[#allocation9 + $0x32]]
        %v1407 = vstv %s1406
        %v1408 = vmul.f32 %v1407, %v1401
        %1410 = vrot.lane.b32.xlu0 %v1408, 127
        %v1411 = vpop.permute.xlu0 %1410
        %v1413 = vadd.f32 %v1405, %v1411
        %s1414 = sld [smem:[#allocation9 + $0x33]]
        %v1415 = vstv %s1414
        %v1416 = vmul.f32 %v1415, %v1401
        %1418 = vrot.lane.b32.xlu0 %v1416, 126
        %v1419 = vpop.permute.xlu0 %1418
        %v1421 = vadd.f32 %v1413, %v1419
        %s1422 = sld [smem:[#allocation9 + $0x34]]
        %v1423 = vstv %s1422
        %v1424 = vmul.f32 %v1423, %v1401
        %1426 = vrot.lane.b32.xlu0 %v1424, 125
        %v1427 = vpop.permute.xlu0 %1426
        %v1429 = vadd.f32 %v1421, %v1427
        %s1430 = sld [smem:[#allocation9 + $0x35]]
        %v1431 = vstv %s1430
        %v1432 = vmul.f32 %v1431, %v1401
        %1434 = vrot.lane.b32.xlu0 %v1432, 124
        %v1435 = vpop.permute.xlu0 %1434
        %v1437 = vadd.f32 %v1429, %v1435
        %s1438 = sld [smem:[#allocation9 + $0x36]]
        %v1439 = vstv %s1438
        %v1440 = vmul.f32 %v1439, %v1401
        %1442 = vrot.lane.b32.xlu0 %v1440, 123
        %v1443 = vpop.permute.xlu0 %1442
        %v1445 = vadd.f32 %v1437, %v1443
        %s1446 = sld [smem:[#allocation9 + $0x37]]
        %v1447 = vstv %s1446
        %v1448 = vmul.f32 %v1447, %v1401
        %1450 = vrot.lane.b32.xlu0 %v1448, 122
        %v1451 = vpop.permute.xlu0 %1450
        %v1453 = vadd.f32 %v1445, %v1451
        %v1454 = vld [vmem:[%s276 + $0x9] sm:$0xff]
        %s1455 = sld [smem:[#allocation9 + $0x38]]
        %v1456 = vstv %s1455
        %v1457 = vmul.f32 %v1456, %v1454
        %v1458 = vadd.f32 %v1453, %v1457
        %s1459 = sld [smem:[#allocation9 + $0x39]]
        %v1460 = vstv %s1459
        %v1461 = vmul.f32 %v1460, %v1454
        %1463 = vrot.lane.b32.xlu0 %v1461, 127
        %v1464 = vpop.permute.xlu0 %1463
        %v1466 = vadd.f32 %v1458, %v1464
        %s1467 = sld [smem:[#allocation9 + $0x3a]]
        %v1468 = vstv %s1467
        %v1469 = vmul.f32 %v1468, %v1454
        %1471 = vrot.lane.b32.xlu0 %v1469, 126
        %v1472 = vpop.permute.xlu0 %1471
        %v1474 = vadd.f32 %v1466, %v1472
        %s1475 = sld [smem:[#allocation9 + $0x3b]]
        %v1476 = vstv %s1475
        %v1477 = vmul.f32 %v1476, %v1454
        %1479 = vrot.lane.b32.xlu0 %v1477, 125
        %v1480 = vpop.permute.xlu0 %1479
        %v1482 = vadd.f32 %v1474, %v1480
        %s1483 = sld [smem:[#allocation9 + $0x3c]]
        %v1484 = vstv %s1483
        %v1485 = vmul.f32 %v1484, %v1454
        %1487 = vrot.lane.b32.xlu0 %v1485, 124
        %v1488 = vpop.permute.xlu0 %1487
        %v1490 = vadd.f32 %v1482, %v1488
        %s1491 = sld [smem:[#allocation9 + $0x3d]]
        %v1492 = vstv %s1491
        %v1493 = vmul.f32 %v1492, %v1454
        %1495 = vrot.lane.b32.xlu0 %v1493, 123
        %v1496 = vpop.permute.xlu0 %1495
        %v1498 = vadd.f32 %v1490, %v1496
        %s1499 = sld [smem:[#allocation9 + $0x3e]]
        %v1500 = vstv %s1499
        %v1501 = vmul.f32 %v1500, %v1454
        %1503 = vrot.lane.b32.xlu0 %v1501, 122
        %v1504 = vpop.permute.xlu0 %1503
        %v1506 = vadd.f32 %v1498, %v1504
        %v1507 = vld [vmem:[%s276 + $0xa] sm:$0xff]
        %s1508 = sld [smem:[#allocation9 + $0x3f]]
        %v1509 = vstv %s1508
        %v1510 = vmul.f32 %v1509, %v1507
        %v1511 = vadd.f32 %v1506, %v1510
        %s1512 = sld [smem:[#allocation9 + $0x40]]
        %v1513 = vstv %s1512
        %v1514 = vmul.f32 %v1513, %v1507
        %1516 = vrot.lane.b32.xlu0 %v1514, 127
        %v1517 = vpop.permute.xlu0 %1516
        %v1519 = vadd.f32 %v1511, %v1517
        %s1520 = sld [smem:[#allocation9 + $0x41]]
        %v1521 = vstv %s1520
        %v1522 = vmul.f32 %v1521, %v1507
        %1524 = vrot.lane.b32.xlu0 %v1522, 126
        %v1525 = vpop.permute.xlu0 %1524
        %v1527 = vadd.f32 %v1519, %v1525
        %s1528 = sld [smem:[#allocation9 + $0x42]]
        %v1529 = vstv %s1528
        %v1530 = vmul.f32 %v1529, %v1507
        %1532 = vrot.lane.b32.xlu0 %v1530, 125
        %v1533 = vpop.permute.xlu0 %1532
        %v1535 = vadd.f32 %v1527, %v1533
        %s1536 = sld [smem:[#allocation9 + $0x43]]
        %v1537 = vstv %s1536
        %v1538 = vmul.f32 %v1537, %v1507
        %1540 = vrot.lane.b32.xlu0 %v1538, 124
        %v1541 = vpop.permute.xlu0 %1540
        %v1543 = vadd.f32 %v1535, %v1541
        %s1544 = sld [smem:[#allocation9 + $0x44]]
        %v1545 = vstv %s1544
        %v1546 = vmul.f32 %v1545, %v1507
        %1548 = vrot.lane.b32.xlu0 %v1546, 123
        %v1549 = vpop.permute.xlu0 %1548
        %v1551 = vadd.f32 %v1543, %v1549
        %s1552 = sld [smem:[#allocation9 + $0x45]]
        %v1553 = vstv %s1552
        %v1554 = vmul.f32 %v1553, %v1507
        %1556 = vrot.lane.b32.xlu0 %v1554, 122
        %v1557 = vpop.permute.xlu0 %1556
        %v1559 = vadd.f32 %v1551, %v1557
        %v1560 = vld [vmem:[%s276 + $0xb] sm:$0xff]
        %s1561 = sld [smem:[#allocation9 + $0x46]]
        %v1562 = vstv %s1561
        %v1563 = vmul.f32 %v1562, %v1560
        %v1564 = vadd.f32 %v1559, %v1563
        %s1565 = sld [smem:[#allocation9 + $0x47]]
        %v1566 = vstv %s1565
        %v1567 = vmul.f32 %v1566, %v1560
        %1569 = vrot.lane.b32.xlu0 %v1567, 127
        %v1570 = vpop.permute.xlu0 %1569
        %v1572 = vadd.f32 %v1564, %v1570
        %s1573 = sld [smem:[#allocation9 + $0x48]]
        %v1574 = vstv %s1573
        %v1575 = vmul.f32 %v1574, %v1560
        %1577 = vrot.lane.b32.xlu0 %v1575, 126
        %v1578 = vpop.permute.xlu0 %1577
        %v1580 = vadd.f32 %v1572, %v1578
        %s1581 = sld [smem:[#allocation9 + $0x49]]
        %v1582 = vstv %s1581
        %v1583 = vmul.f32 %v1582, %v1560
        %1585 = vrot.lane.b32.xlu0 %v1583, 125
        %v1586 = vpop.permute.xlu0 %1585
        %v1588 = vadd.f32 %v1580, %v1586
        %s1589 = sld [smem:[#allocation9 + $0x4a]]
        %v1590 = vstv %s1589
        %v1591 = vmul.f32 %v1590, %v1560
        %1593 = vrot.lane.b32.xlu0 %v1591, 124
        %v1594 = vpop.permute.xlu0 %1593
        %v1596 = vadd.f32 %v1588, %v1594
        %s1597 = sld [smem:[#allocation9 + $0x4b]]
        %v1598 = vstv %s1597
        %v1599 = vmul.f32 %v1598, %v1560
        %1601 = vrot.lane.b32.xlu0 %v1599, 123
        %v1602 = vpop.permute.xlu0 %1601
        %v1604 = vadd.f32 %v1596, %v1602
        %s1605 = sld [smem:[#allocation9 + $0x4c]]
        %v1606 = vstv %s1605
        %v1607 = vmul.f32 %v1606, %v1560
        %1609 = vrot.lane.b32.xlu0 %v1607, 122
        %v1610 = vpop.permute.xlu0 %1609
        %v1612 = vadd.f32 %v1604, %v1610
        %v1613 = vld [vmem:[%s276 + $0xc] sm:$0xff]
        %s1614 = sld [smem:[#allocation9 + $0x4d]]
        %v1615 = vstv %s1614
        %v1616 = vmul.f32 %v1615, %v1613
        %v1617 = vadd.f32 %v1612, %v1616
        %s1618 = sld [smem:[#allocation9 + $0x4e]]
        %v1619 = vstv %s1618
        %v1620 = vmul.f32 %v1619, %v1613
        %1622 = vrot.lane.b32.xlu0 %v1620, 127
        %v1623 = vpop.permute.xlu0 %1622
        %v1625 = vadd.f32 %v1617, %v1623
        %s1626 = sld [smem:[#allocation9 + $0x4f]]
        %v1627 = vstv %s1626
        %v1628 = vmul.f32 %v1627, %v1613
        %1630 = vrot.lane.b32.xlu0 %v1628, 126
        %v1631 = vpop.permute.xlu0 %1630
        %v1633 = vadd.f32 %v1625, %v1631
        %s1634 = sld [smem:[#allocation9 + $0x50]]
        %v1635 = vstv %s1634
        %v1636 = vmul.f32 %v1635, %v1613
        %1638 = vrot.lane.b32.xlu0 %v1636, 125
        %v1639 = vpop.permute.xlu0 %1638
        %v1641 = vadd.f32 %v1633, %v1639
        %s1642 = sld [smem:[#allocation9 + $0x51]]
        %v1643 = vstv %s1642
        %v1644 = vmul.f32 %v1643, %v1613
        %1646 = vrot.lane.b32.xlu0 %v1644, 124
        %v1647 = vpop.permute.xlu0 %1646
        %v1649 = vadd.f32 %v1641, %v1647
        %s1650 = sld [smem:[#allocation9 + $0x52]]
        %v1651 = vstv %s1650
        %v1652 = vmul.f32 %v1651, %v1613
        %1654 = vrot.lane.b32.xlu0 %v1652, 123
        %v1655 = vpop.permute.xlu0 %1654
        %v1657 = vadd.f32 %v1649, %v1655
        %s1658 = sld [smem:[#allocation9 + $0x53]]
        %v1659 = vstv %s1658
        %v1660 = vmul.f32 %v1659, %v1613
        %1662 = vrot.lane.b32.xlu0 %v1660, 122
        %v1663 = vpop.permute.xlu0 %1662
        %v1665 = vadd.f32 %v1657, %v1663
        %v1666 = vld [vmem:[%s276 + $0xd] sm:$0xff]
        %s1667 = sld [smem:[#allocation9 + $0x54]]
        %v1668 = vstv %s1667
        %v1669 = vmul.f32 %v1668, %v1666
        %v1670 = vadd.f32 %v1665, %v1669
        %s1671 = sld [smem:[#allocation9 + $0x55]]
        %v1672 = vstv %s1671
        %v1673 = vmul.f32 %v1672, %v1666
        %1675 = vrot.lane.b32.xlu0 %v1673, 127
        %v1676 = vpop.permute.xlu0 %1675
        %v1678 = vadd.f32 %v1670, %v1676
        %s1679 = sld [smem:[#allocation9 + $0x56]]
        %v1680 = vstv %s1679
        %v1681 = vmul.f32 %v1680, %v1666
        %1683 = vrot.lane.b32.xlu0 %v1681, 126
        %v1684 = vpop.permute.xlu0 %1683
        %v1686 = vadd.f32 %v1678, %v1684
        %s1687 = sld [smem:[#allocation9 + $0x57]]
        %v1688 = vstv %s1687
        %v1689 = vmul.f32 %v1688, %v1666
        %1691 = vrot.lane.b32.xlu0 %v1689, 125
        %v1692 = vpop.permute.xlu0 %1691
        %v1694 = vadd.f32 %v1686, %v1692
        %s1695 = sld [smem:[#allocation9 + $0x58]]
        %v1696 = vstv %s1695
        %v1697 = vmul.f32 %v1696, %v1666
        %1699 = vrot.lane.b32.xlu0 %v1697, 124
        %v1700 = vpop.permute.xlu0 %1699
        %v1702 = vadd.f32 %v1694, %v1700
        %s1703 = sld [smem:[#allocation9 + $0x59]]
        %v1704 = vstv %s1703
        %v1705 = vmul.f32 %v1704, %v1666
        %1707 = vrot.lane.b32.xlu0 %v1705, 123
        %v1708 = vpop.permute.xlu0 %1707
        %v1710 = vadd.f32 %v1702, %v1708
        %s1711 = sld [smem:[#allocation9 + $0x5a]]
        %v1712 = vstv %s1711
        %v1713 = vmul.f32 %v1712, %v1666
        %1715 = vrot.lane.b32.xlu0 %v1713, 122
        %v1716 = vpop.permute.xlu0 %1715
        %v1718 = vadd.f32 %v1710, %v1716
        %v1719 = vld [vmem:[%s276 + $0xe] sm:$0xff]
        %s1720 = sld [smem:[#allocation9 + $0x5b]]
        %v1721 = vstv %s1720
        %v1722 = vmul.f32 %v1721, %v1719
        %v1723 = vadd.f32 %v1718, %v1722
        %s1724 = sld [smem:[#allocation9 + $0x5c]]
        %v1725 = vstv %s1724
        %v1726 = vmul.f32 %v1725, %v1719
        %1728 = vrot.lane.b32.xlu0 %v1726, 127
        %v1729 = vpop.permute.xlu0 %1728
        %v1731 = vadd.f32 %v1723, %v1729
        %s1732 = sld [smem:[#allocation9 + $0x5d]]
        %v1733 = vstv %s1732
        %v1734 = vmul.f32 %v1733, %v1719
        %1736 = vrot.lane.b32.xlu0 %v1734, 126
        %v1737 = vpop.permute.xlu0 %1736
        %v1739 = vadd.f32 %v1731, %v1737
        %s1740 = sld [smem:[#allocation9 + $0x5e]]
        %v1741 = vstv %s1740
        %v1742 = vmul.f32 %v1741, %v1719
        %1744 = vrot.lane.b32.xlu0 %v1742, 125
        %v1745 = vpop.permute.xlu0 %1744
        %v1747 = vadd.f32 %v1739, %v1745
        %s1748 = sld [smem:[#allocation9 + $0x5f]]
        %v1749 = vstv %s1748
        %v1750 = vmul.f32 %v1749, %v1719
        %1752 = vrot.lane.b32.xlu0 %v1750, 124
        %v1753 = vpop.permute.xlu0 %1752
        %v1755 = vadd.f32 %v1747, %v1753
        %s1756 = sld [smem:[#allocation9 + $0x60]]
        %v1757 = vstv %s1756
        %v1758 = vmul.f32 %v1757, %v1719
        %1760 = vrot.lane.b32.xlu0 %v1758, 123
        %v1761 = vpop.permute.xlu0 %1760
        %v1763 = vadd.f32 %v1755, %v1761
        %s1764 = sld [smem:[#allocation9 + $0x61]]
        %v1765 = vstv %s1764
        %v1766 = vmul.f32 %v1765, %v1719
        %1768 = vrot.lane.b32.xlu0 %v1766, 122
        %v1769 = vpop.permute.xlu0 %1768
        %v1771 = vadd.f32 %v1763, %v1769
        %v1772 = vxor.u32 %v1771, 2147483648
        %v1773 = vmul.f32 %v1772, 1.442695
        %v1774 = vpow.pop %v1773
        %v1775 = vadd.f32 %v1774, 1.0
        %v1776 = vrcp.pop %v1775
        %v1777 = vmul.f32 1.0, %v1776
        %1778 = vst.msk [vmem:[#allocation3 + $0x8] sm:$0xff] %vm212, %v1777
        %v1779 = vld [vmem:[#allocation3] sm:$0xff]
        %v1780 = vld [vmem:[#allocation3 + $0x8] sm:$0xff]
        %v1781 = vld [vmem:[%s176] sm:$0xff]
        %v1782 = vld [vmem:[%s176 + $0x8] sm:$0xff]
        %v1783 = vld [vmem:[%s176 + $0x10] sm:$0xff]
        %v1784 = vld [vmem:[%s176 + $0x18] sm:$0xff]
        %v1785 = vld [vmem:[%s176 + $0x20] sm:$0xff]
        %v1786 = vld [vmem:[%s176 + $0x28] sm:$0xff]
        %v1787 = vld [vmem:[%s176 + $0x30] sm:$0xff]
        %v1788 = vld [vmem:[%s176 + $0x38] sm:$0xff]
        %v1789 = vmul.f32 %v1781, %v1779
        %v1790 = vmul.f32 %v1782, %v1780
        %v1791 = vmul.f32 %v1783, %v1779
        %v1792 = vmul.f32 %v1784, %v1780
        %v1793 = vmul.f32 %v1785, %v1779
        %v1794 = vmul.f32 %v1786, %v1780
        %v1795 = vmul.f32 %v1787, %v1779
        %v1796 = vmul.f32 %v1788, %v1780
        %1797 = vst.msk [vmem:[%s203] sm:$0xff] %vm212, %v1789
        %1798 = vst.msk [vmem:[%s203 + $0x8] sm:$0xff] %vm212, %v1790
        %1799 = vst.msk [vmem:[%s203 + $0x10] sm:$0xff] %vm212, %v1791
        %1800 = vst.msk [vmem:[%s203 + $0x18] sm:$0xff] %vm212, %v1792
        %1801 = vst.msk [vmem:[%s203 + $0x20] sm:$0xff] %vm212, %v1793
        %1802 = vst.msk [vmem:[%s203 + $0x28] sm:$0xff] %vm212, %v1794
        %1803 = vst.msk [vmem:[%s203 + $0x30] sm:$0xff] %vm212, %v1795
        %1804 = vst.msk [vmem:[%s203 + $0x38] sm:$0xff] %vm212, %v1796
        %s1805 = sand.u32 %s98, 1
        %s1806 = scalar_lea.sflag [#allocation7], %s1805
        %s1807 = sand.u32 %s98, 1
        %s1808 = smul.addr %s1807, 64
        %s1809 = scalar_lea.vmem [#allocation10], %s1808
        // Predicated region
        $region41: #{tpu_custom_call.1} parent=31 // pred_check
          %p1810 = pneg %p108
        $region42: #{tpu_custom_call.1} parent=31 // pred_check_branch
          %1812 = sbr.rel (%p1810) target = $region44
        $region43: #{tpu_custom_call.1} parent=31 // pred_region
          %s1814 = ssub.s32 1024, 1024
          %1815 = vsyncadd %s1806, %s1814
          %s1816 = smul.addr %s22, 8
          %s1817 = smul.addr %s1816, 128
          %s1818 = scalar_lea.hbm %s3, %s1817
          %s1819 = sshll.u32 %s1809, 4
          %s1820 = int_to_ptr.vmem [resolvable:$true] %s1819
          %1825 = dma.vmem_to_hbm [thread:$0]  %s1820, 1024, %s1818, %s1806, 128, 128, 8
        $region44: #{tpu_custom_call.1} parent=31 // pred_fallthru
          _
      $region32: #{tpu_custom_call.1} parent=5 // pred_fallthru
        _
      %p1826 = scmp.le.s32.totalorder 2, %s17
      // Predicated region
      $region45: #{tpu_custom_call.1} parent=5 // pred_check
        %p1827 = pneg %p1826
      $region46: #{tpu_custom_call.1} parent=5 // pred_check_branch
        %1829 = sbr.rel (%p1827) target = $region48
      $region47: #{tpu_custom_call.1} parent=5 // pred_region
        %s1830 = ssub.s32 %s17, 2
        // Predicated region
        $region49: #{tpu_custom_call.1} parent=47 // pred_check
          %p1831 = pneg %p114
        $region50: #{tpu_custom_call.1} parent=47 // pred_check_branch
          %1833 = sbr.rel (%p1831) target = $region52
        $region51: #{tpu_custom_call.1} parent=47 // pred_region
          %s1834 = sand.u32 %s99, 1
          %s1835 = scalar_lea.sflag [#allocation7], %s1834
          %s1836 = sand.u32 %s99, 1
          %s1837 = smul.addr %s1836, 64
          %s1838 = scalar_lea.vmem [#allocation10], %s1837
          %1839 = dma.done %s1835, 1024
        $region52: #{tpu_custom_call.1} parent=47 // pred_fallthru
          _
      $region48: #{tpu_custom_call.1} parent=5 // pred_fallthru
        _
    $region6: #{tpu_custom_call.1} parent=1 // loop_footer
      %s21 = sadd.s32 1, %s17
    $region7: #{tpu_custom_call.1} parent=1 // loop_footer_branch
      %16 = sbr.rel target = $region3
    $region8: #{tpu_custom_call.1} parent=1 // loop_exit
      _
    %1840 = vsyncpa [#allocation6], 1
    %s1841 = scalar_lea.sflag [#allocation6], 1
    %1842 = vsyncpa %s1841, 1
    %1843 = vsyncpa [#allocation7], 1
    %s1844 = scalar_lea.sflag [#allocation7], 1
    %1845 = vsyncpa %s1844, 1
    %1846 = vsyncpa [#allocation8], 1
    %s1847 = scalar_lea.sflag [#allocation8], 1
    %1848 = vsyncpa %s1847, 1

</llo_original>
